<compile_context>
chip_gen: v7x
topology: tpu7x:2x2x1
jax: 0.10.0
libtpu: 0.0.40
codegen_flags: <defaults>
</compile_context>

<pallas_src>
import jax
import jax.numpy as jnp
from jax.experimental import pallas as pl
from jax.experimental.pallas import tpu as pltpu

# ---- scaled-down ViT config (same structure/semantics as ViT-base, tiny sizes) ----
B = 2
IN_CH = 3
IMG = 32
PATCH = 16
NP = (IMG // PATCH) ** 2          # 4 patches
SEQ = NP + 1                      # + CLS token -> 5
SEQ_PAD = 8                       # padded to a sublane multiple
TOK = B * SEQ_PAD                 # 16 rows
HIDDEN = 32
HEADS = 2
HEAD_DIM = HIDDEN // HEADS
INTER = 64
LAYERS = 2
NUM_LABELS = 10
LN_EPS = 1e-12                    # HF ViT layer_norm_eps
SCALE = 1.0 / float(HEAD_DIM) ** 0.5
NEG_INF = -1e30


def _vmem():
    return pl.BlockSpec(memory_space=pltpu.MemorySpace.VMEM)


def _smem():
    return pl.BlockSpec(memory_space=pltpu.MemorySpace.SMEM)


def _ln(x, g, b):
    mu = jnp.mean(x, axis=-1, keepdims=True)
    var = jnp.mean(jnp.square(x - mu), axis=-1, keepdims=True)
    return (x - mu) * jax.lax.rsqrt(var + LN_EPS) * g + b


def _gelu(h):
    # TODO(synk): HF ViT uses exact (erf) GELU; tanh approximation used for Mosaic portability.
    return 0.5 * h * (1.0 + jnp.tanh(0.7978845608028654 * (h + 0.044715 * h * h * h)))


# ---------------- single fused Pallas kernel: whole forward + loss ----------------
def vit_fused_kernel(
    tok_ref,                       # (TOK, IN_CH*PATCH*PATCH) im2col patches, CLS/pad rows zero
    patch_w_ref, patch_b_ref,      # (CPP, HIDDEN), (1, HIDDEN)
    cls_ref, pos_ref,              # (1, HIDDEN), (SEQ_PAD, HIDDEN)  (pos padded w/ zeros)
    ln1_g_ref, ln1_b_ref,          # (LAYERS, 1, HIDDEN)
    wqkv_ref, bqkv_ref,            # (LAYERS, HIDDEN, 3*HIDDEN), (LAYERS, 1, 3*HIDDEN)
    wo_ref, bo_ref,                # (LAYERS, HIDDEN, HIDDEN), (LAYERS, 1, HIDDEN)
    ln2_g_ref, ln2_b_ref,          # (LAYERS, 1, HIDDEN)
    w1_ref, b1_ref,                # (LAYERS, HIDDEN, INTER), (LAYERS, 1, INTER)
    w2_ref, b2_ref,                # (LAYERS, INTER, HIDDEN), (LAYERS, 1, HIDDEN)
    lnf_g_ref, lnf_b_ref,          # (1, HIDDEN)
    cls_w_ref, cls_b_ref,          # (HIDDEN, NUM_LABELS), (1, NUM_LABELS)
    labels_ref,                    # SMEM (B,) int32
    loss_ref,                      # out (1, 1) float32
):
    # ---- token assembly: patch-embed matmul + CLS token + positional embedding ----
    row_ids = jax.lax.broadcasted_iota(jnp.int32, (TOK, 1), 0)
    seq_pos = jnp.bitwise_and(row_ids, SEQ_PAD - 1)          # position within a sequence
    is_cls = (seq_pos == 0).astype(jnp.float32)              # (TOK, 1)
    is_patch = jnp.logical_and(seq_pos >= 1, seq_pos <= NP).astype(jnp.float32)

    emb = jnp.dot(tok_ref[...], patch_w_ref[...], preferred_element_type=jnp.float32)
    pos_full = jnp.concatenate([pos_ref[...]] * B, axis=0)   # (TOK, HIDDEN)
    h = (emb
         + is_patch * patch_b_ref[...]        # conv bias only on real patch rows
         + is_cls * cls_ref[...]              # CLS token at seq position 0
         + pos_full)                          # pos-emb (zero on pad rows)

    # key-position validity mask for attention (pad key columns get -inf)
    key_pos = jax.lax.broadcasted_iota(jnp.int32, (SEQ_PAD, SEQ_PAD), 1)
    key_valid = key_pos < SEQ

    # ---- transformer encoder layers (pre-norm), statically unrolled ----
    for l in range(LAYERS):
        # --- attention block ---
        hn = _ln(h, ln1_g_ref[l], ln1_b_ref[l])
        qkv = jnp.dot(hn, wqkv_ref[l], preferred_element_type=jnp.float32) + bqkv_ref[l]

        ctx_batches = []
        for b in range(B):
            qkv_b = qkv[b * SEQ_PAD:(b + 1) * SEQ_PAD, :]    # (SEQ_PAD, 3*HIDDEN)
            head_outs = []
            for hd in range(HEADS):
                q = qkv_b[:, hd * HEAD_DIM:(hd + 1) * HEAD_DIM]
                k = qkv_b[:, HIDDEN + hd * HEAD_DIM:HIDDEN + (hd + 1) * HEAD_DIM]
                v = qkv_b[:, 2 * HIDDEN + hd * HEAD_DIM:2 * HIDDEN + (hd + 1) * HEAD_DIM]
                s = jax.lax.dot_general(
                    q, k, (((1,), (1,)), ((), ())),
                    preferred_element_type=jnp.float32) * SCALE          # (SEQ_PAD, SEQ_PAD)
                s = jnp.where(key_valid, s, NEG_INF)
                s = s - jnp.max(s, axis=-1, keepdims=True)
                p = jnp.exp(s)
                p = p * pl.reciprocal(jnp.sum(p, axis=-1, keepdims=True), approx=True)
                head_outs.append(
                    jnp.dot(p, v, preferred_element_type=jnp.float32))   # (SEQ_PAD, HEAD_DIM)
            ctx_batches.append(jnp.concatenate(head_outs, axis=1))       # (SEQ_PAD, HIDDEN)
        ctx = jnp.concatenate(ctx_batches, axis=0)                       # (TOK, HIDDEN)

        attn_out = jnp.dot(ctx, wo_ref[l], preferred_element_type=jnp.float32) + bo_ref[l]
        h = h + attn_out                                                  # residual 1

        # --- MLP block ---
        hn2 = _ln(h, ln2_g_ref[l], ln2_b_ref[l])
        inter = jnp.dot(hn2, w1_ref[l], preferred_element_type=jnp.float32) + b1_ref[l]
        inter = _gelu(inter)
        mlp = jnp.dot(inter, w2_ref[l], preferred_element_type=jnp.float32) + b2_ref[l]
        h = h + mlp                                                       # residual 2

    # ---- final LN -> classifier on CLS token -> mean cross-entropy ----
    hf = _ln(h, lnf_g_ref[...], lnf_b_ref[...])
    cls_rows = jnp.concatenate(
        [hf[b * SEQ_PAD:b * SEQ_PAD + 1, :] for b in range(B)], axis=0)   # (B, HIDDEN)
    logits = jnp.dot(cls_rows, cls_w_ref[...],
                     preferred_element_type=jnp.float32) + cls_b_ref[...]  # (B, NUM_LABELS)

    m = jnp.max(logits, axis=-1, keepdims=True)
    z = logits - m
    lse = jnp.log(jnp.sum(jnp.exp(z), axis=-1, keepdims=True))            # (B, 1)
    col_ids = jax.lax.broadcasted_iota(jnp.int32, (1, NUM_LABELS), 1)

    total = jnp.zeros((1, 1), jnp.float32)
    for b in range(B):
        onehot_b = (col_ids == labels_ref[b]).astype(jnp.float32)         # (1, NUM_LABELS)
        picked_b = jnp.sum(onehot_b * z[b:b + 1, :], axis=-1, keepdims=True)
        total = total + lse[b:b + 1, :] - picked_b
    loss_ref[...] = total * (1.0 / B)


# ---------------- deterministic parameter init (stacked per-layer weights) ----------------
def init_params(key):
    keys = iter(jax.random.split(key, 64))

    def nrm(shape, s=0.02):
        return s * jax.random.normal(next(keys), shape, dtype=jnp.float32)

    return {
        # Conv2d(IN_CH, HIDDEN, kernel=PATCH, stride=PATCH) as an im2col matmul weight
        "patch_w": nrm((IN_CH * PATCH * PATCH, HIDDEN)),
        "patch_b": jnp.zeros((1, HIDDEN), jnp.float32),
        "cls": nrm((1, HIDDEN)),
        "pos": nrm((SEQ, HIDDEN)),
        "ln1_g": jnp.ones((LAYERS, 1, HIDDEN), jnp.float32),
        "ln1_b": jnp.zeros((LAYERS, 1, HIDDEN), jnp.float32),
        "wqkv": nrm((LAYERS, HIDDEN, 3 * HIDDEN)),           # fused Q|K|V projection
        "bqkv": jnp.zeros((LAYERS, 1, 3 * HIDDEN), jnp.float32),
        "wo": nrm((LAYERS, HIDDEN, HIDDEN)),
        "bo": jnp.zeros((LAYERS, 1, HIDDEN), jnp.float32),
        "ln2_g": jnp.ones((LAYERS, 1, HIDDEN), jnp.float32),
        "ln2_b": jnp.zeros((LAYERS, 1, HIDDEN), jnp.float32),
        "w1": nrm((LAYERS, HIDDEN, INTER)),
        "b1": jnp.zeros((LAYERS, 1, INTER), jnp.float32),
        "w2": nrm((LAYERS, INTER, HIDDEN)),
        "b2": jnp.zeros((LAYERS, 1, HIDDEN), jnp.float32),
        "lnf_g": jnp.ones((1, HIDDEN), jnp.float32),
        "lnf_b": jnp.zeros((1, HIDDEN), jnp.float32),
        "cls_w": nrm((HIDDEN, NUM_LABELS)),
        "cls_b": jnp.zeros((1, NUM_LABELS), jnp.float32),
    }


# ---------------- forward: wrapper does only im2col layout plumbing ----------------
def vit_forward(params, pixel_values, labels):
    x = pixel_values.astype(jnp.float32)
    Bn, C, H, W = x.shape
    gh, gw = H // PATCH, W // PATCH
    cpp = C * PATCH * PATCH

    # im2col for the stride==kernel patch-embedding conv (pure reshape/transpose);
    # per-patch vector order is (C, ph, pw) to match Conv2d weight flattening.
    patches = x.reshape(Bn, C, gh, PATCH, gw, PATCH)
    patches = patches.transpose(0, 2, 4, 1, 3, 5).reshape(Bn, gh * gw, cpp)
    # place patch rows at sequence positions 1..NP; CLS slot (0) and pad rows are zero
    tok = jnp.concatenate(
        [jnp.zeros((Bn, 1, cpp), jnp.float32),
         patches,
         jnp.zeros((Bn, SEQ_PAD - 1 - gh * gw, cpp), jnp.float32)],
        axis=1).reshape(Bn * SEQ_PAD, cpp)
    pos_pad = jnp.concatenate(
        [params["pos"], jnp.zeros((SEQ_PAD - SEQ, HIDDEN), jnp.float32)], axis=0)

    loss = pl.pallas_call(
        vit_fused_kernel,
        out_shape=jax.ShapeDtypeStruct((1, 1), jnp.float32),
        in_specs=[_vmem()] * 21 + [_smem()],
        out_specs=_vmem(),
        compiler_params=pltpu.CompilerParams(vmem_limit_bytes=32 * 1024 * 1024),
    )(tok, params["patch_w"], params["patch_b"], params["cls"], pos_pad,
      params["ln1_g"], params["ln1_b"], params["wqkv"], params["bqkv"],
      params["wo"], params["bo"], params["ln2_g"], params["ln2_b"],
      params["w1"], params["b1"], params["w2"], params["b2"],
      params["lnf_g"], params["lnf_b"], params["cls_w"], params["cls_b"],
      labels.astype(jnp.int32))
    return loss[0, 0]


if __name__ == "__main__":
    key = jax.random.PRNGKey(0)
    kp, kx, kl = jax.random.split(key, 3)
    params = init_params(kp)
    pixel_values = jax.random.normal(kx, (B, IN_CH, IMG, IMG), dtype=jnp.float32)
    labels = jax.random.randint(kl, (B,), 0, NUM_LABELS, dtype=jnp.int32)

    loss = jax.jit(vit_forward)(params, pixel_values, labels)
    jax.block_until_ready(loss)
    print("KERNEL_OK")
</pallas_src>

<mosaic_0001>
module attributes {stable_mosaic.version = 11 : i64} {
  func.func @vit_fused_kernel(%arg0: memref<16x768xf32, #tpu.memory_space<vmem>>, %arg1: memref<768x32xf32, #tpu.memory_space<vmem>>, %arg2: memref<1x32xf32, #tpu.memory_space<vmem>>, %arg3: memref<1x32xf32, #tpu.memory_space<vmem>>, %arg4: memref<8x32xf32, #tpu.memory_space<vmem>>, %arg5: memref<2x1x32xf32, #tpu.memory_space<vmem>>, %arg6: memref<2x1x32xf32, #tpu.memory_space<vmem>>, %arg7: memref<2x32x96xf32, #tpu.memory_space<vmem>>, %arg8: memref<2x1x96xf32, #tpu.memory_space<vmem>>, %arg9: memref<2x32x32xf32, #tpu.memory_space<vmem>>, %arg10: memref<2x1x32xf32, #tpu.memory_space<vmem>>, %arg11: memref<2x1x32xf32, #tpu.memory_space<vmem>>, %arg12: memref<2x1x32xf32, #tpu.memory_space<vmem>>, %arg13: memref<2x32x64xf32, #tpu.memory_space<vmem>>, %arg14: memref<2x1x64xf32, #tpu.memory_space<vmem>>, %arg15: memref<2x64x32xf32, #tpu.memory_space<vmem>>, %arg16: memref<2x1x32xf32, #tpu.memory_space<vmem>>, %arg17: memref<1x32xf32, #tpu.memory_space<vmem>>, %arg18: memref<1x32xf32, #tpu.memory_space<vmem>>, %arg19: memref<32x10xf32, #tpu.memory_space<vmem>>, %arg20: memref<1x10xf32, #tpu.memory_space<vmem>>, %arg21: memref<2xi32, #tpu.memory_space<smem>>, %arg22: memref<1x1xf32, #tpu.memory_space<vmem>>) attributes {dimension_semantics = [], scalar_prefetch = 0 : i64, scratch_operands = 0 : i64, tpu.core_type = #tpu.core_type<tc>} {
    %0 = tpu.iota {dimensions = array<i32: 0>} : vector<16x1xi32>
    %c7_i32 = arith.constant 7 : i32
    %1 = vector.broadcast %c7_i32 : i32 to vector<16x1xi32>
    %2 = arith.andi %0, %1 : vector<16x1xi32>
    %c0_i32 = arith.constant 0 : i32
    %3 = vector.broadcast %c0_i32 : i32 to vector<16x1xi32>
    %4 = arith.cmpi eq, %2, %3 : vector<16x1xi32>
    %5 = arith.extui %4 : vector<16x1xi1> to vector<16x1xi32>
    %6 = arith.sitofp %5 : vector<16x1xi32> to vector<16x1xf32>
    %c1_i32 = arith.constant 1 : i32
    %7 = vector.broadcast %c1_i32 : i32 to vector<16x1xi32>
    %8 = arith.cmpi sge, %2, %7 : vector<16x1xi32>
    %c4_i32 = arith.constant 4 : i32
    %9 = vector.broadcast %c4_i32 : i32 to vector<16x1xi32>
    %10 = arith.cmpi sle, %2, %9 : vector<16x1xi32>
    %11 = arith.andi %8, %10 : vector<16x1xi1>
    %12 = arith.extui %11 : vector<16x1xi1> to vector<16x1xi32>
    %13 = arith.sitofp %12 : vector<16x1xi32> to vector<16x1xf32>
    %c0 = arith.constant 0 : index
    %c0_0 = arith.constant 0 : index
    %14 = vector.load %arg0[%c0, %c0_0] : memref<16x768xf32, #tpu.memory_space<vmem>>, vector<16x768xf32>
    %c0_1 = arith.constant 0 : index
    %c0_2 = arith.constant 0 : index
    %15 = vector.load %arg1[%c0_1, %c0_2] : memref<768x32xf32, #tpu.memory_space<vmem>>, vector<768x32xf32>
    %cst = arith.constant dense<0.000000e+00> : vector<16x32xf32>
    %16 = tpu.matmul %14, %15, %cst {dimension_numbers = #tpu.dot_dimension_numbers<[1], [0], [0], [1], [0, 0, 1, 1], [], []>} : vector<16x768xf32>, vector<768x32xf32>, vector<16x32xf32> -> vector<16x32xf32>
    %c0_3 = arith.constant 0 : index
    %c0_4 = arith.constant 0 : index
    %17 = vector.load %arg4[%c0_3, %c0_4] : memref<8x32xf32, #tpu.memory_space<vmem>>, vector<8x32xf32>
    %18 = tpu.concatenate %17, %17 in 0 : vector<8x32xf32>, vector<8x32xf32> -> vector<16x32xf32>
    %c0_5 = arith.constant 0 : index
    %c0_6 = arith.constant 0 : index
    %19 = vector.load %arg2[%c0_5, %c0_6] : memref<1x32xf32, #tpu.memory_space<vmem>>, vector<1x32xf32>
    %20 = vector.broadcast %13 : vector<16x1xf32> to vector<16x32xf32>
    %21 = vector.broadcast %19 : vector<1x32xf32> to vector<16x32xf32>
    %22 = arith.mulf %20, %21 : vector<16x32xf32>
    %23 = arith.addf %16, %22 : vector<16x32xf32>
    %c0_7 = arith.constant 0 : index
    %c0_8 = arith.constant 0 : index
    %24 = vector.load %arg3[%c0_7, %c0_8] : memref<1x32xf32, #tpu.memory_space<vmem>>, vector<1x32xf32>
    %25 = vector.broadcast %6 : vector<16x1xf32> to vector<16x32xf32>
    %26 = vector.broadcast %24 : vector<1x32xf32> to vector<16x32xf32>
    %27 = arith.mulf %25, %26 : vector<16x32xf32>
    %28 = arith.addf %23, %27 : vector<16x32xf32>
    %29 = arith.addf %28, %18 : vector<16x32xf32>
    %30 = tpu.iota {dimensions = array<i32: 1>} : vector<8x8xi32>
    %c5_i32 = arith.constant 5 : i32
    %31 = vector.broadcast %c5_i32 : i32 to vector<8x8xi32>
    %32 = arith.cmpi slt, %30, %31 : vector<8x8xi32>
    %c0_9 = arith.constant 0 : index
    %c0_10 = arith.constant 0 : index
    %c0_11 = arith.constant 0 : index
    %33 = vector.load %arg5[%c0_9, %c0_10, %c0_11] : memref<2x1x32xf32, #tpu.memory_space<vmem>>, vector<1x1x32xf32>
    %34 = vector.shape_cast %33 : vector<1x1x32xf32> to vector<1x32xf32>
    %c0_12 = arith.constant 0 : index
    %c0_13 = arith.constant 0 : index
    %c0_14 = arith.constant 0 : index
    %35 = vector.load %arg6[%c0_12, %c0_13, %c0_14] : memref<2x1x32xf32, #tpu.memory_space<vmem>>, vector<1x1x32xf32>
    %36 = vector.shape_cast %35 : vector<1x1x32xf32> to vector<1x32xf32>
    %cst_15 = arith.constant dense<0.000000e+00> : vector<16xf32>
    %37 = vector.multi_reduction <add>, %29, %cst_15 [1] : vector<16x32xf32> to vector<16xf32>
    %38 = vector.shape_cast %37 : vector<16xf32> to vector<16x1xf32>
    %cst_16 = arith.constant 3.200000e+01 : f32
    %39 = vector.broadcast %cst_16 : f32 to vector<16x1xf32>
    %40 = arith.divf %38, %39 : vector<16x1xf32>
    %41 = vector.broadcast %40 : vector<16x1xf32> to vector<16x32xf32>
    %42 = arith.subf %29, %41 : vector<16x32xf32>
    %43 = arith.mulf %42, %42 : vector<16x32xf32>
    %cst_17 = arith.constant dense<0.000000e+00> : vector<16xf32>
    %44 = vector.multi_reduction <add>, %43, %cst_17 [1] : vector<16x32xf32> to vector<16xf32>
    %45 = vector.shape_cast %44 : vector<16xf32> to vector<16x1xf32>
    %cst_18 = arith.constant 3.200000e+01 : f32
    %46 = vector.broadcast %cst_18 : f32 to vector<16x1xf32>
    %47 = arith.divf %45, %46 : vector<16x1xf32>
    %48 = vector.broadcast %40 : vector<16x1xf32> to vector<16x32xf32>
    %49 = arith.subf %29, %48 : vector<16x32xf32>
    %cst_19 = arith.constant 9.99999996E-13 : f32
    %50 = vector.broadcast %cst_19 : f32 to vector<16x1xf32>
    %51 = arith.addf %47, %50 : vector<16x1xf32>
    %52 = math.rsqrt %51 : vector<16x1xf32>
    %53 = vector.broadcast %52 : vector<16x1xf32> to vector<16x32xf32>
    %54 = arith.mulf %49, %53 : vector<16x32xf32>
    %55 = vector.broadcast %34 : vector<1x32xf32> to vector<16x32xf32>
    %56 = arith.mulf %54, %55 : vector<16x32xf32>
    %57 = vector.broadcast %36 : vector<1x32xf32> to vector<16x32xf32>
    %58 = arith.addf %56, %57 : vector<16x32xf32>
    %c0_20 = arith.constant 0 : index
    %c0_21 = arith.constant 0 : index
    %c0_22 = arith.constant 0 : index
    %59 = vector.load %arg7[%c0_20, %c0_21, %c0_22] : memref<2x32x96xf32, #tpu.memory_space<vmem>>, vector<1x32x96xf32>
    %60 = vector.shape_cast %59 : vector<1x32x96xf32> to vector<32x96xf32>
    %cst_23 = arith.constant dense<0.000000e+00> : vector<16x96xf32>
    %61 = tpu.matmul %58, %60, %cst_23 {dimension_numbers = #tpu.dot_dimension_numbers<[1], [0], [0], [1], [0, 0, 1, 1], [], []>} : vector<16x32xf32>, vector<32x96xf32>, vector<16x96xf32> -> vector<16x96xf32>
    %c0_24 = arith.constant 0 : index
    %c0_25 = arith.constant 0 : index
    %c0_26 = arith.constant 0 : index
    %62 = vector.load %arg8[%c0_24, %c0_25, %c0_26] : memref<2x1x96xf32, #tpu.memory_space<vmem>>, vector<1x1x96xf32>
    %63 = vector.shape_cast %62 : vector<1x1x96xf32> to vector<1x96xf32>
    %64 = vector.broadcast %63 : vector<1x96xf32> to vector<16x96xf32>
    %65 = arith.addf %61, %64 : vector<16x96xf32>
    %66 = vector.extract_strided_slice %65 {offsets = [0, 0], sizes = [8, 96], strides = [1, 1]} : vector<16x96xf32> to vector<8x96xf32>
    %67 = vector.extract_strided_slice %66 {offsets = [0, 0], sizes = [8, 16], strides = [1, 1]} : vector<8x96xf32> to vector<8x16xf32>
    %68 = vector.extract_strided_slice %66 {offsets = [0, 32], sizes = [8, 16], strides = [1, 1]} : vector<8x96xf32> to vector<8x16xf32>
    %69 = vector.extract_strided_slice %66 {offsets = [0, 64], sizes = [8, 16], strides = [1, 1]} : vector<8x96xf32> to vector<8x16xf32>
    %cst_27 = arith.constant dense<0.000000e+00> : vector<8x8xf32>
    %70 = tpu.matmul %67, %68, %cst_27 {dimension_numbers = #tpu.dot_dimension_numbers<[1], [1], [0], [0], [0, 0, 1, 0], [], []>} : vector<8x16xf32>, vector<8x16xf32>, vector<8x8xf32> -> vector<8x8xf32>
    %cst_28 = arith.constant 2.500000e-01 : f32
    %71 = vector.broadcast %cst_28 : f32 to vector<8x8xf32>
    %72 = arith.mulf %70, %71 : vector<8x8xf32>
    %cst_29 = arith.constant -1.000000e+30 : f32
    %73 = vector.broadcast %cst_29 : f32 to vector<8x8xf32>
    %74 = arith.select %32, %72, %73 : vector<8x8xi1>, vector<8x8xf32>
    %cst_30 = arith.constant dense<0xFF800000> : vector<8xf32>
    %75 = vector.multi_reduction <maximumf>, %74, %cst_30 [1] : vector<8x8xf32> to vector<8xf32>
    %76 = vector.shape_cast %75 : vector<8xf32> to vector<8x1xf32>
    %77 = vector.broadcast %76 : vector<8x1xf32> to vector<8x8xf32>
    %78 = arith.subf %74, %77 : vector<8x8xf32>
    %79 = math.exp %78 : vector<8x8xf32>
    %cst_31 = arith.constant dense<0.000000e+00> : vector<8xf32>
    %80 = vector.multi_reduction <add>, %79, %cst_31 [1] : vector<8x8xf32> to vector<8xf32>
    %81 = vector.shape_cast %80 : vector<8xf32> to vector<8x1xf32>
    %82 = tpu.reciprocal %81 {approx = true} : vector<8x1xf32> -> vector<8x1xf32>
    %83 = vector.broadcast %82 : vector<8x1xf32> to vector<8x8xf32>
    %84 = arith.mulf %79, %83 : vector<8x8xf32>
    %cst_32 = arith.constant dense<0.000000e+00> : vector<8x16xf32>
    %85 = tpu.matmul %84, %69, %cst_32 {dimension_numbers = #tpu.dot_dimension_numbers<[1], [0], [0], [1], [0, 0, 1, 1], [], []>} : vector<8x8xf32>, vector<8x16xf32>, vector<8x16xf32> -> vector<8x16xf32>
    %86 = vector.extract_strided_slice %66 {offsets = [0, 16], sizes = [8, 16], strides = [1, 1]} : vector<8x96xf32> to vector<8x16xf32>
    %87 = vector.extract_strided_slice %66 {offsets = [0, 48], sizes = [8, 16], strides = [1, 1]} : vector<8x96xf32> to vector<8x16xf32>
    %88 = vector.extract_strided_slice %66 {offsets = [0, 80], sizes = [8, 16], strides = [1, 1]} : vector<8x96xf32> to vector<8x16xf32>
    %cst_33 = arith.constant dense<0.000000e+00> : vector<8x8xf32>
    %89 = tpu.matmul %86, %87, %cst_33 {dimension_numbers = #tpu.dot_dimension_numbers<[1], [1], [0], [0], [0, 0, 1, 0], [], []>} : vector<8x16xf32>, vector<8x16xf32>, vector<8x8xf32> -> vector<8x8xf32>
    %cst_34 = arith.constant 2.500000e-01 : f32
    %90 = vector.broadcast %cst_34 : f32 to vector<8x8xf32>
    %91 = arith.mulf %89, %90 : vector<8x8xf32>
    %cst_35 = arith.constant -1.000000e+30 : f32
    %92 = vector.broadcast %cst_35 : f32 to vector<8x8xf32>
    %93 = arith.select %32, %91, %92 : vector<8x8xi1>, vector<8x8xf32>
    %cst_36 = arith.constant dense<0xFF800000> : vector<8xf32>
    %94 = vector.multi_reduction <maximumf>, %93, %cst_36 [1] : vector<8x8xf32> to vector<8xf32>
    %95 = vector.shape_cast %94 : vector<8xf32> to vector<8x1xf32>
    %96 = vector.broadcast %95 : vector<8x1xf32> to vector<8x8xf32>
    %97 = arith.subf %93, %96 : vector<8x8xf32>
    %98 = math.exp %97 : vector<8x8xf32>
    %cst_37 = arith.constant dense<0.000000e+00> : vector<8xf32>
    %99 = vector.multi_reduction <add>, %98, %cst_37 [1] : vector<8x8xf32> to vector<8xf32>
    %100 = vector.shape_cast %99 : vector<8xf32> to vector<8x1xf32>
    %101 = tpu.reciprocal %100 {approx = true} : vector<8x1xf32> -> vector<8x1xf32>
    %102 = vector.broadcast %101 : vector<8x1xf32> to vector<8x8xf32>
    %103 = arith.mulf %98, %102 : vector<8x8xf32>
    %cst_38 = arith.constant dense<0.000000e+00> : vector<8x16xf32>
    %104 = tpu.matmul %103, %88, %cst_38 {dimension_numbers = #tpu.dot_dimension_numbers<[1], [0], [0], [1], [0, 0, 1, 1], [], []>} : vector<8x8xf32>, vector<8x16xf32>, vector<8x16xf32> -> vector<8x16xf32>
    %105 = tpu.concatenate %85, %104 in 1 : vector<8x16xf32>, vector<8x16xf32> -> vector<8x32xf32>
    %106 = vector.extract_strided_slice %65 {offsets = [8, 0], sizes = [8, 96], strides = [1, 1]} : vector<16x96xf32> to vector<8x96xf32>
    %107 = vector.extract_strided_slice %106 {offsets = [0, 0], sizes = [8, 16], strides = [1, 1]} : vector<8x96xf32> to vector<8x16xf32>
    %108 = vector.extract_strided_slice %106 {offsets = [0, 32], sizes = [8, 16], strides = [1, 1]} : vector<8x96xf32> to vector<8x16xf32>
    %109 = vector.extract_strided_slice %106 {offsets = [0, 64], sizes = [8, 16], strides = [1, 1]} : vector<8x96xf32> to vector<8x16xf32>
    %cst_39 = arith.constant dense<0.000000e+00> : vector<8x8xf32>
    %110 = tpu.matmul %107, %108, %cst_39 {dimension_numbers = #tpu.dot_dimension_numbers<[1], [1], [0], [0], [0, 0, 1, 0], [], []>} : vector<8x16xf32>, vector<8x16xf32>, vector<8x8xf32> -> vector<8x8xf32>
    %cst_40 = arith.constant 2.500000e-01 : f32
    %111 = vector.broadcast %cst_40 : f32 to vector<8x8xf32>
    %112 = arith.mulf %110, %111 : vector<8x8xf32>
    %cst_41 = arith.constant -1.000000e+30 : f32
    %113 = vector.broadcast %cst_41 : f32 to vector<8x8xf32>
    %114 = arith.select %32, %112, %113 : vector<8x8xi1>, vector<8x8xf32>
    %cst_42 = arith.constant dense<0xFF800000> : vector<8xf32>
    %115 = vector.multi_reduction <maximumf>, %114, %cst_42 [1] : vector<8x8xf32> to vector<8xf32>
    %116 = vector.shape_cast %115 : vector<8xf32> to vector<8x1xf32>
    %117 = vector.broadcast %116 : vector<8x1xf32> to vector<8x8xf32>
    %118 = arith.subf %114, %117 : vector<8x8xf32>
    %119 = math.exp %118 : vector<8x8xf32>
    %cst_43 = arith.constant dense<0.000000e+00> : vector<8xf32>
    %120 = vector.multi_reduction <add>, %119, %cst_43 [1] : vector<8x8xf32> to vector<8xf32>
    %121 = vector.shape_cast %120 : vector<8xf32> to vector<8x1xf32>
    %122 = tpu.reciprocal %121 {approx = true} : vector<8x1xf32> -> vector<8x1xf32>
    %123 = vector.broadcast %122 : vector<8x1xf32> to vector<8x8xf32>
    %124 = arith.mulf %119, %123 : vector<8x8xf32>
    %cst_44 = arith.constant dense<0.000000e+00> : vector<8x16xf32>
    %125 = tpu.matmul %124, %109, %cst_44 {dimension_numbers = #tpu.dot_dimension_numbers<[1], [0], [0], [1], [0, 0, 1, 1], [], []>} : vector<8x8xf32>, vector<8x16xf32>, vector<8x16xf32> -> vector<8x16xf32>
    %126 = vector.extract_strided_slice %106 {offsets = [0, 16], sizes = [8, 16], strides = [1, 1]} : vector<8x96xf32> to vector<8x16xf32>
    %127 = vector.extract_strided_slice %106 {offsets = [0, 48], sizes = [8, 16], strides = [1, 1]} : vector<8x96xf32> to vector<8x16xf32>
    %128 = vector.extract_strided_slice %106 {offsets = [0, 80], sizes = [8, 16], strides = [1, 1]} : vector<8x96xf32> to vector<8x16xf32>
    %cst_45 = arith.constant dense<0.000000e+00> : vector<8x8xf32>
    %129 = tpu.matmul %126, %127, %cst_45 {dimension_numbers = #tpu.dot_dimension_numbers<[1], [1], [0], [0], [0, 0, 1, 0], [], []>} : vector<8x16xf32>, vector<8x16xf32>, vector<8x8xf32> -> vector<8x8xf32>
    %cst_46 = arith.constant 2.500000e-01 : f32
    %130 = vector.broadcast %cst_46 : f32 to vector<8x8xf32>
    %131 = arith.mulf %129, %130 : vector<8x8xf32>
    %cst_47 = arith.constant -1.000000e+30 : f32
    %132 = vector.broadcast %cst_47 : f32 to vector<8x8xf32>
    %133 = arith.select %32, %131, %132 : vector<8x8xi1>, vector<8x8xf32>
    %cst_48 = arith.constant dense<0xFF800000> : vector<8xf32>
    %134 = vector.multi_reduction <maximumf>, %133, %cst_48 [1] : vector<8x8xf32> to vector<8xf32>
    %135 = vector.shape_cast %134 : vector<8xf32> to vector<8x1xf32>
    %136 = vector.broadcast %135 : vector<8x1xf32> to vector<8x8xf32>
    %137 = arith.subf %133, %136 : vector<8x8xf32>
    %138 = math.exp %137 : vector<8x8xf32>
    %cst_49 = arith.constant dense<0.000000e+00> : vector<8xf32>
    %139 = vector.multi_reduction <add>, %138, %cst_49 [1] : vector<8x8xf32> to vector<8xf32>
    %140 = vector.shape_cast %139 : vector<8xf32> to vector<8x1xf32>
    %141 = tpu.reciprocal %140 {approx = true} : vector<8x1xf32> -> vector<8x1xf32>
    %142 = vector.broadcast %141 : vector<8x1xf32> to vector<8x8xf32>
    %143 = arith.mulf %138, %142 : vector<8x8xf32>
    %cst_50 = arith.constant dense<0.000000e+00> : vector<8x16xf32>
    %144 = tpu.matmul %143, %128, %cst_50 {dimension_numbers = #tpu.dot_dimension_numbers<[1], [0], [0], [1], [0, 0, 1, 1], [], []>} : vector<8x8xf32>, vector<8x16xf32>, vector<8x16xf32> -> vector<8x16xf32>
    %145 = tpu.concatenate %125, %144 in 1 : vector<8x16xf32>, vector<8x16xf32> -> vector<8x32xf32>
    %146 = tpu.concatenate %105, %145 in 0 : vector<8x32xf32>, vector<8x32xf32> -> vector<16x32xf32>
    %c0_51 = arith.constant 0 : index
    %c0_52 = arith.constant 0 : index
    %c0_53 = arith.constant 0 : index
    %147 = vector.load %arg9[%c0_51, %c0_52, %c0_53] : memref<2x32x32xf32, #tpu.memory_space<vmem>>, vector<1x32x32xf32>
    %148 = vector.shape_cast %147 : vector<1x32x32xf32> to vector<32x32xf32>
    %cst_54 = arith.constant dense<0.000000e+00> : vector<16x32xf32>
    %149 = tpu.matmul %146, %148, %cst_54 {dimension_numbers = #tpu.dot_dimension_numbers<[1], [0], [0], [1], [0, 0, 1, 1], [], []>} : vector<16x32xf32>, vector<32x32xf32>, vector<16x32xf32> -> vector<16x32xf32>
    %c0_55 = arith.constant 0 : index
    %c0_56 = arith.constant 0 : index
    %c0_57 = arith.constant 0 : index
    %150 = vector.load %arg10[%c0_55, %c0_56, %c0_57] : memref<2x1x32xf32, #tpu.memory_space<vmem>>, vector<1x1x32xf32>
    %151 = vector.shape_cast %150 : vector<1x1x32xf32> to vector<1x32xf32>
    %152 = vector.broadcast %151 : vector<1x32xf32> to vector<16x32xf32>
    %153 = arith.addf %149, %152 : vector<16x32xf32>
    %154 = arith.addf %29, %153 : vector<16x32xf32>
    %c0_58 = arith.constant 0 : index
    %c0_59 = arith.constant 0 : index
    %c0_60 = arith.constant 0 : index
    %155 = vector.load %arg11[%c0_58, %c0_59, %c0_60] : memref<2x1x32xf32, #tpu.memory_space<vmem>>, vector<1x1x32xf32>
    %156 = vector.shape_cast %155 : vector<1x1x32xf32> to vector<1x32xf32>
    %c0_61 = arith.constant 0 : index
    %c0_62 = arith.constant 0 : index
    %c0_63 = arith.constant 0 : index
    %157 = vector.load %arg12[%c0_61, %c0_62, %c0_63] : memref<2x1x32xf32, #tpu.memory_space<vmem>>, vector<1x1x32xf32>
    %158 = vector.shape_cast %157 : vector<1x1x32xf32> to vector<1x32xf32>
    %cst_64 = arith.constant dense<0.000000e+00> : vector<16xf32>
    %159 = vector.multi_reduction <add>, %154, %cst_64 [1] : vector<16x32xf32> to vector<16xf32>
    %160 = vector.shape_cast %159 : vector<16xf32> to vector<16x1xf32>
    %cst_65 = arith.constant 3.200000e+01 : f32
    %161 = vector.broadcast %cst_65 : f32 to vector<16x1xf32>
    %162 = arith.divf %160, %161 : vector<16x1xf32>
    %163 = vector.broadcast %162 : vector<16x1xf32> to vector<16x32xf32>
    %164 = arith.subf %154, %163 : vector<16x32xf32>
    %165 = arith.mulf %164, %164 : vector<16x32xf32>
    %cst_66 = arith.constant dense<0.000000e+00> : vector<16xf32>
    %166 = vector.multi_reduction <add>, %165, %cst_66 [1] : vector<16x32xf32> to vector<16xf32>
    %167 = vector.shape_cast %166 : vector<16xf32> to vector<16x1xf32>
    %cst_67 = arith.constant 3.200000e+01 : f32
    %168 = vector.broadcast %cst_67 : f32 to vector<16x1xf32>
    %169 = arith.divf %167, %168 : vector<16x1xf32>
    %170 = vector.broadcast %162 : vector<16x1xf32> to vector<16x32xf32>
    %171 = arith.subf %154, %170 : vector<16x32xf32>
    %cst_68 = arith.constant 9.99999996E-13 : f32
    %172 = vector.broadcast %cst_68 : f32 to vector<16x1xf32>
    %173 = arith.addf %169, %172 : vector<16x1xf32>
    %174 = math.rsqrt %173 : vector<16x1xf32>
    %175 = vector.broadcast %174 : vector<16x1xf32> to vector<16x32xf32>
    %176 = arith.mulf %171, %175 : vector<16x32xf32>
    %177 = vector.broadcast %156 : vector<1x32xf32> to vector<16x32xf32>
    %178 = arith.mulf %176, %177 : vector<16x32xf32>
    %179 = vector.broadcast %158 : vector<1x32xf32> to vector<16x32xf32>
    %180 = arith.addf %178, %179 : vector<16x32xf32>
    %c0_69 = arith.constant 0 : index
    %c0_70 = arith.constant 0 : index
    %c0_71 = arith.constant 0 : index
    %181 = vector.load %arg13[%c0_69, %c0_70, %c0_71] : memref<2x32x64xf32, #tpu.memory_space<vmem>>, vector<1x32x64xf32>
    %182 = vector.shape_cast %181 : vector<1x32x64xf32> to vector<32x64xf32>
    %cst_72 = arith.constant dense<0.000000e+00> : vector<16x64xf32>
    %183 = tpu.matmul %180, %182, %cst_72 {dimension_numbers = #tpu.dot_dimension_numbers<[1], [0], [0], [1], [0, 0, 1, 1], [], []>} : vector<16x32xf32>, vector<32x64xf32>, vector<16x64xf32> -> vector<16x64xf32>
    %c0_73 = arith.constant 0 : index
    %c0_74 = arith.constant 0 : index
    %c0_75 = arith.constant 0 : index
    %184 = vector.load %arg14[%c0_73, %c0_74, %c0_75] : memref<2x1x64xf32, #tpu.memory_space<vmem>>, vector<1x1x64xf32>
    %185 = vector.shape_cast %184 : vector<1x1x64xf32> to vector<1x64xf32>
    %186 = vector.broadcast %185 : vector<1x64xf32> to vector<16x64xf32>
    %187 = arith.addf %183, %186 : vector<16x64xf32>
    %cst_76 = arith.constant 5.000000e-01 : f32
    %188 = vector.broadcast %cst_76 : f32 to vector<16x64xf32>
    %189 = arith.mulf %188, %187 : vector<16x64xf32>
    %cst_77 = arith.constant 4.471500e-02 : f32
    %190 = vector.broadcast %cst_77 : f32 to vector<16x64xf32>
    %191 = arith.mulf %190, %187 : vector<16x64xf32>
    %192 = arith.mulf %191, %187 : vector<16x64xf32>
    %193 = arith.mulf %192, %187 : vector<16x64xf32>
    %194 = arith.addf %187, %193 : vector<16x64xf32>
    %cst_78 = arith.constant 0.797884583 : f32
    %195 = vector.broadcast %cst_78 : f32 to vector<16x64xf32>
    %196 = arith.mulf %195, %194 : vector<16x64xf32>
    %197 = math.tanh %196 : vector<16x64xf32>
    %cst_79 = arith.constant 1.000000e+00 : f32
    %198 = vector.broadcast %cst_79 : f32 to vector<16x64xf32>
    %199 = arith.addf %198, %197 : vector<16x64xf32>
    %200 = arith.mulf %189, %199 : vector<16x64xf32>
    %c0_80 = arith.constant 0 : index
    %c0_81 = arith.constant 0 : index
    %c0_82 = arith.constant 0 : index
    %201 = vector.load %arg15[%c0_80, %c0_81, %c0_82] : memref<2x64x32xf32, #tpu.memory_space<vmem>>, vector<1x64x32xf32>
    %202 = vector.shape_cast %201 : vector<1x64x32xf32> to vector<64x32xf32>
    %cst_83 = arith.constant dense<0.000000e+00> : vector<16x32xf32>
    %203 = tpu.matmul %200, %202, %cst_83 {dimension_numbers = #tpu.dot_dimension_numbers<[1], [0], [0], [1], [0, 0, 1, 1], [], []>} : vector<16x64xf32>, vector<64x32xf32>, vector<16x32xf32> -> vector<16x32xf32>
    %c0_84 = arith.constant 0 : index
    %c0_85 = arith.constant 0 : index
    %c0_86 = arith.constant 0 : index
    %204 = vector.load %arg16[%c0_84, %c0_85, %c0_86] : memref<2x1x32xf32, #tpu.memory_space<vmem>>, vector<1x1x32xf32>
    %205 = vector.shape_cast %204 : vector<1x1x32xf32> to vector<1x32xf32>
    %206 = vector.broadcast %205 : vector<1x32xf32> to vector<16x32xf32>
    %207 = arith.addf %203, %206 : vector<16x32xf32>
    %208 = arith.addf %154, %207 : vector<16x32xf32>
    %c1 = arith.constant 1 : index
    %c0_87 = arith.constant 0 : index
    %c0_88 = arith.constant 0 : index
    %209 = vector.load %arg5[%c1, %c0_87, %c0_88] : memref<2x1x32xf32, #tpu.memory_space<vmem>>, vector<1x1x32xf32>
    %210 = vector.shape_cast %209 : vector<1x1x32xf32> to vector<1x32xf32>
    %c1_89 = arith.constant 1 : index
    %c0_90 = arith.constant 0 : index
    %c0_91 = arith.constant 0 : index
    %211 = vector.load %arg6[%c1_89, %c0_90, %c0_91] : memref<2x1x32xf32, #tpu.memory_space<vmem>>, vector<1x1x32xf32>
    %212 = vector.shape_cast %211 : vector<1x1x32xf32> to vector<1x32xf32>
    %cst_92 = arith.constant dense<0.000000e+00> : vector<16xf32>
    %213 = vector.multi_reduction <add>, %208, %cst_92 [1] : vector<16x32xf32> to vector<16xf32>
    %214 = vector.shape_cast %213 : vector<16xf32> to vector<16x1xf32>
    %cst_93 = arith.constant 3.200000e+01 : f32
    %215 = vector.broadcast %cst_93 : f32 to vector<16x1xf32>
    %216 = arith.divf %214, %215 : vector<16x1xf32>
    %217 = vector.broadcast %216 : vector<16x1xf32> to vector<16x32xf32>
    %218 = arith.subf %208, %217 : vector<16x32xf32>
    %219 = arith.mulf %218, %218 : vector<16x32xf32>
    %cst_94 = arith.constant dense<0.000000e+00> : vector<16xf32>
    %220 = vector.multi_reduction <add>, %219, %cst_94 [1] : vector<16x32xf32> to vector<16xf32>
    %221 = vector.shape_cast %220 : vector<16xf32> to vector<16x1xf32>
    %cst_95 = arith.constant 3.200000e+01 : f32
    %222 = vector.broadcast %cst_95 : f32 to vector<16x1xf32>
    %223 = arith.divf %221, %222 : vector<16x1xf32>
    %224 = vector.broadcast %216 : vector<16x1xf32> to vector<16x32xf32>
    %225 = arith.subf %208, %224 : vector<16x32xf32>
    %cst_96 = arith.constant 9.99999996E-13 : f32
    %226 = vector.broadcast %cst_96 : f32 to vector<16x1xf32>
    %227 = arith.addf %223, %226 : vector<16x1xf32>
    %228 = math.rsqrt %227 : vector<16x1xf32>
    %229 = vector.broadcast %228 : vector<16x1xf32> to vector<16x32xf32>
    %230 = arith.mulf %225, %229 : vector<16x32xf32>
    %231 = vector.broadcast %210 : vector<1x32xf32> to vector<16x32xf32>
    %232 = arith.mulf %230, %231 : vector<16x32xf32>
    %233 = vector.broadcast %212 : vector<1x32xf32> to vector<16x32xf32>
    %234 = arith.addf %232, %233 : vector<16x32xf32>
    %c1_97 = arith.constant 1 : index
    %c0_98 = arith.constant 0 : index
    %c0_99 = arith.constant 0 : index
    %235 = vector.load %arg7[%c1_97, %c0_98, %c0_99] : memref<2x32x96xf32, #tpu.memory_space<vmem>>, vector<1x32x96xf32>
    %236 = vector.shape_cast %235 : vector<1x32x96xf32> to vector<32x96xf32>
    %cst_100 = arith.constant dense<0.000000e+00> : vector<16x96xf32>
    %237 = tpu.matmul %234, %236, %cst_100 {dimension_numbers = #tpu.dot_dimension_numbers<[1], [0], [0], [1], [0, 0, 1, 1], [], []>} : vector<16x32xf32>, vector<32x96xf32>, vector<16x96xf32> -> vector<16x96xf32>
    %c1_101 = arith.constant 1 : index
    %c0_102 = arith.constant 0 : index
    %c0_103 = arith.constant 0 : index
    %238 = vector.load %arg8[%c1_101, %c0_102, %c0_103] : memref<2x1x96xf32, #tpu.memory_space<vmem>>, vector<1x1x96xf32>
    %239 = vector.shape_cast %238 : vector<1x1x96xf32> to vector<1x96xf32>
    %240 = vector.broadcast %239 : vector<1x96xf32> to vector<16x96xf32>
    %241 = arith.addf %237, %240 : vector<16x96xf32>
    %242 = vector.extract_strided_slice %241 {offsets = [0, 0], sizes = [8, 96], strides = [1, 1]} : vector<16x96xf32> to vector<8x96xf32>
    %243 = vector.extract_strided_slice %242 {offsets = [0, 0], sizes = [8, 16], strides = [1, 1]} : vector<8x96xf32> to vector<8x16xf32>
    %244 = vector.extract_strided_slice %242 {offsets = [0, 32], sizes = [8, 16], strides = [1, 1]} : vector<8x96xf32> to vector<8x16xf32>
    %245 = vector.extract_strided_slice %242 {offsets = [0, 64], sizes = [8, 16], strides = [1, 1]} : vector<8x96xf32> to vector<8x16xf32>
    %cst_104 = arith.constant dense<0.000000e+00> : vector<8x8xf32>
    %246 = tpu.matmul %243, %244, %cst_104 {dimension_numbers = #tpu.dot_dimension_numbers<[1], [1], [0], [0], [0, 0, 1, 0], [], []>} : vector<8x16xf32>, vector<8x16xf32>, vector<8x8xf32> -> vector<8x8xf32>
    %cst_105 = arith.constant 2.500000e-01 : f32
    %247 = vector.broadcast %cst_105 : f32 to vector<8x8xf32>
    %248 = arith.mulf %246, %247 : vector<8x8xf32>
    %cst_106 = arith.constant -1.000000e+30 : f32
    %249 = vector.broadcast %cst_106 : f32 to vector<8x8xf32>
    %250 = arith.select %32, %248, %249 : vector<8x8xi1>, vector<8x8xf32>
    %cst_107 = arith.constant dense<0xFF800000> : vector<8xf32>
    %251 = vector.multi_reduction <maximumf>, %250, %cst_107 [1] : vector<8x8xf32> to vector<8xf32>
    %252 = vector.shape_cast %251 : vector<8xf32> to vector<8x1xf32>
    %253 = vector.broadcast %252 : vector<8x1xf32> to vector<8x8xf32>
    %254 = arith.subf %250, %253 : vector<8x8xf32>
    %255 = math.exp %254 : vector<8x8xf32>
    %cst_108 = arith.constant dense<0.000000e+00> : vector<8xf32>
    %256 = vector.multi_reduction <add>, %255, %cst_108 [1] : vector<8x8xf32> to vector<8xf32>
    %257 = vector.shape_cast %256 : vector<8xf32> to vector<8x1xf32>
    %258 = tpu.reciprocal %257 {approx = true} : vector<8x1xf32> -> vector<8x1xf32>
    %259 = vector.broadcast %258 : vector<8x1xf32> to vector<8x8xf32>
    %260 = arith.mulf %255, %259 : vector<8x8xf32>
    %cst_109 = arith.constant dense<0.000000e+00> : vector<8x16xf32>
    %261 = tpu.matmul %260, %245, %cst_109 {dimension_numbers = #tpu.dot_dimension_numbers<[1], [0], [0], [1], [0, 0, 1, 1], [], []>} : vector<8x8xf32>, vector<8x16xf32>, vector<8x16xf32> -> vector<8x16xf32>
    %262 = vector.extract_strided_slice %242 {offsets = [0, 16], sizes = [8, 16], strides = [1, 1]} : vector<8x96xf32> to vector<8x16xf32>
    %263 = vector.extract_strided_slice %242 {offsets = [0, 48], sizes = [8, 16], strides = [1, 1]} : vector<8x96xf32> to vector<8x16xf32>
    %264 = vector.extract_strided_slice %242 {offsets = [0, 80], sizes = [8, 16], strides = [1, 1]} : vector<8x96xf32> to vector<8x16xf32>
    %cst_110 = arith.constant dense<0.000000e+00> : vector<8x8xf32>
    %265 = tpu.matmul %262, %263, %cst_110 {dimension_numbers = #tpu.dot_dimension_numbers<[1], [1], [0], [0], [0, 0, 1, 0], [], []>} : vector<8x16xf32>, vector<8x16xf32>, vector<8x8xf32> -> vector<8x8xf32>
    %cst_111 = arith.constant 2.500000e-01 : f32
    %266 = vector.broadcast %cst_111 : f32 to vector<8x8xf32>
    %267 = arith.mulf %265, %266 : vector<8x8xf32>
    %cst_112 = arith.constant -1.000000e+30 : f32
    %268 = vector.broadcast %cst_112 : f32 to vector<8x8xf32>
    %269 = arith.select %32, %267, %268 : vector<8x8xi1>, vector<8x8xf32>
    %cst_113 = arith.constant dense<0xFF800000> : vector<8xf32>
    %270 = vector.multi_reduction <maximumf>, %269, %cst_113 [1] : vector<8x8xf32> to vector<8xf32>
    %271 = vector.shape_cast %270 : vector<8xf32> to vector<8x1xf32>
    %272 = vector.broadcast %271 : vector<8x1xf32> to vector<8x8xf32>
    %273 = arith.subf %269, %272 : vector<8x8xf32>
    %274 = math.exp %273 : vector<8x8xf32>
    %cst_114 = arith.constant dense<0.000000e+00> : vector<8xf32>
    %275 = vector.multi_reduction <add>, %274, %cst_114 [1] : vector<8x8xf32> to vector<8xf32>
    %276 = vector.shape_cast %275 : vector<8xf32> to vector<8x1xf32>
    %277 = tpu.reciprocal %276 {approx = true} : vector<8x1xf32> -> vector<8x1xf32>
    %278 = vector.broadcast %277 : vector<8x1xf32> to vector<8x8xf32>
    %279 = arith.mulf %274, %278 : vector<8x8xf32>
    %cst_115 = arith.constant dense<0.000000e+00> : vector<8x16xf32>
    %280 = tpu.matmul %279, %264, %cst_115 {dimension_numbers = #tpu.dot_dimension_numbers<[1], [0], [0], [1], [0, 0, 1, 1], [], []>} : vector<8x8xf32>, vector<8x16xf32>, vector<8x16xf32> -> vector<8x16xf32>
    %281 = tpu.concatenate %261, %280 in 1 : vector<8x16xf32>, vector<8x16xf32> -> vector<8x32xf32>
    %282 = vector.extract_strided_slice %241 {offsets = [8, 0], sizes = [8, 96], strides = [1, 1]} : vector<16x96xf32> to vector<8x96xf32>
    %283 = vector.extract_strided_slice %282 {offsets = [0, 0], sizes = [8, 16], strides = [1, 1]} : vector<8x96xf32> to vector<8x16xf32>
    %284 = vector.extract_strided_slice %282 {offsets = [0, 32], sizes = [8, 16], strides = [1, 1]} : vector<8x96xf32> to vector<8x16xf32>
    %285 = vector.extract_strided_slice %282 {offsets = [0, 64], sizes = [8, 16], strides = [1, 1]} : vector<8x96xf32> to vector<8x16xf32>
    %cst_116 = arith.constant dense<0.000000e+00> : vector<8x8xf32>
    %286 = tpu.matmul %283, %284, %cst_116 {dimension_numbers = #tpu.dot_dimension_numbers<[1], [1], [0], [0], [0, 0, 1, 0], [], []>} : vector<8x16xf32>, vector<8x16xf32>, vector<8x8xf32> -> vector<8x8xf32>
    %cst_117 = arith.constant 2.500000e-01 : f32
    %287 = vector.broadcast %cst_117 : f32 to vector<8x8xf32>
    %288 = arith.mulf %286, %287 : vector<8x8xf32>
    %cst_118 = arith.constant -1.000000e+30 : f32
    %289 = vector.broadcast %cst_118 : f32 to vector<8x8xf32>
    %290 = arith.select %32, %288, %289 : vector<8x8xi1>, vector<8x8xf32>
    %cst_119 = arith.constant dense<0xFF800000> : vector<8xf32>
    %291 = vector.multi_reduction <maximumf>, %290, %cst_119 [1] : vector<8x8xf32> to vector<8xf32>
    %292 = vector.shape_cast %291 : vector<8xf32> to vector<8x1xf32>
    %293 = vector.broadcast %292 : vector<8x1xf32> to vector<8x8xf32>
    %294 = arith.subf %290, %293 : vector<8x8xf32>
    %295 = math.exp %294 : vector<8x8xf32>
    %cst_120 = arith.constant dense<0.000000e+00> : vector<8xf32>
    %296 = vector.multi_reduction <add>, %295, %cst_120 [1] : vector<8x8xf32> to vector<8xf32>
    %297 = vector.shape_cast %296 : vector<8xf32> to vector<8x1xf32>
    %298 = tpu.reciprocal %297 {approx = true} : vector<8x1xf32> -> vector<8x1xf32>
    %299 = vector.broadcast %298 : vector<8x1xf32> to vector<8x8xf32>
    %300 = arith.mulf %295, %299 : vector<8x8xf32>
    %cst_121 = arith.constant dense<0.000000e+00> : vector<8x16xf32>
    %301 = tpu.matmul %300, %285, %cst_121 {dimension_numbers = #tpu.dot_dimension_numbers<[1], [0], [0], [1], [0, 0, 1, 1], [], []>} : vector<8x8xf32>, vector<8x16xf32>, vector<8x16xf32> -> vector<8x16xf32>
    %302 = vector.extract_strided_slice %282 {offsets = [0, 16], sizes = [8, 16], strides = [1, 1]} : vector<8x96xf32> to vector<8x16xf32>
    %303 = vector.extract_strided_slice %282 {offsets = [0, 48], sizes = [8, 16], strides = [1, 1]} : vector<8x96xf32> to vector<8x16xf32>
    %304 = vector.extract_strided_slice %282 {offsets = [0, 80], sizes = [8, 16], strides = [1, 1]} : vector<8x96xf32> to vector<8x16xf32>
    %cst_122 = arith.constant dense<0.000000e+00> : vector<8x8xf32>
    %305 = tpu.matmul %302, %303, %cst_122 {dimension_numbers = #tpu.dot_dimension_numbers<[1], [1], [0], [0], [0, 0, 1, 0], [], []>} : vector<8x16xf32>, vector<8x16xf32>, vector<8x8xf32> -> vector<8x8xf32>
    %cst_123 = arith.constant 2.500000e-01 : f32
    %306 = vector.broadcast %cst_123 : f32 to vector<8x8xf32>
    %307 = arith.mulf %305, %306 : vector<8x8xf32>
    %cst_124 = arith.constant -1.000000e+30 : f32
    %308 = vector.broadcast %cst_124 : f32 to vector<8x8xf32>
    %309 = arith.select %32, %307, %308 : vector<8x8xi1>, vector<8x8xf32>
    %cst_125 = arith.constant dense<0xFF800000> : vector<8xf32>
    %310 = vector.multi_reduction <maximumf>, %309, %cst_125 [1] : vector<8x8xf32> to vector<8xf32>
    %311 = vector.shape_cast %310 : vector<8xf32> to vector<8x1xf32>
    %312 = vector.broadcast %311 : vector<8x1xf32> to vector<8x8xf32>
    %313 = arith.subf %309, %312 : vector<8x8xf32>
    %314 = math.exp %313 : vector<8x8xf32>
    %cst_126 = arith.constant dense<0.000000e+00> : vector<8xf32>
    %315 = vector.multi_reduction <add>, %314, %cst_126 [1] : vector<8x8xf32> to vector<8xf32>
    %316 = vector.shape_cast %315 : vector<8xf32> to vector<8x1xf32>
    %317 = tpu.reciprocal %316 {approx = true} : vector<8x1xf32> -> vector<8x1xf32>
    %318 = vector.broadcast %317 : vector<8x1xf32> to vector<8x8xf32>
    %319 = arith.mulf %314, %318 : vector<8x8xf32>
    %cst_127 = arith.constant dense<0.000000e+00> : vector<8x16xf32>
    %320 = tpu.matmul %319, %304, %cst_127 {dimension_numbers = #tpu.dot_dimension_numbers<[1], [0], [0], [1], [0, 0, 1, 1], [], []>} : vector<8x8xf32>, vector<8x16xf32>, vector<8x16xf32> -> vector<8x16xf32>
    %321 = tpu.concatenate %301, %320 in 1 : vector<8x16xf32>, vector<8x16xf32> -> vector<8x32xf32>
    %322 = tpu.concatenate %281, %321 in 0 : vector<8x32xf32>, vector<8x32xf32> -> vector<16x32xf32>
    %c1_128 = arith.constant 1 : index
    %c0_129 = arith.constant 0 : index
    %c0_130 = arith.constant 0 : index
    %323 = vector.load %arg9[%c1_128, %c0_129, %c0_130] : memref<2x32x32xf32, #tpu.memory_space<vmem>>, vector<1x32x32xf32>
    %324 = vector.shape_cast %323 : vector<1x32x32xf32> to vector<32x32xf32>
    %cst_131 = arith.constant dense<0.000000e+00> : vector<16x32xf32>
    %325 = tpu.matmul %322, %324, %cst_131 {dimension_numbers = #tpu.dot_dimension_numbers<[1], [0], [0], [1], [0, 0, 1, 1], [], []>} : vector<16x32xf32>, vector<32x32xf32>, vector<16x32xf32> -> vector<16x32xf32>
    %c1_132 = arith.constant 1 : index
    %c0_133 = arith.constant 0 : index
    %c0_134 = arith.constant 0 : index
    %326 = vector.load %arg10[%c1_132, %c0_133, %c0_134] : memref<2x1x32xf32, #tpu.memory_space<vmem>>, vector<1x1x32xf32>
    %327 = vector.shape_cast %326 : vector<1x1x32xf32> to vector<1x32xf32>
    %328 = vector.broadcast %327 : vector<1x32xf32> to vector<16x32xf32>
    %329 = arith.addf %325, %328 : vector<16x32xf32>
    %330 = arith.addf %208, %329 : vector<16x32xf32>
    %c1_135 = arith.constant 1 : index
    %c0_136 = arith.constant 0 : index
    %c0_137 = arith.constant 0 : index
    %331 = vector.load %arg11[%c1_135, %c0_136, %c0_137] : memref<2x1x32xf32, #tpu.memory_space<vmem>>, vector<1x1x32xf32>
    %332 = vector.shape_cast %331 : vector<1x1x32xf32> to vector<1x32xf32>
    %c1_138 = arith.constant 1 : index
    %c0_139 = arith.constant 0 : index
    %c0_140 = arith.constant 0 : index
    %333 = vector.load %arg12[%c1_138, %c0_139, %c0_140] : memref<2x1x32xf32, #tpu.memory_space<vmem>>, vector<1x1x32xf32>
    %334 = vector.shape_cast %333 : vector<1x1x32xf32> to vector<1x32xf32>
    %cst_141 = arith.constant dense<0.000000e+00> : vector<16xf32>
    %335 = vector.multi_reduction <add>, %330, %cst_141 [1] : vector<16x32xf32> to vector<16xf32>
    %336 = vector.shape_cast %335 : vector<16xf32> to vector<16x1xf32>
    %cst_142 = arith.constant 3.200000e+01 : f32
    %337 = vector.broadcast %cst_142 : f32 to vector<16x1xf32>
    %338 = arith.divf %336, %337 : vector<16x1xf32>
    %339 = vector.broadcast %338 : vector<16x1xf32> to vector<16x32xf32>
    %340 = arith.subf %330, %339 : vector<16x32xf32>
    %341 = arith.mulf %340, %340 : vector<16x32xf32>
    %cst_143 = arith.constant dense<0.000000e+00> : vector<16xf32>
    %342 = vector.multi_reduction <add>, %341, %cst_143 [1] : vector<16x32xf32> to vector<16xf32>
    %343 = vector.shape_cast %342 : vector<16xf32> to vector<16x1xf32>
    %cst_144 = arith.constant 3.200000e+01 : f32
    %344 = vector.broadcast %cst_144 : f32 to vector<16x1xf32>
    %345 = arith.divf %343, %344 : vector<16x1xf32>
    %346 = vector.broadcast %338 : vector<16x1xf32> to vector<16x32xf32>
    %347 = arith.subf %330, %346 : vector<16x32xf32>
    %cst_145 = arith.constant 9.99999996E-13 : f32
    %348 = vector.broadcast %cst_145 : f32 to vector<16x1xf32>
    %349 = arith.addf %345, %348 : vector<16x1xf32>
    %350 = math.rsqrt %349 : vector<16x1xf32>
    %351 = vector.broadcast %350 : vector<16x1xf32> to vector<16x32xf32>
    %352 = arith.mulf %347, %351 : vector<16x32xf32>
    %353 = vector.broadcast %332 : vector<1x32xf32> to vector<16x32xf32>
    %354 = arith.mulf %352, %353 : vector<16x32xf32>
    %355 = vector.broadcast %334 : vector<1x32xf32> to vector<16x32xf32>
    %356 = arith.addf %354, %355 : vector<16x32xf32>
    %c1_146 = arith.constant 1 : index
    %c0_147 = arith.constant 0 : index
    %c0_148 = arith.constant 0 : index
    %357 = vector.load %arg13[%c1_146, %c0_147, %c0_148] : memref<2x32x64xf32, #tpu.memory_space<vmem>>, vector<1x32x64xf32>
    %358 = vector.shape_cast %357 : vector<1x32x64xf32> to vector<32x64xf32>
    %cst_149 = arith.constant dense<0.000000e+00> : vector<16x64xf32>
    %359 = tpu.matmul %356, %358, %cst_149 {dimension_numbers = #tpu.dot_dimension_numbers<[1], [0], [0], [1], [0, 0, 1, 1], [], []>} : vector<16x32xf32>, vector<32x64xf32>, vector<16x64xf32> -> vector<16x64xf32>
    %c1_150 = arith.constant 1 : index
    %c0_151 = arith.constant 0 : index
    %c0_152 = arith.constant 0 : index
    %360 = vector.load %arg14[%c1_150, %c0_151, %c0_152] : memref<2x1x64xf32, #tpu.memory_space<vmem>>, vector<1x1x64xf32>
    %361 = vector.shape_cast %360 : vector<1x1x64xf32> to vector<1x64xf32>
    %362 = vector.broadcast %361 : vector<1x64xf32> to vector<16x64xf32>
    %363 = arith.addf %359, %362 : vector<16x64xf32>
    %cst_153 = arith.constant 5.000000e-01 : f32
    %364 = vector.broadcast %cst_153 : f32 to vector<16x64xf32>
    %365 = arith.mulf %364, %363 : vector<16x64xf32>
    %cst_154 = arith.constant 4.471500e-02 : f32
    %366 = vector.broadcast %cst_154 : f32 to vector<16x64xf32>
    %367 = arith.mulf %366, %363 : vector<16x64xf32>
    %368 = arith.mulf %367, %363 : vector<16x64xf32>
    %369 = arith.mulf %368, %363 : vector<16x64xf32>
    %370 = arith.addf %363, %369 : vector<16x64xf32>
    %cst_155 = arith.constant 0.797884583 : f32
    %371 = vector.broadcast %cst_155 : f32 to vector<16x64xf32>
    %372 = arith.mulf %371, %370 : vector<16x64xf32>
    %373 = math.tanh %372 : vector<16x64xf32>
    %cst_156 = arith.constant 1.000000e+00 : f32
    %374 = vector.broadcast %cst_156 : f32 to vector<16x64xf32>
    %375 = arith.addf %374, %373 : vector<16x64xf32>
    %376 = arith.mulf %365, %375 : vector<16x64xf32>
    %c1_157 = arith.constant 1 : index
    %c0_158 = arith.constant 0 : index
    %c0_159 = arith.constant 0 : index
    %377 = vector.load %arg15[%c1_157, %c0_158, %c0_159] : memref<2x64x32xf32, #tpu.memory_space<vmem>>, vector<1x64x32xf32>
    %378 = vector.shape_cast %377 : vector<1x64x32xf32> to vector<64x32xf32>
    %cst_160 = arith.constant dense<0.000000e+00> : vector<16x32xf32>
    %379 = tpu.matmul %376, %378, %cst_160 {dimension_numbers = #tpu.dot_dimension_numbers<[1], [0], [0], [1], [0, 0, 1, 1], [], []>} : vector<16x64xf32>, vector<64x32xf32>, vector<16x32xf32> -> vector<16x32xf32>
    %c1_161 = arith.constant 1 : index
    %c0_162 = arith.constant 0 : index
    %c0_163 = arith.constant 0 : index
    %380 = vector.load %arg16[%c1_161, %c0_162, %c0_163] : memref<2x1x32xf32, #tpu.memory_space<vmem>>, vector<1x1x32xf32>
    %381 = vector.shape_cast %380 : vector<1x1x32xf32> to vector<1x32xf32>
    %382 = vector.broadcast %381 : vector<1x32xf32> to vector<16x32xf32>
    %383 = arith.addf %379, %382 : vector<16x32xf32>
    %384 = arith.addf %330, %383 : vector<16x32xf32>
    %c0_164 = arith.constant 0 : index
    %c0_165 = arith.constant 0 : index
    %385 = vector.load %arg17[%c0_164, %c0_165] : memref<1x32xf32, #tpu.memory_space<vmem>>, vector<1x32xf32>
    %c0_166 = arith.constant 0 : index
    %c0_167 = arith.constant 0 : index
    %386 = vector.load %arg18[%c0_166, %c0_167] : memref<1x32xf32, #tpu.memory_space<vmem>>, vector<1x32xf32>
    %cst_168 = arith.constant dense<0.000000e+00> : vector<16xf32>
    %387 = vector.multi_reduction <add>, %384, %cst_168 [1] : vector<16x32xf32> to vector<16xf32>
    %388 = vector.shape_cast %387 : vector<16xf32> to vector<16x1xf32>
    %cst_169 = arith.constant 3.200000e+01 : f32
    %389 = vector.broadcast %cst_169 : f32 to vector<16x1xf32>
    %390 = arith.divf %388, %389 : vector<16x1xf32>
    %391 = vector.broadcast %390 : vector<16x1xf32> to vector<16x32xf32>
    %392 = arith.subf %384, %391 : vector<16x32xf32>
    %393 = arith.mulf %392, %392 : vector<16x32xf32>
    %cst_170 = arith.constant dense<0.000000e+00> : vector<16xf32>
    %394 = vector.multi_reduction <add>, %393, %cst_170 [1] : vector<16x32xf32> to vector<16xf32>
    %395 = vector.shape_cast %394 : vector<16xf32> to vector<16x1xf32>
    %cst_171 = arith.constant 3.200000e+01 : f32
    %396 = vector.broadcast %cst_171 : f32 to vector<16x1xf32>
    %397 = arith.divf %395, %396 : vector<16x1xf32>
    %398 = vector.broadcast %390 : vector<16x1xf32> to vector<16x32xf32>
    %399 = arith.subf %384, %398 : vector<16x32xf32>
    %cst_172 = arith.constant 9.99999996E-13 : f32
    %400 = vector.broadcast %cst_172 : f32 to vector<16x1xf32>
    %401 = arith.addf %397, %400 : vector<16x1xf32>
    %402 = math.rsqrt %401 : vector<16x1xf32>
    %403 = vector.broadcast %402 : vector<16x1xf32> to vector<16x32xf32>
    %404 = arith.mulf %399, %403 : vector<16x32xf32>
    %405 = vector.broadcast %385 : vector<1x32xf32> to vector<16x32xf32>
    %406 = arith.mulf %404, %405 : vector<16x32xf32>
    %407 = vector.broadcast %386 : vector<1x32xf32> to vector<16x32xf32>
    %408 = arith.addf %406, %407 : vector<16x32xf32>
    %409 = vector.extract_strided_slice %408 {offsets = [0, 0], sizes = [1, 32], strides = [1, 1]} : vector<16x32xf32> to vector<1x32xf32>
    %410 = vector.extract_strided_slice %408 {offsets = [8, 0], sizes = [1, 32], strides = [1, 1]} : vector<16x32xf32> to vector<1x32xf32>
    %411 = tpu.concatenate %409, %410 in 0 : vector<1x32xf32>, vector<1x32xf32> -> vector<2x32xf32>
    %c0_173 = arith.constant 0 : index
    %c0_174 = arith.constant 0 : index
    %412 = vector.load %arg19[%c0_173, %c0_174] : memref<32x10xf32, #tpu.memory_space<vmem>>, vector<32x10xf32>
    %cst_175 = arith.constant dense<0.000000e+00> : vector<2x10xf32>
    %413 = tpu.matmul %411, %412, %cst_175 {dimension_numbers = #tpu.dot_dimension_numbers<[1], [0], [0], [1], [0, 0, 1, 1], [], []>} : vector<2x32xf32>, vector<32x10xf32>, vector<2x10xf32> -> vector<2x10xf32>
    %c0_176 = arith.constant 0 : index
    %c0_177 = arith.constant 0 : index
    %414 = vector.load %arg20[%c0_176, %c0_177] : memref<1x10xf32, #tpu.memory_space<vmem>>, vector<1x10xf32>
    %415 = vector.broadcast %414 : vector<1x10xf32> to vector<2x10xf32>
    %416 = arith.addf %413, %415 : vector<2x10xf32>
    %cst_178 = arith.constant dense<0xFF800000> : vector<2xf32>
    %417 = vector.multi_reduction <maximumf>, %416, %cst_178 [1] : vector<2x10xf32> to vector<2xf32>
    %418 = vector.shape_cast %417 : vector<2xf32> to vector<2x1xf32>
    %419 = vector.broadcast %418 : vector<2x1xf32> to vector<2x10xf32>
    %420 = arith.subf %416, %419 : vector<2x10xf32>
    %421 = math.exp %420 : vector<2x10xf32>
    %cst_179 = arith.constant dense<0.000000e+00> : vector<2xf32>
    %422 = vector.multi_reduction <add>, %421, %cst_179 [1] : vector<2x10xf32> to vector<2xf32>
    %423 = vector.shape_cast %422 : vector<2xf32> to vector<2x1xf32>
    %424 = math.log %423 : vector<2x1xf32>
    %425 = tpu.iota {dimensions = array<i32: 1>} : vector<1x10xi32>
    %cst_180 = arith.constant 0.000000e+00 : f32
    %426 = vector.broadcast %cst_180 : f32 to vector<1x1xf32>
    %c0_181 = arith.constant 0 : index
    %427 = memref.load %arg21[%c0_181] : memref<2xi32, #tpu.memory_space<smem>>
    %428 = vector.broadcast %427 : i32 to vector<1x10xi32>
    %429 = arith.cmpi eq, %425, %428 : vector<1x10xi32>
    %430 = arith.extui %429 : vector<1x10xi1> to vector<1x10xi32>
    %431 = arith.sitofp %430 : vector<1x10xi32> to vector<1x10xf32>
    %432 = vector.extract_strided_slice %420 {offsets = [0, 0], sizes = [1, 10], strides = [1, 1]} : vector<2x10xf32> to vector<1x10xf32>
    %433 = arith.mulf %431, %432 : vector<1x10xf32>
    %cst_182 = arith.constant dense<0.000000e+00> : vector<1xf32>
    %434 = vector.multi_reduction <add>, %433, %cst_182 [1] : vector<1x10xf32> to vector<1xf32>
    %435 = vector.shape_cast %434 : vector<1xf32> to vector<1x1xf32>
    %436 = vector.extract_strided_slice %424 {offsets = [0, 0], sizes = [1, 1], strides = [1, 1]} : vector<2x1xf32> to vector<1x1xf32>
    %437 = arith.addf %426, %436 : vector<1x1xf32>
    %438 = arith.subf %437, %435 : vector<1x1xf32>
    %c1_183 = arith.constant 1 : index
    %439 = memref.load %arg21[%c1_183] : memref<2xi32, #tpu.memory_space<smem>>
    %440 = vector.broadcast %439 : i32 to vector<1x10xi32>
    %441 = arith.cmpi eq, %425, %440 : vector<1x10xi32>
    %442 = arith.extui %441 : vector<1x10xi1> to vector<1x10xi32>
    %443 = arith.sitofp %442 : vector<1x10xi32> to vector<1x10xf32>
    %444 = vector.extract_strided_slice %420 {offsets = [1, 0], sizes = [1, 10], strides = [1, 1]} : vector<2x10xf32> to vector<1x10xf32>
    %445 = arith.mulf %443, %444 : vector<1x10xf32>
    %cst_184 = arith.constant dense<0.000000e+00> : vector<1xf32>
    %446 = vector.multi_reduction <add>, %445, %cst_184 [1] : vector<1x10xf32> to vector<1xf32>
    %447 = vector.shape_cast %446 : vector<1xf32> to vector<1x1xf32>
    %448 = vector.extract_strided_slice %424 {offsets = [1, 0], sizes = [1, 1], strides = [1, 1]} : vector<2x1xf32> to vector<1x1xf32>
    %449 = arith.addf %438, %448 : vector<1x1xf32>
    %450 = arith.subf %449, %447 : vector<1x1xf32>
    %cst_185 = arith.constant 5.000000e-01 : f32
    %451 = vector.broadcast %cst_185 : f32 to vector<1x1xf32>
    %452 = arith.mulf %450, %451 : vector<1x1xf32>
    %c0_186 = arith.constant 0 : index
    %c0_187 = arith.constant 0 : index
    %453 = vector.load %arg22[%c0_186, %c0_187] : memref<1x1xf32, #tpu.memory_space<vmem>>, vector<1x1xf32>
    tpu.vector_store %arg22[%c0_186, %c0_187], %452 {strides = array<i32>} : memref<1x1xf32, #tpu.memory_space<vmem>>, vector<1x1xf32>,
    return
  }
}

</mosaic_0001>

<llo_original>
// kernel: vit_forward.1
$region0: #{vit_forward.1}
  #allocation0 [shape = 'u32[]', space=smem, size = 0x4, offset = 0x4, fixed_abs, tag = 'smem constant byte address 0x4 - core index']
  #allocation1 [shape = 'u32[144,128]{1,0:T(1,128)}', space=vmem, size = 0x12000, scoped, tag = 'internal scratch']
  %s0 = inlined_call_operand.vmem [shape: f32[16,768], index: 0, kind: input, shape index: {}]
  %s1 = inlined_call_operand.vmem [shape: f32[768,32], index: 1, kind: input, shape index: {}]
  %s2 = inlined_call_operand.vmem [shape: f32[1,32], index: 2, kind: input, shape index: {}]
  %s3 = inlined_call_operand.vmem [shape: f32[1,32], index: 3, kind: input, shape index: {}]
  %s4 = inlined_call_operand.vmem [shape: f32[8,32], index: 4, kind: input, shape index: {}]
  %s5 = inlined_call_operand.vmem [shape: f32[2,1,32], index: 5, kind: input, shape index: {}]
  %s6 = inlined_call_operand.vmem [shape: f32[2,1,32], index: 6, kind: input, shape index: {}]
  %s7 = inlined_call_operand.vmem [shape: f32[2,32,96], index: 7, kind: input, shape index: {}]
  %s8 = inlined_call_operand.vmem [shape: f32[2,1,96], index: 8, kind: input, shape index: {}]
  %s9 = inlined_call_operand.vmem [shape: f32[2,32,32], index: 9, kind: input, shape index: {}]
  %s10 = inlined_call_operand.vmem [shape: f32[2,1,32], index: 10, kind: input, shape index: {}]
  %s11 = inlined_call_operand.vmem [shape: f32[2,1,32], index: 11, kind: input, shape index: {}]
  %s12 = inlined_call_operand.vmem [shape: f32[2,1,32], index: 12, kind: input, shape index: {}]
  %s13 = inlined_call_operand.vmem [shape: f32[2,32,64], index: 13, kind: input, shape index: {}]
  %s14 = inlined_call_operand.vmem [shape: f32[2,1,64], index: 14, kind: input, shape index: {}]
  %s15 = inlined_call_operand.vmem [shape: f32[2,64,32], index: 15, kind: input, shape index: {}]
  %s16 = inlined_call_operand.vmem [shape: f32[2,1,32], index: 16, kind: input, shape index: {}]
  %s17 = inlined_call_operand.vmem [shape: f32[1,32], index: 17, kind: input, shape index: {}]
  %s18 = inlined_call_operand.vmem [shape: f32[1,32], index: 18, kind: input, shape index: {}]
  %s19 = inlined_call_operand.vmem [shape: f32[32,10], index: 19, kind: input, shape index: {}]
  %s20 = inlined_call_operand.vmem [shape: f32[1,10], index: 20, kind: input, shape index: {}]
  %s21 = inlined_call_operand.vmem [shape: s32[2], index: 21, kind: input, shape index: {}]
  %s22 = inlined_call_operand.hbm [shape: f32[1,1], index: 22, kind: output, shape index: {}]
  %s23 = sld [smem:[#allocation0]]
  $region102: #{vit_forward.1} parent=0
    _
  %s25 = ssub.s32 1, %s23
  %s26 = scalar_select 0, %s25, %s23
  $region1: #{vit_forward.1} parent=0
    #allocation2 [shape = 'u8[512]{0}', space=smem, size = 0x200, scoped, tag = 'input window, operand 21, single buffered']
    #allocation3 [shape = 's32[1]{0}', space=sflag, size = 0x4, scoped, tag = 'scoped memory for vit_forward.1']
    #allocation4 [shape = 's32[1]{0}', space=sflag, size = 0x4, scoped, tag = 'scoped memory for vit_forward.1']
    #allocation5 [shape = 'u8[512]{0}', space=vmem, size = 0x400, scoped, tag = 'output window, operand 0, single buffered']
    %27 = vsyncpa [#allocation4], 0
    %28 = vsyncpa [#allocation3], 0
    // Predicated region
    $region2: #{vit_forward.1} parent=1 // pred_check
      _
    $region3: #{vit_forward.1} parent=1 // pred_check_branch
      %30 = sbr.rel (0) target = $region5
    $region4: #{vit_forward.1} parent=1 // pred_region
      _
    $region5: #{vit_forward.1} parent=1 // pred_fallthru
      _
    // Predicated region
    $region6: #{vit_forward.1} parent=1 // pred_check
      _
    $region7: #{vit_forward.1} parent=1 // pred_check_branch
      %32 = sbr.rel (0) target = $region9
    $region8: #{vit_forward.1} parent=1 // pred_region
      _
    $region9: #{vit_forward.1} parent=1 // pred_fallthru
      _
    // Predicated region
    $region10: #{vit_forward.1} parent=1 // pred_check
      _
    $region11: #{vit_forward.1} parent=1 // pred_check_branch
      %34 = sbr.rel (0) target = $region13
    $region12: #{vit_forward.1} parent=1 // pred_region
      _
    $region13: #{vit_forward.1} parent=1 // pred_fallthru
      _
    // Predicated region
    $region14: #{vit_forward.1} parent=1 // pred_check
      _
    $region15: #{vit_forward.1} parent=1 // pred_check_branch
      %36 = sbr.rel (0) target = $region17
    $region16: #{vit_forward.1} parent=1 // pred_region
      _
    $region17: #{vit_forward.1} parent=1 // pred_fallthru
      _
    // Predicated region
    $region18: #{vit_forward.1} parent=1 // pred_check
      _
    $region19: #{vit_forward.1} parent=1 // pred_check_branch
      %38 = sbr.rel (0) target = $region21
    $region20: #{vit_forward.1} parent=1 // pred_region
      _
    $region21: #{vit_forward.1} parent=1 // pred_fallthru
      _
    // Predicated region
    $region22: #{vit_forward.1} parent=1 // pred_check
      _
    $region23: #{vit_forward.1} parent=1 // pred_check_branch
      %40 = sbr.rel (0) target = $region25
    $region24: #{vit_forward.1} parent=1 // pred_region
      _
    $region25: #{vit_forward.1} parent=1 // pred_fallthru
      _
    // Predicated region
    $region26: #{vit_forward.1} parent=1 // pred_check
      _
    $region27: #{vit_forward.1} parent=1 // pred_check_branch
      %42 = sbr.rel (0) target = $region29
    $region28: #{vit_forward.1} parent=1 // pred_region
      _
    $region29: #{vit_forward.1} parent=1 // pred_fallthru
      _
    // Predicated region
    $region30: #{vit_forward.1} parent=1 // pred_check
      _
    $region31: #{vit_forward.1} parent=1 // pred_check_branch
      %44 = sbr.rel (0) target = $region33
    $region32: #{vit_forward.1} parent=1 // pred_region
      _
    $region33: #{vit_forward.1} parent=1 // pred_fallthru
      _
    // Predicated region
    $region34: #{vit_forward.1} parent=1 // pred_check
      _
    $region35: #{vit_forward.1} parent=1 // pred_check_branch
      %46 = sbr.rel (0) target = $region37
    $region36: #{vit_forward.1} parent=1 // pred_region
      _
    $region37: #{vit_forward.1} parent=1 // pred_fallthru
      _
    // Predicated region
    $region38: #{vit_forward.1} parent=1 // pred_check
      _
    $region39: #{vit_forward.1} parent=1 // pred_check_branch
      %48 = sbr.rel (0) target = $region41
    $region40: #{vit_forward.1} parent=1 // pred_region
      _
    $region41: #{vit_forward.1} parent=1 // pred_fallthru
      _
    // Predicated region
    $region42: #{vit_forward.1} parent=1 // pred_check
      _
    $region43: #{vit_forward.1} parent=1 // pred_check_branch
      %50 = sbr.rel (0) target = $region45
    $region44: #{vit_forward.1} parent=1 // pred_region
      _
    $region45: #{vit_forward.1} parent=1 // pred_fallthru
      _
    // Predicated region
    $region46: #{vit_forward.1} parent=1 // pred_check
      _
    $region47: #{vit_forward.1} parent=1 // pred_check_branch
      %52 = sbr.rel (0) target = $region49
    $region48: #{vit_forward.1} parent=1 // pred_region
      _
    $region49: #{vit_forward.1} parent=1 // pred_fallthru
      _
    // Predicated region
    $region50: #{vit_forward.1} parent=1 // pred_check
      _
    $region51: #{vit_forward.1} parent=1 // pred_check_branch
      %54 = sbr.rel (0) target = $region53
    $region52: #{vit_forward.1} parent=1 // pred_region
      _
    $region53: #{vit_forward.1} parent=1 // pred_fallthru
      _
    // Predicated region
    $region54: #{vit_forward.1} parent=1 // pred_check
      _
    $region55: #{vit_forward.1} parent=1 // pred_check_branch
      %56 = sbr.rel (0) target = $region57
    $region56: #{vit_forward.1} parent=1 // pred_region
      _
    $region57: #{vit_forward.1} parent=1 // pred_fallthru
      _
    // Predicated region
    $region58: #{vit_forward.1} parent=1 // pred_check
      _
    $region59: #{vit_forward.1} parent=1 // pred_check_branch
      %58 = sbr.rel (0) target = $region61
    $region60: #{vit_forward.1} parent=1 // pred_region
      _
    $region61: #{vit_forward.1} parent=1 // pred_fallthru
      _
    // Predicated region
    $region62: #{vit_forward.1} parent=1 // pred_check
      _
    $region63: #{vit_forward.1} parent=1 // pred_check_branch
      %60 = sbr.rel (0) target = $region65
    $region64: #{vit_forward.1} parent=1 // pred_region
      _
    $region65: #{vit_forward.1} parent=1 // pred_fallthru
      _
    // Predicated region
    $region66: #{vit_forward.1} parent=1 // pred_check
      _
    $region67: #{vit_forward.1} parent=1 // pred_check_branch
      %62 = sbr.rel (0) target = $region69
    $region68: #{vit_forward.1} parent=1 // pred_region
      _
    $region69: #{vit_forward.1} parent=1 // pred_fallthru
      _
    // Predicated region
    $region70: #{vit_forward.1} parent=1 // pred_check
      _
    $region71: #{vit_forward.1} parent=1 // pred_check_branch
      %64 = sbr.rel (0) target = $region73
    $region72: #{vit_forward.1} parent=1 // pred_region
      _
    $region73: #{vit_forward.1} parent=1 // pred_fallthru
      _
    // Predicated region
    $region74: #{vit_forward.1} parent=1 // pred_check
      _
    $region75: #{vit_forward.1} parent=1 // pred_check_branch
      %66 = sbr.rel (0) target = $region77
    $region76: #{vit_forward.1} parent=1 // pred_region
      _
    $region77: #{vit_forward.1} parent=1 // pred_fallthru
      _
    // Predicated region
    $region78: #{vit_forward.1} parent=1 // pred_check
      _
    $region79: #{vit_forward.1} parent=1 // pred_check_branch
      %68 = sbr.rel (0) target = $region81
    $region80: #{vit_forward.1} parent=1 // pred_region
      _
    $region81: #{vit_forward.1} parent=1 // pred_fallthru
      _
    // Predicated region
    $region82: #{vit_forward.1} parent=1 // pred_check
      _
    $region83: #{vit_forward.1} parent=1 // pred_check_branch
      %70 = sbr.rel (0) target = $region85
    $region84: #{vit_forward.1} parent=1 // pred_region
      _
    $region85: #{vit_forward.1} parent=1 // pred_fallthru
      _
    // Predicated region
    $region86: #{vit_forward.1} parent=1 // pred_check
      _
    $region87: #{vit_forward.1} parent=1 // pred_check_branch
      %72 = sbr.rel (0) target = $region89
    $region88: #{vit_forward.1} parent=1 // pred_region
      %s74 = ssub.s32 16, 16
      %75 = vsyncadd [#allocation4], %s74
      %s77 = sshll.u32 %s21, 4
      %s78 = int_to_ptr.vmem [resolvable:$true] %s77
      %80 = dma.vmem_to_smem %s78, 16, [#allocation2], [#allocation4]
    $region89: #{vit_forward.1} parent=1 // pred_fallthru
      _
    // Predicated region
    $region90: #{vit_forward.1} parent=1 // pred_check
      _
    $region91: #{vit_forward.1} parent=1 // pred_check_branch
      %82 = sbr.rel (0) target = $region93
    $region92: #{vit_forward.1} parent=1 // pred_region
      %83 = dma.done [#allocation4], 16
    $region93: #{vit_forward.1} parent=1 // pred_fallthru
      _
    %84 = sfence
    %v85 = vlaneseq
    %v86 = vshrl.u32 %v85, 7
    %v87 = vadd.s32 %v86, 8
    %v88 = vand.u32 %v86, 7
    %v89 = vand.u32 %v87, 7
    %vm90 = vcmp.eq.s32.totalorder %v88, 0
    %vm91 = vcmp.eq.s32.totalorder %v89, 0
    %v92 = vsel %vm90, 1, 0
    %v93 = vsel %vm91, 1, 0
    %v94 = vcvt.s32.f32 %v92
    %v95 = vcvt.s32.f32 %v93
    %vm96 = vcmp.ge.s32.totalorder %v88, 1
    %vm97 = vcmp.ge.s32.totalorder %v89, 1
    %vm98 = vcmp.le.s32.totalorder %v88, 4
    %vm99 = vcmp.le.s32.totalorder %v89, 4
    %vm100 = vmand %vm96, %vm98
    %vm101 = vmand %vm97, %vm99
    %v102 = vsel %vm100, 1, 0
    %v103 = vsel %vm101, 1, 0
    %v104 = vcvt.s32.f32 %v102
    %v105 = vcvt.s32.f32 %v103
    %v106 = vld [vmem:[%s0] sm:$0xff]
    %v107 = vld [vmem:[%s0 + $0x8] sm:$0xff]
    %v108 = vld [vmem:[%s0 + $0x10] sm:$0xff]
    %v109 = vld [vmem:[%s0 + $0x18] sm:$0xff]
    %v110 = vld [vmem:[%s0 + $0x20] sm:$0xff]
    %v111 = vld [vmem:[%s0 + $0x28] sm:$0xff]
    %v112 = vld [vmem:[%s0 + $0x30] sm:$0xff]
    %v113 = vld [vmem:[%s0 + $0x38] sm:$0xff]
    %v114 = vld [vmem:[%s0 + $0x40] sm:$0xff]
    %v115 = vld [vmem:[%s0 + $0x48] sm:$0xff]
    %v116 = vld [vmem:[%s0 + $0x50] sm:$0xff]
    %v117 = vld [vmem:[%s0 + $0x58] sm:$0xff]
    %v118 = vld [vmem:[%s1] sm:$0xff]
    %v119 = vld [vmem:[%s1 + $0x8] sm:$0xff]
    %v120 = vld [vmem:[%s1 + $0x10] sm:$0xff]
    %v121 = vld [vmem:[%s1 + $0x18] sm:$0xff]
    %v122 = vld [vmem:[%s1 + $0x20] sm:$0xff]
    %v123 = vld [vmem:[%s1 + $0x28] sm:$0xff]
    %v124 = vld [vmem:[%s1 + $0x30] sm:$0xff]
    %v125 = vld [vmem:[%s1 + $0x38] sm:$0xff]
    %v126 = vld [vmem:[%s1 + $0x40] sm:$0xff]
    %v127 = vld [vmem:[%s1 + $0x48] sm:$0xff]
    %v128 = vld [vmem:[%s1 + $0x50] sm:$0xff]
    %v129 = vld [vmem:[%s1 + $0x58] sm:$0xff]
    %v130 = vld [vmem:[%s1 + $0x60] sm:$0xff]
    %v131 = vld [vmem:[%s1 + $0x68] sm:$0xff]
    %v132 = vld [vmem:[%s1 + $0x70] sm:$0xff]
    %v133 = vld [vmem:[%s1 + $0x78] sm:$0xff]
    %v134 = vld [vmem:[%s1 + $0x80] sm:$0xff]
    %v135 = vld [vmem:[%s1 + $0x88] sm:$0xff]
    %v136 = vld [vmem:[%s1 + $0x90] sm:$0xff]
    %v137 = vld [vmem:[%s1 + $0x98] sm:$0xff]
    %v138 = vld [vmem:[%s1 + $0xa0] sm:$0xff]
    %v139 = vld [vmem:[%s1 + $0xa8] sm:$0xff]
    %v140 = vld [vmem:[%s1 + $0xb0] sm:$0xff]
    %v141 = vld [vmem:[%s1 + $0xb8] sm:$0xff]
    %v142 = vld [vmem:[%s1 + $0xc0] sm:$0xff]
    %v143 = vld [vmem:[%s1 + $0xc8] sm:$0xff]
    %v144 = vld [vmem:[%s1 + $0xd0] sm:$0xff]
    %v145 = vld [vmem:[%s1 + $0xd8] sm:$0xff]
    %v146 = vld [vmem:[%s1 + $0xe0] sm:$0xff]
    %v147 = vld [vmem:[%s1 + $0xe8] sm:$0xff]
    %v148 = vld [vmem:[%s1 + $0xf0] sm:$0xff]
    %v149 = vld [vmem:[%s1 + $0xf8] sm:$0xff]
    %v150 = vld [vmem:[%s1 + $0x100] sm:$0xff]
    %v151 = vld [vmem:[%s1 + $0x108] sm:$0xff]
    %v152 = vld [vmem:[%s1 + $0x110] sm:$0xff]
    %v153 = vld [vmem:[%s1 + $0x118] sm:$0xff]
    %v154 = vld [vmem:[%s1 + $0x120] sm:$0xff]
    %v155 = vld [vmem:[%s1 + $0x128] sm:$0xff]
    %v156 = vld [vmem:[%s1 + $0x130] sm:$0xff]
    %v157 = vld [vmem:[%s1 + $0x138] sm:$0xff]
    %v158 = vld [vmem:[%s1 + $0x140] sm:$0xff]
    %v159 = vld [vmem:[%s1 + $0x148] sm:$0xff]
    %v160 = vld [vmem:[%s1 + $0x150] sm:$0xff]
    %v161 = vld [vmem:[%s1 + $0x158] sm:$0xff]
    %v162 = vld [vmem:[%s1 + $0x160] sm:$0xff]
    %v163 = vld [vmem:[%s1 + $0x168] sm:$0xff]
    %v164 = vld [vmem:[%s1 + $0x170] sm:$0xff]
    %v165 = vld [vmem:[%s1 + $0x178] sm:$0xff]
    %v166 = vld [vmem:[%s1 + $0x180] sm:$0xff]
    %v167 = vld [vmem:[%s1 + $0x188] sm:$0xff]
    %v168 = vld [vmem:[%s1 + $0x190] sm:$0xff]
    %v169 = vld [vmem:[%s1 + $0x198] sm:$0xff]
    %v170 = vld [vmem:[%s1 + $0x1a0] sm:$0xff]
    %v171 = vld [vmem:[%s1 + $0x1a8] sm:$0xff]
    %v172 = vld [vmem:[%s1 + $0x1b0] sm:$0xff]
    %v173 = vld [vmem:[%s1 + $0x1b8] sm:$0xff]
    %v174 = vld [vmem:[%s1 + $0x1c0] sm:$0xff]
    %v175 = vld [vmem:[%s1 + $0x1c8] sm:$0xff]
    %v176 = vld [vmem:[%s1 + $0x1d0] sm:$0xff]
    %v177 = vld [vmem:[%s1 + $0x1d8] sm:$0xff]
    %v178 = vld [vmem:[%s1 + $0x1e0] sm:$0xff]
    %v179 = vld [vmem:[%s1 + $0x1e8] sm:$0xff]
    %v180 = vld [vmem:[%s1 + $0x1f0] sm:$0xff]
    %v181 = vld [vmem:[%s1 + $0x1f8] sm:$0xff]
    %v182 = vld [vmem:[%s1 + $0x200] sm:$0xff]
    %v183 = vld [vmem:[%s1 + $0x208] sm:$0xff]
    %v184 = vld [vmem:[%s1 + $0x210] sm:$0xff]
    %v185 = vld [vmem:[%s1 + $0x218] sm:$0xff]
    %v186 = vld [vmem:[%s1 + $0x220] sm:$0xff]
    %v187 = vld [vmem:[%s1 + $0x228] sm:$0xff]
    %v188 = vld [vmem:[%s1 + $0x230] sm:$0xff]
    %v189 = vld [vmem:[%s1 + $0x238] sm:$0xff]
    %v190 = vld [vmem:[%s1 + $0x240] sm:$0xff]
    %v191 = vld [vmem:[%s1 + $0x248] sm:$0xff]
    %v192 = vld [vmem:[%s1 + $0x250] sm:$0xff]
    %v193 = vld [vmem:[%s1 + $0x258] sm:$0xff]
    %v194 = vld [vmem:[%s1 + $0x260] sm:$0xff]
    %v195 = vld [vmem:[%s1 + $0x268] sm:$0xff]
    %v196 = vld [vmem:[%s1 + $0x270] sm:$0xff]
    %v197 = vld [vmem:[%s1 + $0x278] sm:$0xff]
    %v198 = vld [vmem:[%s1 + $0x280] sm:$0xff]
    %v199 = vld [vmem:[%s1 + $0x288] sm:$0xff]
    %v200 = vld [vmem:[%s1 + $0x290] sm:$0xff]
    %v201 = vld [vmem:[%s1 + $0x298] sm:$0xff]
    %v202 = vld [vmem:[%s1 + $0x2a0] sm:$0xff]
    %v203 = vld [vmem:[%s1 + $0x2a8] sm:$0xff]
    %v204 = vld [vmem:[%s1 + $0x2b0] sm:$0xff]
    %v205 = vld [vmem:[%s1 + $0x2b8] sm:$0xff]
    %v206 = vld [vmem:[%s1 + $0x2c0] sm:$0xff]
    %v207 = vld [vmem:[%s1 + $0x2c8] sm:$0xff]
    %v208 = vld [vmem:[%s1 + $0x2d0] sm:$0xff]
    %v209 = vld [vmem:[%s1 + $0x2d8] sm:$0xff]
    %v210 = vld [vmem:[%s1 + $0x2e0] sm:$0xff]
    %v211 = vld [vmem:[%s1 + $0x2e8] sm:$0xff]
    %v212 = vld [vmem:[%s1 + $0x2f0] sm:$0xff]
    %v213 = vld [vmem:[%s1 + $0x2f8] sm:$0xff]
    %v214 = vld [vmem:[%s4] sm:$0xff]
    %v215 = vld [vmem:[%s2] sm:$0x1]
    %v217 = vlaneseq
    %v218 = vshrl.u32 %v217, 7
    %v219 = vsub.s32 0, %v218
    %v220 = vrot.slane %v215, %v219
    %v222 = vmul.f32 %v104, %v220
    %v223 = vmul.f32 %v105, %v220
    %224 = vmatprep.subr.mxu0 0.0
    %225 = vmatpush1.msra.mxu0 %v118
    %226 = vmatprep.subr.mxu0 0.0
    %227 = vmatpush1.msra.mxu0 %v119
    %228 = vmatprep.subr.mxu0 0.0
    %229 = vmatpush1.msra.mxu0 %v120
    %230 = vmatprep.subr.mxu0 0.0
    %231 = vmatpush1.msra.mxu0 %v121
    %232 = vmatprep.subr.mxu0 0.0
    %233 = vmatpush1.msra.mxu0 %v122
    %234 = vmatprep.subr.mxu0 0.0
    %235 = vmatpush1.msra.mxu0 %v123
    %236 = vmatprep.subr.mxu0 0.0
    %237 = vmatpush1.msra.mxu0 %v124
    %238 = vmatprep.subr.mxu0 0.0
    %239 = vmatpush1.msra.mxu0 %v125
    %240 = vmatprep.subr.mxu0 0.0
    %241 = vmatpush1.msra.mxu0 %v126
    %242 = vmatprep.subr.mxu0 0.0
    %243 = vmatpush1.msra.mxu0 %v127
    %244 = vmatprep.subr.mxu0 0.0
    %245 = vmatpush1.msra.mxu0 %v128
    %246 = vmatprep.subr.mxu0 0.0
    %247 = vmatpush1.msra.mxu0 %v129
    %248 = vmatprep.subr.mxu0 0.0
    %249 = vmatpush1.msra.mxu0 %v130
    %250 = vmatprep.subr.mxu0 0.0
    %251 = vmatpush1.msra.mxu0 %v131
    %252 = vmatprep.subr.mxu0 0.0
    %253 = vmatpush1.msra.mxu0 %v132
    %254 = vmatprep.subr.mxu0 0.0
    %255 = vmatpush1.msra.mxu0 %v133
    %256 = vmatprep.subr.mxu0 0.0
    %257 = vmatpush1.msra.mxu0 %v134
    %258 = vmatprep.subr.mxu0 0.0
    %259 = vmatpush1.msra.mxu0 %v135
    %260 = vmatprep.subr.mxu0 0.0
    %261 = vmatpush1.msra.mxu0 %v136
    %262 = vmatprep.subr.mxu0 0.0
    %263 = vmatpush1.msra.mxu0 %v137
    %264 = vmatprep.subr.mxu0 0.0
    %265 = vmatpush1.msra.mxu0 %v138
    %266 = vmatprep.subr.mxu0 0.0
    %267 = vmatpush1.msra.mxu0 %v139
    %268 = vmatprep.subr.mxu0 0.0
    %269 = vmatpush1.msra.mxu0 %v140
    %270 = vmatprep.subr.mxu0 0.0
    %271 = vmatpush1.msra.mxu0 %v141
    %272 = vmatprep.subr.mxu0 0.0
    %273 = vmatpush1.msra.mxu0 %v142
    %274 = vmatprep.subr.mxu0 0.0
    %275 = vmatpush1.msra.mxu0 %v143
    %276 = vmatprep.subr.mxu0 0.0
    %277 = vmatpush1.msra.mxu0 %v144
    %278 = vmatprep.subr.mxu0 0.0
    %279 = vmatpush1.msra.mxu0 %v145
    %280 = vmatprep.subr.mxu0 0.0
    %281 = vmatpush1.msra.mxu0 %v146
    %282 = vmatprep.subr.mxu0 0.0
    %283 = vmatpush1.msra.mxu0 %v147
    %284 = vmatprep.subr.mxu0 0.0
    %285 = vmatpush1.msra.mxu0 %v148
    %286 = vmatprep.subr.mxu0 0.0
    %287 = vmatpush1.msra.mxu0 %v149
    %288 = vmatprep.mubr.f32.mxu0 %v107
    %289 = vmatmul.mubr.f32.gmra.mrb[0].mxu0 %v106
    %v290 = vpop.f32.mrb[0].mxu0
    %v291 = vadd.f32 %v222, %v290
    %v292 = vpop.f32.mrb[0].mxu0
    %293 = vmatprep.mubr.f32.mxu0 %v113
    %294 = vmatmul.mubr.f32.gmra.mrb[0].mxu0 %v112
    %v295 = vpop.f32.mrb[0].mxu0
    %v296 = vadd.f32 %v223, %v295
    %v297 = vpop.f32.mrb[0].mxu0
    %298 = vdwg.mxu0
    %299 = vmatprep.subr.mxu0 0.0
    %300 = vmatpush1.msra.mxu0 %v150
    %301 = vmatprep.subr.mxu0 0.0
    %302 = vmatpush1.msra.mxu0 %v151
    %303 = vmatprep.subr.mxu0 0.0
    %304 = vmatpush1.msra.mxu0 %v152
    %305 = vmatprep.subr.mxu0 0.0
    %306 = vmatpush1.msra.mxu0 %v153
    %307 = vmatprep.subr.mxu0 0.0
    %308 = vmatpush1.msra.mxu0 %v154
    %309 = vmatprep.subr.mxu0 0.0
    %310 = vmatpush1.msra.mxu0 %v155
    %311 = vmatprep.subr.mxu0 0.0
    %312 = vmatpush1.msra.mxu0 %v156
    %313 = vmatprep.subr.mxu0 0.0
    %314 = vmatpush1.msra.mxu0 %v157
    %315 = vmatprep.subr.mxu0 0.0
    %316 = vmatpush1.msra.mxu0 %v158
    %317 = vmatprep.subr.mxu0 0.0
    %318 = vmatpush1.msra.mxu0 %v159
    %319 = vmatprep.subr.mxu0 0.0
    %320 = vmatpush1.msra.mxu0 %v160
    %321 = vmatprep.subr.mxu0 0.0
    %322 = vmatpush1.msra.mxu0 %v161
    %323 = vmatprep.subr.mxu0 0.0
    %324 = vmatpush1.msra.mxu0 %v162
    %325 = vmatprep.subr.mxu0 0.0
    %326 = vmatpush1.msra.mxu0 %v163
    %327 = vmatprep.subr.mxu0 0.0
    %328 = vmatpush1.msra.mxu0 %v164
    %329 = vmatprep.subr.mxu0 0.0
    %330 = vmatpush1.msra.mxu0 %v165
    %331 = vmatprep.subr.mxu0 0.0
    %332 = vmatpush1.msra.mxu0 %v166
    %333 = vmatprep.subr.mxu0 0.0
    %334 = vmatpush1.msra.mxu0 %v167
    %335 = vmatprep.subr.mxu0 0.0
    %336 = vmatpush1.msra.mxu0 %v168
    %337 = vmatprep.subr.mxu0 0.0
    %338 = vmatpush1.msra.mxu0 %v169
    %339 = vmatprep.subr.mxu0 0.0
    %340 = vmatpush1.msra.mxu0 %v170
    %341 = vmatprep.subr.mxu0 0.0
    %342 = vmatpush1.msra.mxu0 %v171
    %343 = vmatprep.subr.mxu0 0.0
    %344 = vmatpush1.msra.mxu0 %v172
    %345 = vmatprep.subr.mxu0 0.0
    %346 = vmatpush1.msra.mxu0 %v173
    %347 = vmatprep.subr.mxu0 0.0
    %348 = vmatpush1.msra.mxu0 %v174
    %349 = vmatprep.subr.mxu0 0.0
    %350 = vmatpush1.msra.mxu0 %v175
    %351 = vmatprep.subr.mxu0 0.0
    %352 = vmatpush1.msra.mxu0 %v176
    %353 = vmatprep.subr.mxu0 0.0
    %354 = vmatpush1.msra.mxu0 %v177
    %355 = vmatprep.subr.mxu0 0.0
    %356 = vmatpush1.msra.mxu0 %v178
    %357 = vmatprep.subr.mxu0 0.0
    %358 = vmatpush1.msra.mxu0 %v179
    %359 = vmatprep.subr.mxu0 0.0
    %360 = vmatpush1.msra.mxu0 %v180
    %361 = vmatprep.subr.mxu0 0.0
    %362 = vmatpush1.msra.mxu0 %v181
    %363 = vmatprep.mubr.f32.mxu0 %v109
    %364 = vmatmul.mubr.f32.gmra.mrb[0].mxu0 %v108
    %v365 = vpop.f32.mrb[0].mxu0
    %v366 = vadd.f32 %v291, %v365
    %v367 = vpop.f32.mrb[0].mxu0
    %368 = vmatprep.mubr.f32.mxu0 %v115
    %369 = vmatmul.mubr.f32.gmra.mrb[0].mxu0 %v114
    %v370 = vpop.f32.mrb[0].mxu0
    %v371 = vadd.f32 %v296, %v370
    %v372 = vpop.f32.mrb[0].mxu0
    %373 = vdwg.mxu0
    %374 = vmatprep.subr.mxu0 0.0
    %375 = vmatpush1.msra.mxu0 %v182
    %376 = vmatprep.subr.mxu0 0.0
    %377 = vmatpush1.msra.mxu0 %v183
    %378 = vmatprep.subr.mxu0 0.0
    %379 = vmatpush1.msra.mxu0 %v184
    %380 = vmatprep.subr.mxu0 0.0
    %381 = vmatpush1.msra.mxu0 %v185
    %382 = vmatprep.subr.mxu0 0.0
    %383 = vmatpush1.msra.mxu0 %v186
    %384 = vmatprep.subr.mxu0 0.0
    %385 = vmatpush1.msra.mxu0 %v187
    %386 = vmatprep.subr.mxu0 0.0
    %387 = vmatpush1.msra.mxu0 %v188
    %388 = vmatprep.subr.mxu0 0.0
    %389 = vmatpush1.msra.mxu0 %v189
    %390 = vmatprep.subr.mxu0 0.0
    %391 = vmatpush1.msra.mxu0 %v190
    %392 = vmatprep.subr.mxu0 0.0
    %393 = vmatpush1.msra.mxu0 %v191
    %394 = vmatprep.subr.mxu0 0.0
    %395 = vmatpush1.msra.mxu0 %v192
    %396 = vmatprep.subr.mxu0 0.0
    %397 = vmatpush1.msra.mxu0 %v193
    %398 = vmatprep.subr.mxu0 0.0
    %399 = vmatpush1.msra.mxu0 %v194
    %400 = vmatprep.subr.mxu0 0.0
    %401 = vmatpush1.msra.mxu0 %v195
    %402 = vmatprep.subr.mxu0 0.0
    %403 = vmatpush1.msra.mxu0 %v196
    %404 = vmatprep.subr.mxu0 0.0
    %405 = vmatpush1.msra.mxu0 %v197
    %406 = vmatprep.subr.mxu0 0.0
    %407 = vmatpush1.msra.mxu0 %v198
    %408 = vmatprep.subr.mxu0 0.0
    %409 = vmatpush1.msra.mxu0 %v199
    %410 = vmatprep.subr.mxu0 0.0
    %411 = vmatpush1.msra.mxu0 %v200
    %412 = vmatprep.subr.mxu0 0.0
    %413 = vmatpush1.msra.mxu0 %v201
    %414 = vmatprep.subr.mxu0 0.0
    %415 = vmatpush1.msra.mxu0 %v202
    %416 = vmatprep.subr.mxu0 0.0
    %417 = vmatpush1.msra.mxu0 %v203
    %418 = vmatprep.subr.mxu0 0.0
    %419 = vmatpush1.msra.mxu0 %v204
    %420 = vmatprep.subr.mxu0 0.0
    %421 = vmatpush1.msra.mxu0 %v205
    %422 = vmatprep.subr.mxu0 0.0
    %423 = vmatpush1.msra.mxu0 %v206
    %424 = vmatprep.subr.mxu0 0.0
    %425 = vmatpush1.msra.mxu0 %v207
    %426 = vmatprep.subr.mxu0 0.0
    %427 = vmatpush1.msra.mxu0 %v208
    %428 = vmatprep.subr.mxu0 0.0
    %429 = vmatpush1.msra.mxu0 %v209
    %430 = vmatprep.subr.mxu0 0.0
    %431 = vmatpush1.msra.mxu0 %v210
    %432 = vmatprep.subr.mxu0 0.0
    %433 = vmatpush1.msra.mxu0 %v211
    %434 = vmatprep.subr.mxu0 0.0
    %435 = vmatpush1.msra.mxu0 %v212
    %436 = vmatprep.subr.mxu0 0.0
    %437 = vmatpush1.msra.mxu0 %v213
    %438 = vmatprep.mubr.f32.mxu0 %v111
    %439 = vmatmul.mubr.f32.gmra.mrb[0].mxu0 %v110
    %v440 = vpop.f32.mrb[0].mxu0
    %v441 = vadd.f32 %v366, %v440
    %v442 = vpop.f32.mrb[0].mxu0
    %443 = vmatprep.mubr.f32.mxu0 %v117
    %444 = vmatmul.mubr.f32.gmra.mrb[0].mxu0 %v116
    %v445 = vpop.f32.mrb[0].mxu0
    %v446 = vadd.f32 %v371, %v445
    %v447 = vpop.f32.mrb[0].mxu0
    %448 = vdwg.mxu0
    %v449 = vld [vmem:[%s3] sm:$0x1]
    %v451 = vlaneseq
    %v452 = vshrl.u32 %v451, 7
    %v453 = vsub.s32 0, %v452
    %v454 = vrot.slane %v449, %v453
    %v456 = vmul.f32 %v94, %v454
    %v457 = vmul.f32 %v95, %v454
    %v458 = vadd.f32 %v441, %v456
    %v459 = vadd.f32 %v446, %v457
    %v460 = vadd.f32 %v458, %v214
    %v461 = vadd.f32 %v459, %v214
    %v462 = vlaneseq
    %v463 = vand.u32 %v462, 127
    %vm464 = vcmp.lt.s32.totalorder %v463, 5
    %v465 = vld [vmem:[%s5] sm:$0x1]
    %v466 = vld [vmem:[%s6] sm:$0x1]
    %vm467 = vcmask 261120
    %v468 = vsel %vm467, %v460, 0.0
    %469 = vadd.xlane.f32.xlu0 %v468
    %v470 = vpop.xlane.xlu0 %469
    %v471 = vsel %vm467, %v461, 0.0
    %472 = vadd.xlane.f32.xlu0 %v471
    %v473 = vpop.xlane.xlu0 %472
    %v474 = vrcp.pop 32.0
    %v475 = vmul.f32 %v470, %v474
    %v476 = vmul.f32 %v473, %v474
    %v477 = vsub.f32 %v460, %v475
    %v478 = vsub.f32 %v461, %v476
    %v479 = vmul.f32 %v477, %v477
    %v480 = vmul.f32 %v478, %v478
    %v481 = vsel %vm467, %v479, 0.0
    %482 = vadd.xlane.f32.xlu0 %v481
    %v483 = vpop.xlane.xlu0 %482
    %v484 = vsel %vm467, %v480, 0.0
    %485 = vadd.xlane.f32.xlu0 %v484
    %v486 = vpop.xlane.xlu0 %485
    %v487 = vmul.f32 %v483, %v474
    %v488 = vmul.f32 %v486, %v474
    %v489 = vadd.f32 %v487, 1e-12
    %v490 = vadd.f32 %v488, 1e-12
    %v491 = vrsqrt.pop %v489
    %v492 = vrsqrt.pop %v490
    %v493 = vmul.f32 %v477, %v491
    %v494 = vmul.f32 %v478, %v492
    %v496 = vlaneseq
    %v497 = vshrl.u32 %v496, 7
    %v498 = vsub.s32 0, %v497
    %v499 = vrot.slane %v465, %v498
    %v501 = vmul.f32 %v493, %v499
    %v502 = vmul.f32 %v494, %v499
    %v504 = vlaneseq
    %v505 = vshrl.u32 %v504, 7
    %v506 = vsub.s32 0, %v505
    %v507 = vrot.slane %v466, %v506
    %v509 = vadd.f32 %v501, %v507
    %v510 = vadd.f32 %v502, %v507
    %v511 = vld [vmem:[%s7] sm:$0xff]
    %v512 = vld [vmem:[%s7 + $0x8] sm:$0xff]
    %v513 = vld [vmem:[%s7 + $0x10] sm:$0xff]
    %v514 = vld [vmem:[%s7 + $0x18] sm:$0xff]
    %v515 = vld [vmem:[%s8] sm:$0x1]
    %v517 = vlaneseq
    %v518 = vshrl.u32 %v517, 7
    %v519 = vsub.s32 0, %v518
    %v520 = vrot.slane %v515, %v519
    %v523 = vsel %vm467, %v509, 0
    %v526 = vsel %vm467, %v510, 0
    %528 = vmatprep.subr.mxu0 0.0
    %529 = vmatpush1.msra.mxu0 %v511
    %530 = vmatprep.subr.mxu0 0.0
    %531 = vmatpush1.msra.mxu0 %v512
    %532 = vmatprep.subr.mxu0 0.0
    %533 = vmatpush1.msra.mxu0 %v513
    %534 = vmatprep.subr.mxu0 0.0
    %535 = vmatpush1.msra.mxu0 %v514
    %536 = vmatprep.subr.mxu0 0.0
    %537 = vmatpush1.msra.mxu0 0.0
    %538 = vmatprep.subr.mxu0 0.0
    %539 = vmatpush1.msra.mxu0 0.0
    %540 = vmatprep.subr.mxu0 0.0
    %541 = vmatpush1.msra.mxu0 0.0
    %542 = vmatprep.subr.mxu0 0.0
    %543 = vmatpush1.msra.mxu0 0.0
    %544 = vmatprep.subr.mxu0 0.0
    %545 = vmatpush1.msra.mxu0 0.0
    %546 = vmatprep.subr.mxu0 0.0
    %547 = vmatpush1.msra.mxu0 0.0
    %548 = vmatprep.subr.mxu0 0.0
    %549 = vmatpush1.msra.mxu0 0.0
    %550 = vmatprep.subr.mxu0 0.0
    %551 = vmatpush1.msra.mxu0 0.0
    %552 = vmatprep.subr.mxu0 0.0
    %553 = vmatpush1.msra.mxu0 0.0
    %554 = vmatprep.subr.mxu0 0.0
    %555 = vmatpush1.msra.mxu0 0.0
    %556 = vmatprep.subr.mxu0 0.0
    %557 = vmatpush1.msra.mxu0 0.0
    %558 = vmatprep.subr.mxu0 0.0
    %559 = vmatpush1.msra.mxu0 0.0
    %560 = vmatprep.subr.mxu0 0.0
    %561 = vmatpush1.msra.mxu0 0.0
    %562 = vmatprep.subr.mxu0 0.0
    %563 = vmatpush1.msra.mxu0 0.0
    %564 = vmatprep.subr.mxu0 0.0
    %565 = vmatpush1.msra.mxu0 0.0
    %566 = vmatprep.subr.mxu0 0.0
    %567 = vmatpush1.msra.mxu0 0.0
    %568 = vmatprep.subr.mxu0 0.0
    %569 = vmatpush1.msra.mxu0 0.0
    %570 = vmatprep.subr.mxu0 0.0
    %571 = vmatpush1.msra.mxu0 0.0
    %572 = vmatprep.subr.mxu0 0.0
    %573 = vmatpush1.msra.mxu0 0.0
    %574 = vmatprep.subr.mxu0 0.0
    %575 = vmatpush1.msra.mxu0 0.0
    %576 = vmatprep.subr.mxu0 0.0
    %577 = vmatpush1.msra.mxu0 0.0
    %578 = vmatprep.subr.mxu0 0.0
    %579 = vmatpush1.msra.mxu0 0.0
    %580 = vmatprep.subr.mxu0 0.0
    %581 = vmatpush1.msra.mxu0 0.0
    %582 = vmatprep.subr.mxu0 0.0
    %583 = vmatpush1.msra.mxu0 0.0
    %584 = vmatprep.subr.mxu0 0.0
    %585 = vmatpush1.msra.mxu0 0.0
    %586 = vmatprep.subr.mxu0 0.0
    %587 = vmatpush1.msra.mxu0 0.0
    %588 = vmatprep.subr.mxu0 0.0
    %589 = vmatpush1.msra.mxu0 0.0
    %590 = vmatprep.subr.mxu0 0.0
    %591 = vmatpush1.msra.mxu0 0.0
    %592 = vmatprep.mubr.f32.mxu0 0.0
    %593 = vmatmul.mubr.f32.gmra.mrb[0].mxu0 %v523
    %v594 = vpop.f32.mrb[0].mxu0
    %v595 = vadd.f32 %v520, %v594
    %v596 = vpop.f32.mrb[0].mxu0
    %597 = vmatprep.mubr.f32.mxu0 0.0
    %598 = vmatmul.mubr.f32.gmra.mrb[0].mxu0 %v526
    %v599 = vpop.f32.mrb[0].mxu0
    %v600 = vadd.f32 %v520, %v599
    %v601 = vpop.f32.mrb[0].mxu0
    %602 = vdwg.mxu0
    %604 = vrot.lane.b32.xlu0 %v595, 96
    %v605 = vpop.permute.xlu0 %604
    %vm606 = vcmask 130048
    %v607 = vsel %vm606, %v595, 0
    %v609 = vsel %vm606, %v605, 0
    %611 = vmatprep.subr.mxu0 0.0
    %612 = vmatpush1.xpose.msra.mxu0 %v609
    %613 = vmatprep.subr.mxu0 0.0
    %614 = vmatpush1.xpose.msra.mxu0 0.0
    %615 = vmatprep.subr.mxu0 0.0
    %616 = vmatpush1.xpose.msra.mxu0 0.0
    %617 = vmatprep.subr.mxu0 0.0
    %618 = vmatpush1.xpose.msra.mxu0 0.0
    %619 = vmatprep.subr.mxu0 0.0
    %620 = vmatpush1.xpose.msra.mxu0 0.0
    %621 = vmatprep.subr.mxu0 0.0
    %622 = vmatpush1.xpose.msra.mxu0 0.0
    %623 = vmatprep.subr.mxu0 0.0
    %624 = vmatpush1.xpose.msra.mxu0 0.0
    %625 = vmatprep.subr.mxu0 0.0
    %626 = vmatpush1.xpose.msra.mxu0 0.0
    %627 = vmatprep.subr.mxu0 0.0
    %628 = vmatpush1.xpose.msra.mxu0 0.0
    %629 = vmatprep.subr.mxu0 0.0
    %630 = vmatpush1.xpose.msra.mxu0 0.0
    %631 = vmatprep.subr.mxu0 0.0
    %632 = vmatpush1.xpose.msra.mxu0 0.0
    %633 = vmatprep.subr.mxu0 0.0
    %634 = vmatpush1.xpose.msra.mxu0 0.0
    %635 = vmatprep.subr.mxu0 0.0
    %636 = vmatpush1.xpose.msra.mxu0 0.0
    %637 = vmatprep.subr.mxu0 0.0
    %638 = vmatpush1.xpose.msra.mxu0 0.0
    %639 = vmatprep.subr.mxu0 0.0
    %640 = vmatpush1.xpose.msra.mxu0 0.0
    %641 = vmatprep.subr.mxu0 0.0
    %642 = vmatpush1.xpose.msra.mxu0 0.0
    %643 = vmatprep.subr.mxu0 0.0
    %644 = vmatpush1.xpose.msra.mxu0 0.0
    %645 = vmatprep.subr.mxu0 0.0
    %646 = vmatpush1.xpose.msra.mxu0 0.0
    %647 = vmatprep.subr.mxu0 0.0
    %648 = vmatpush1.xpose.msra.mxu0 0.0
    %649 = vmatprep.subr.mxu0 0.0
    %650 = vmatpush1.xpose.msra.mxu0 0.0
    %651 = vmatprep.subr.mxu0 0.0
    %652 = vmatpush1.xpose.msra.mxu0 0.0
    %653 = vmatprep.subr.mxu0 0.0
    %654 = vmatpush1.xpose.msra.mxu0 0.0
    %655 = vmatprep.subr.mxu0 0.0
    %656 = vmatpush1.xpose.msra.mxu0 0.0
    %657 = vmatprep.subr.mxu0 0.0
    %658 = vmatpush1.xpose.msra.mxu0 0.0
    %659 = vmatprep.subr.mxu0 0.0
    %660 = vmatpush1.xpose.msra.mxu0 0.0
    %661 = vmatprep.subr.mxu0 0.0
    %662 = vmatpush1.xpose.msra.mxu0 0.0
    %663 = vmatprep.subr.mxu0 0.0
    %664 = vmatpush1.xpose.msra.mxu0 0.0
    %665 = vmatprep.subr.mxu0 0.0
    %666 = vmatpush1.xpose.msra.mxu0 0.0
    %667 = vmatprep.subr.mxu0 0.0
    %668 = vmatpush1.xpose.msra.mxu0 0.0
    %669 = vmatprep.subr.mxu0 0.0
    %670 = vmatpush1.xpose.msra.mxu0 0.0
    %671 = vmatprep.subr.mxu0 0.0
    %672 = vmatpush1.xpose.msra.mxu0 0.0
    %673 = vmatprep.subr.mxu0 0.0
    %674 = vmatpush1.xpose.msra.mxu0 0.0
    %675 = vmatprep.mubr.f32.mxu0 0.0
    %676 = vmatmul.mubr.f32.gmra.mrb[0].mxu0 %v607
    %v677 = vpop.f32.mrb[0].mxu0
    %v678 = vadd.f32 0.0, %v677
    %v679 = vpop.f32.mrb[0].mxu0
    %680 = vdwg.mxu0
    %v681 = vmul.f32 %v678, 0.25
    %v682 = vsel %vm464, %v681, -1e+30
    %vm683 = vcmask 64512
    %v684 = vsel %vm683, %v682, -inf
    %685 = vmax.xlane.f32.xlu0 %v684
    %v686 = vpop.xlane.xlu0 %685
    %v687 = vsub.f32 %v682, %v686
    %v688 = vmul.f32 %v687, 1.442695
    %v689 = vpow.pop %v688
    %v690 = vsel %vm683, %v689, 0.0
    %691 = vadd.xlane.f32.xlu0 %v690
    %v692 = vpop.xlane.xlu0 %691
    %v693 = vrcp.pop %v692
    %v694 = vmul.f32 %v689, %v693
    %695 = vrot.lane.b32.xlu0 %v595, 64
    %v696 = vpop.permute.xlu0 %695
    %v699 = vsel %vm683, %v694, 0
    %701 = vmatprep.subr.mxu0 0.0
    %702 = vmatpush1.msra.mxu0 %v696
    %703 = vmatprep.subr.mxu0 0.0
    %704 = vmatpush1.msra.mxu0 0.0
    %705 = vmatprep.subr.mxu0 0.0
    %706 = vmatpush1.msra.mxu0 0.0
    %707 = vmatprep.subr.mxu0 0.0
    %708 = vmatpush1.msra.mxu0 0.0
    %709 = vmatprep.subr.mxu0 0.0
    %710 = vmatpush1.msra.mxu0 0.0
    %711 = vmatprep.subr.mxu0 0.0
    %712 = vmatpush1.msra.mxu0 0.0
    %713 = vmatprep.subr.mxu0 0.0
    %714 = vmatpush1.msra.mxu0 0.0
    %715 = vmatprep.subr.mxu0 0.0
    %716 = vmatpush1.msra.mxu0 0.0
    %717 = vmatprep.subr.mxu0 0.0
    %718 = vmatpush1.msra.mxu0 0.0
    %719 = vmatprep.subr.mxu0 0.0
    %720 = vmatpush1.msra.mxu0 0.0
    %721 = vmatprep.subr.mxu0 0.0
    %722 = vmatpush1.msra.mxu0 0.0
    %723 = vmatprep.subr.mxu0 0.0
    %724 = vmatpush1.msra.mxu0 0.0
    %725 = vmatprep.subr.mxu0 0.0
    %726 = vmatpush1.msra.mxu0 0.0
    %727 = vmatprep.subr.mxu0 0.0
    %728 = vmatpush1.msra.mxu0 0.0
    %729 = vmatprep.subr.mxu0 0.0
    %730 = vmatpush1.msra.mxu0 0.0
    %731 = vmatprep.subr.mxu0 0.0
    %732 = vmatpush1.msra.mxu0 0.0
    %733 = vmatprep.subr.mxu0 0.0
    %734 = vmatpush1.msra.mxu0 0.0
    %735 = vmatprep.subr.mxu0 0.0
    %736 = vmatpush1.msra.mxu0 0.0
    %737 = vmatprep.subr.mxu0 0.0
    %738 = vmatpush1.msra.mxu0 0.0
    %739 = vmatprep.subr.mxu0 0.0
    %740 = vmatpush1.msra.mxu0 0.0
    %741 = vmatprep.subr.mxu0 0.0
    %742 = vmatpush1.msra.mxu0 0.0
    %743 = vmatprep.subr.mxu0 0.0
    %744 = vmatpush1.msra.mxu0 0.0
    %745 = vmatprep.subr.mxu0 0.0
    %746 = vmatpush1.msra.mxu0 0.0
    %747 = vmatprep.subr.mxu0 0.0
    %748 = vmatpush1.msra.mxu0 0.0
    %749 = vmatprep.subr.mxu0 0.0
    %750 = vmatpush1.msra.mxu0 0.0
    %751 = vmatprep.subr.mxu0 0.0
    %752 = vmatpush1.msra.mxu0 0.0
    %753 = vmatprep.subr.mxu0 0.0
    %754 = vmatpush1.msra.mxu0 0.0
    %755 = vmatprep.subr.mxu0 0.0
    %756 = vmatpush1.msra.mxu0 0.0
    %757 = vmatprep.subr.mxu0 0.0
    %758 = vmatpush1.msra.mxu0 0.0
    %759 = vmatprep.subr.mxu0 0.0
    %760 = vmatpush1.msra.mxu0 0.0
    %761 = vmatprep.subr.mxu0 0.0
    %762 = vmatpush1.msra.mxu0 0.0
    %763 = vmatprep.subr.mxu0 0.0
    %764 = vmatpush1.msra.mxu0 0.0
    %765 = vmatprep.mubr.f32.mxu0 0.0
    %766 = vmatmul.mubr.f32.gmra.mrb[0].mxu0 %v699
    %v767 = vpop.f32.mrb[0].mxu0
    %v768 = vadd.f32 0.0, %v767
    %v769 = vpop.f32.mrb[0].mxu0
    %770 = vdwg.mxu0
    %771 = vrot.lane.b32.xlu0 %v595, 112
    %v772 = vpop.permute.xlu0 %771
    %773 = vrot.lane.b32.xlu0 %v595, 80
    %v774 = vpop.permute.xlu0 %773
    %v775 = vsel %vm606, %v772, 0
    %v777 = vsel %vm606, %v774, 0
    %779 = vmatprep.subr.mxu0 0.0
    %780 = vmatpush1.xpose.msra.mxu0 %v777
    %781 = vmatprep.subr.mxu0 0.0
    %782 = vmatpush1.xpose.msra.mxu0 0.0
    %783 = vmatprep.subr.mxu0 0.0
    %784 = vmatpush1.xpose.msra.mxu0 0.0
    %785 = vmatprep.subr.mxu0 0.0
    %786 = vmatpush1.xpose.msra.mxu0 0.0
    %787 = vmatprep.subr.mxu0 0.0
    %788 = vmatpush1.xpose.msra.mxu0 0.0
    %789 = vmatprep.subr.mxu0 0.0
    %790 = vmatpush1.xpose.msra.mxu0 0.0
    %791 = vmatprep.subr.mxu0 0.0
    %792 = vmatpush1.xpose.msra.mxu0 0.0
    %793 = vmatprep.subr.mxu0 0.0
    %794 = vmatpush1.xpose.msra.mxu0 0.0
    %795 = vmatprep.subr.mxu0 0.0
    %796 = vmatpush1.xpose.msra.mxu0 0.0
    %797 = vmatprep.subr.mxu0 0.0
    %798 = vmatpush1.xpose.msra.mxu0 0.0
    %799 = vmatprep.subr.mxu0 0.0
    %800 = vmatpush1.xpose.msra.mxu0 0.0
    %801 = vmatprep.subr.mxu0 0.0
    %802 = vmatpush1.xpose.msra.mxu0 0.0
    %803 = vmatprep.subr.mxu0 0.0
    %804 = vmatpush1.xpose.msra.mxu0 0.0
    %805 = vmatprep.subr.mxu0 0.0
    %806 = vmatpush1.xpose.msra.mxu0 0.0
    %807 = vmatprep.subr.mxu0 0.0
    %808 = vmatpush1.xpose.msra.mxu0 0.0
    %809 = vmatprep.subr.mxu0 0.0
    %810 = vmatpush1.xpose.msra.mxu0 0.0
    %811 = vmatprep.subr.mxu0 0.0
    %812 = vmatpush1.xpose.msra.mxu0 0.0
    %813 = vmatprep.subr.mxu0 0.0
    %814 = vmatpush1.xpose.msra.mxu0 0.0
    %815 = vmatprep.subr.mxu0 0.0
    %816 = vmatpush1.xpose.msra.mxu0 0.0
    %817 = vmatprep.subr.mxu0 0.0
    %818 = vmatpush1.xpose.msra.mxu0 0.0
    %819 = vmatprep.subr.mxu0 0.0
    %820 = vmatpush1.xpose.msra.mxu0 0.0
    %821 = vmatprep.subr.mxu0 0.0
    %822 = vmatpush1.xpose.msra.mxu0 0.0
    %823 = vmatprep.subr.mxu0 0.0
    %824 = vmatpush1.xpose.msra.mxu0 0.0
    %825 = vmatprep.subr.mxu0 0.0
    %826 = vmatpush1.xpose.msra.mxu0 0.0
    %827 = vmatprep.subr.mxu0 0.0
    %828 = vmatpush1.xpose.msra.mxu0 0.0
    %829 = vmatprep.subr.mxu0 0.0
    %830 = vmatpush1.xpose.msra.mxu0 0.0
    %831 = vmatprep.subr.mxu0 0.0
    %832 = vmatpush1.xpose.msra.mxu0 0.0
    %833 = vmatprep.subr.mxu0 0.0
    %834 = vmatpush1.xpose.msra.mxu0 0.0
    %835 = vmatprep.subr.mxu0 0.0
    %836 = vmatpush1.xpose.msra.mxu0 0.0
    %837 = vmatprep.subr.mxu0 0.0
    %838 = vmatpush1.xpose.msra.mxu0 0.0
    %839 = vmatprep.subr.mxu0 0.0
    %840 = vmatpush1.xpose.msra.mxu0 0.0
    %841 = vmatprep.subr.mxu0 0.0
    %842 = vmatpush1.xpose.msra.mxu0 0.0
    %843 = vmatprep.mubr.f32.mxu0 0.0
    %844 = vmatmul.mubr.f32.gmra.mrb[0].mxu0 %v775
    %v845 = vpop.f32.mrb[0].mxu0
    %v846 = vadd.f32 0.0, %v845
    %v847 = vpop.f32.mrb[0].mxu0
    %848 = vdwg.mxu0
    %v849 = vmul.f32 %v846, 0.25
    %v850 = vsel %vm464, %v849, -1e+30
    %v851 = vsel %vm683, %v850, -inf
    %852 = vmax.xlane.f32.xlu0 %v851
    %v853 = vpop.xlane.xlu0 %852
    %v854 = vsub.f32 %v850, %v853
    %v855 = vmul.f32 %v854, 1.442695
    %v856 = vpow.pop %v855
    %v857 = vsel %vm683, %v856, 0.0
    %858 = vadd.xlane.f32.xlu0 %v857
    %v859 = vpop.xlane.xlu0 %858
    %v860 = vrcp.pop %v859
    %v861 = vmul.f32 %v856, %v860
    %862 = vrot.lane.b32.xlu0 %v595, 48
    %v863 = vpop.permute.xlu0 %862
    %v866 = vsel %vm683, %v861, 0
    %868 = vmatprep.subr.mxu0 0.0
    %869 = vmatpush1.msra.mxu0 %v863
    %870 = vmatprep.subr.mxu0 0.0
    %871 = vmatpush1.msra.mxu0 0.0
    %872 = vmatprep.subr.mxu0 0.0
    %873 = vmatpush1.msra.mxu0 0.0
    %874 = vmatprep.subr.mxu0 0.0
    %875 = vmatpush1.msra.mxu0 0.0
    %876 = vmatprep.subr.mxu0 0.0
    %877 = vmatpush1.msra.mxu0 0.0
    %878 = vmatprep.subr.mxu0 0.0
    %879 = vmatpush1.msra.mxu0 0.0
    %880 = vmatprep.subr.mxu0 0.0
    %881 = vmatpush1.msra.mxu0 0.0
    %882 = vmatprep.subr.mxu0 0.0
    %883 = vmatpush1.msra.mxu0 0.0
    %884 = vmatprep.subr.mxu0 0.0
    %885 = vmatpush1.msra.mxu0 0.0
    %886 = vmatprep.subr.mxu0 0.0
    %887 = vmatpush1.msra.mxu0 0.0
    %888 = vmatprep.subr.mxu0 0.0
    %889 = vmatpush1.msra.mxu0 0.0
    %890 = vmatprep.subr.mxu0 0.0
    %891 = vmatpush1.msra.mxu0 0.0
    %892 = vmatprep.subr.mxu0 0.0
    %893 = vmatpush1.msra.mxu0 0.0
    %894 = vmatprep.subr.mxu0 0.0
    %895 = vmatpush1.msra.mxu0 0.0
    %896 = vmatprep.subr.mxu0 0.0
    %897 = vmatpush1.msra.mxu0 0.0
    %898 = vmatprep.subr.mxu0 0.0
    %899 = vmatpush1.msra.mxu0 0.0
    %900 = vmatprep.subr.mxu0 0.0
    %901 = vmatpush1.msra.mxu0 0.0
    %902 = vmatprep.subr.mxu0 0.0
    %903 = vmatpush1.msra.mxu0 0.0
    %904 = vmatprep.subr.mxu0 0.0
    %905 = vmatpush1.msra.mxu0 0.0
    %906 = vmatprep.subr.mxu0 0.0
    %907 = vmatpush1.msra.mxu0 0.0
    %908 = vmatprep.subr.mxu0 0.0
    %909 = vmatpush1.msra.mxu0 0.0
    %910 = vmatprep.subr.mxu0 0.0
    %911 = vmatpush1.msra.mxu0 0.0
    %912 = vmatprep.subr.mxu0 0.0
    %913 = vmatpush1.msra.mxu0 0.0
    %914 = vmatprep.subr.mxu0 0.0
    %915 = vmatpush1.msra.mxu0 0.0
    %916 = vmatprep.subr.mxu0 0.0
    %917 = vmatpush1.msra.mxu0 0.0
    %918 = vmatprep.subr.mxu0 0.0
    %919 = vmatpush1.msra.mxu0 0.0
    %920 = vmatprep.subr.mxu0 0.0
    %921 = vmatpush1.msra.mxu0 0.0
    %922 = vmatprep.subr.mxu0 0.0
    %923 = vmatpush1.msra.mxu0 0.0
    %924 = vmatprep.subr.mxu0 0.0
    %925 = vmatpush1.msra.mxu0 0.0
    %926 = vmatprep.subr.mxu0 0.0
    %927 = vmatpush1.msra.mxu0 0.0
    %928 = vmatprep.subr.mxu0 0.0
    %929 = vmatpush1.msra.mxu0 0.0
    %930 = vmatprep.subr.mxu0 0.0
    %931 = vmatpush1.msra.mxu0 0.0
    %932 = vmatprep.mubr.f32.mxu0 0.0
    %933 = vmatmul.mubr.f32.gmra.mrb[0].mxu0 %v866
    %v934 = vpop.f32.mrb[0].mxu0
    %v935 = vadd.f32 0.0, %v934
    %v936 = vpop.f32.mrb[0].mxu0
    %937 = vdwg.mxu0
    %939 = vrot.lane.b32.xlu0 %v935, 16
    %v940 = vpop.permute.xlu0 %939
    %v942 = vsel %vm606, %v768, %v940
    %944 = vrot.lane.b32.xlu0 %v600, 96
    %v945 = vpop.permute.xlu0 %944
    %v946 = vsel %vm606, %v600, 0
    %v948 = vsel %vm606, %v945, 0
    %950 = vmatprep.subr.mxu0 0.0
    %951 = vmatpush1.xpose.msra.mxu0 %v948
    %952 = vmatprep.subr.mxu0 0.0
    %953 = vmatpush1.xpose.msra.mxu0 0.0
    %954 = vmatprep.subr.mxu0 0.0
    %955 = vmatpush1.xpose.msra.mxu0 0.0
    %956 = vmatprep.subr.mxu0 0.0
    %957 = vmatpush1.xpose.msra.mxu0 0.0
    %958 = vmatprep.subr.mxu0 0.0
    %959 = vmatpush1.xpose.msra.mxu0 0.0
    %960 = vmatprep.subr.mxu0 0.0
    %961 = vmatpush1.xpose.msra.mxu0 0.0
    %962 = vmatprep.subr.mxu0 0.0
    %963 = vmatpush1.xpose.msra.mxu0 0.0
    %964 = vmatprep.subr.mxu0 0.0
    %965 = vmatpush1.xpose.msra.mxu0 0.0
    %966 = vmatprep.subr.mxu0 0.0
    %967 = vmatpush1.xpose.msra.mxu0 0.0
    %968 = vmatprep.subr.mxu0 0.0
    %969 = vmatpush1.xpose.msra.mxu0 0.0
    %970 = vmatprep.subr.mxu0 0.0
    %971 = vmatpush1.xpose.msra.mxu0 0.0
    %972 = vmatprep.subr.mxu0 0.0
    %973 = vmatpush1.xpose.msra.mxu0 0.0
    %974 = vmatprep.subr.mxu0 0.0
    %975 = vmatpush1.xpose.msra.mxu0 0.0
    %976 = vmatprep.subr.mxu0 0.0
    %977 = vmatpush1.xpose.msra.mxu0 0.0
    %978 = vmatprep.subr.mxu0 0.0
    %979 = vmatpush1.xpose.msra.mxu0 0.0
    %980 = vmatprep.subr.mxu0 0.0
    %981 = vmatpush1.xpose.msra.mxu0 0.0
    %982 = vmatprep.subr.mxu0 0.0
    %983 = vmatpush1.xpose.msra.mxu0 0.0
    %984 = vmatprep.subr.mxu0 0.0
    %985 = vmatpush1.xpose.msra.mxu0 0.0
    %986 = vmatprep.subr.mxu0 0.0
    %987 = vmatpush1.xpose.msra.mxu0 0.0
    %988 = vmatprep.subr.mxu0 0.0
    %989 = vmatpush1.xpose.msra.mxu0 0.0
    %990 = vmatprep.subr.mxu0 0.0
    %991 = vmatpush1.xpose.msra.mxu0 0.0
    %992 = vmatprep.subr.mxu0 0.0
    %993 = vmatpush1.xpose.msra.mxu0 0.0
    %994 = vmatprep.subr.mxu0 0.0
    %995 = vmatpush1.xpose.msra.mxu0 0.0
    %996 = vmatprep.subr.mxu0 0.0
    %997 = vmatpush1.xpose.msra.mxu0 0.0
    %998 = vmatprep.subr.mxu0 0.0
    %999 = vmatpush1.xpose.msra.mxu0 0.0
    %1000 = vmatprep.subr.mxu0 0.0
    %1001 = vmatpush1.xpose.msra.mxu0 0.0
    %1002 = vmatprep.subr.mxu0 0.0
    %1003 = vmatpush1.xpose.msra.mxu0 0.0
    %1004 = vmatprep.subr.mxu0 0.0
    %1005 = vmatpush1.xpose.msra.mxu0 0.0
    %1006 = vmatprep.subr.mxu0 0.0
    %1007 = vmatpush1.xpose.msra.mxu0 0.0
    %1008 = vmatprep.subr.mxu0 0.0
    %1009 = vmatpush1.xpose.msra.mxu0 0.0
    %1010 = vmatprep.subr.mxu0 0.0
    %1011 = vmatpush1.xpose.msra.mxu0 0.0
    %1012 = vmatprep.subr.mxu0 0.0
    %1013 = vmatpush1.xpose.msra.mxu0 0.0
    %1014 = vmatprep.mubr.f32.mxu0 0.0
    %1015 = vmatmul.mubr.f32.gmra.mrb[0].mxu0 %v946
    %v1016 = vpop.f32.mrb[0].mxu0
    %v1017 = vadd.f32 0.0, %v1016
    %v1018 = vpop.f32.mrb[0].mxu0
    %1019 = vdwg.mxu0
    %v1020 = vmul.f32 %v1017, 0.25
    %v1021 = vsel %vm464, %v1020, -1e+30
    %v1022 = vsel %vm683, %v1021, -inf
    %1023 = vmax.xlane.f32.xlu0 %v1022
    %v1024 = vpop.xlane.xlu0 %1023
    %v1025 = vsub.f32 %v1021, %v1024
    %v1026 = vmul.f32 %v1025, 1.442695
    %v1027 = vpow.pop %v1026
    %v1028 = vsel %vm683, %v1027, 0.0
    %1029 = vadd.xlane.f32.xlu0 %v1028
    %v1030 = vpop.xlane.xlu0 %1029
    %v1031 = vrcp.pop %v1030
    %v1032 = vmul.f32 %v1027, %v1031
    %1033 = vrot.lane.b32.xlu0 %v600, 64
    %v1034 = vpop.permute.xlu0 %1033
    %v1037 = vsel %vm683, %v1032, 0
    %1039 = vmatprep.subr.mxu0 0.0
    %1040 = vmatpush1.msra.mxu0 %v1034
    %1041 = vmatprep.subr.mxu0 0.0
    %1042 = vmatpush1.msra.mxu0 0.0
    %1043 = vmatprep.subr.mxu0 0.0
    %1044 = vmatpush1.msra.mxu0 0.0
    %1045 = vmatprep.subr.mxu0 0.0
    %1046 = vmatpush1.msra.mxu0 0.0
    %1047 = vmatprep.subr.mxu0 0.0
    %1048 = vmatpush1.msra.mxu0 0.0
    %1049 = vmatprep.subr.mxu0 0.0
    %1050 = vmatpush1.msra.mxu0 0.0
    %1051 = vmatprep.subr.mxu0 0.0
    %1052 = vmatpush1.msra.mxu0 0.0
    %1053 = vmatprep.subr.mxu0 0.0
    %1054 = vmatpush1.msra.mxu0 0.0
    %1055 = vmatprep.subr.mxu0 0.0
    %1056 = vmatpush1.msra.mxu0 0.0
    %1057 = vmatprep.subr.mxu0 0.0
    %1058 = vmatpush1.msra.mxu0 0.0
    %1059 = vmatprep.subr.mxu0 0.0
    %1060 = vmatpush1.msra.mxu0 0.0
    %1061 = vmatprep.subr.mxu0 0.0
    %1062 = vmatpush1.msra.mxu0 0.0
    %1063 = vmatprep.subr.mxu0 0.0
    %1064 = vmatpush1.msra.mxu0 0.0
    %1065 = vmatprep.subr.mxu0 0.0
    %1066 = vmatpush1.msra.mxu0 0.0
    %1067 = vmatprep.subr.mxu0 0.0
    %1068 = vmatpush1.msra.mxu0 0.0
    %1069 = vmatprep.subr.mxu0 0.0
    %1070 = vmatpush1.msra.mxu0 0.0
    %1071 = vmatprep.subr.mxu0 0.0
    %1072 = vmatpush1.msra.mxu0 0.0
    %1073 = vmatprep.subr.mxu0 0.0
    %1074 = vmatpush1.msra.mxu0 0.0
    %1075 = vmatprep.subr.mxu0 0.0
    %1076 = vmatpush1.msra.mxu0 0.0
    %1077 = vmatprep.subr.mxu0 0.0
    %1078 = vmatpush1.msra.mxu0 0.0
    %1079 = vmatprep.subr.mxu0 0.0
    %1080 = vmatpush1.msra.mxu0 0.0
    %1081 = vmatprep.subr.mxu0 0.0
    %1082 = vmatpush1.msra.mxu0 0.0
    %1083 = vmatprep.subr.mxu0 0.0
    %1084 = vmatpush1.msra.mxu0 0.0
    %1085 = vmatprep.subr.mxu0 0.0
    %1086 = vmatpush1.msra.mxu0 0.0
    %1087 = vmatprep.subr.mxu0 0.0
    %1088 = vmatpush1.msra.mxu0 0.0
    %1089 = vmatprep.subr.mxu0 0.0
    %1090 = vmatpush1.msra.mxu0 0.0
    %1091 = vmatprep.subr.mxu0 0.0
    %1092 = vmatpush1.msra.mxu0 0.0
    %1093 = vmatprep.subr.mxu0 0.0
    %1094 = vmatpush1.msra.mxu0 0.0
    %1095 = vmatprep.subr.mxu0 0.0
    %1096 = vmatpush1.msra.mxu0 0.0
    %1097 = vmatprep.subr.mxu0 0.0
    %1098 = vmatpush1.msra.mxu0 0.0
    %1099 = vmatprep.subr.mxu0 0.0
    %1100 = vmatpush1.msra.mxu0 0.0
    %1101 = vmatprep.subr.mxu0 0.0
    %1102 = vmatpush1.msra.mxu0 0.0
    %1103 = vmatprep.mubr.f32.mxu0 0.0
    %1104 = vmatmul.mubr.f32.gmra.mrb[0].mxu0 %v1037
    %v1105 = vpop.f32.mrb[0].mxu0
    %v1106 = vadd.f32 0.0, %v1105
    %v1107 = vpop.f32.mrb[0].mxu0
    %1108 = vdwg.mxu0
    %1109 = vrot.lane.b32.xlu0 %v600, 112
    %v1110 = vpop.permute.xlu0 %1109
    %1111 = vrot.lane.b32.xlu0 %v600, 80
    %v1112 = vpop.permute.xlu0 %1111
    %v1113 = vsel %vm606, %v1110, 0
    %v1115 = vsel %vm606, %v1112, 0
    %1117 = vmatprep.subr.mxu0 0.0
    %1118 = vmatpush1.xpose.msra.mxu0 %v1115
    %1119 = vmatprep.subr.mxu0 0.0
    %1120 = vmatpush1.xpose.msra.mxu0 0.0
    %1121 = vmatprep.subr.mxu0 0.0
    %1122 = vmatpush1.xpose.msra.mxu0 0.0
    %1123 = vmatprep.subr.mxu0 0.0
    %1124 = vmatpush1.xpose.msra.mxu0 0.0
    %1125 = vmatprep.subr.mxu0 0.0
    %1126 = vmatpush1.xpose.msra.mxu0 0.0
    %1127 = vmatprep.subr.mxu0 0.0
    %1128 = vmatpush1.xpose.msra.mxu0 0.0
    %1129 = vmatprep.subr.mxu0 0.0
    %1130 = vmatpush1.xpose.msra.mxu0 0.0
    %1131 = vmatprep.subr.mxu0 0.0
    %1132 = vmatpush1.xpose.msra.mxu0 0.0
    %1133 = vmatprep.subr.mxu0 0.0
    %1134 = vmatpush1.xpose.msra.mxu0 0.0
    %1135 = vmatprep.subr.mxu0 0.0
    %1136 = vmatpush1.xpose.msra.mxu0 0.0
    %1137 = vmatprep.subr.mxu0 0.0
    %1138 = vmatpush1.xpose.msra.mxu0 0.0
    %1139 = vmatprep.subr.mxu0 0.0
    %1140 = vmatpush1.xpose.msra.mxu0 0.0
    %1141 = vmatprep.subr.mxu0 0.0
    %1142 = vmatpush1.xpose.msra.mxu0 0.0
    %1143 = vmatprep.subr.mxu0 0.0
    %1144 = vmatpush1.xpose.msra.mxu0 0.0
    %1145 = vmatprep.subr.mxu0 0.0
    %1146 = vmatpush1.xpose.msra.mxu0 0.0
    %1147 = vmatprep.subr.mxu0 0.0
    %1148 = vmatpush1.xpose.msra.mxu0 0.0
    %1149 = vmatprep.subr.mxu0 0.0
    %1150 = vmatpush1.xpose.msra.mxu0 0.0
    %1151 = vmatprep.subr.mxu0 0.0
    %1152 = vmatpush1.xpose.msra.mxu0 0.0
    %1153 = vmatprep.subr.mxu0 0.0
    %1154 = vmatpush1.xpose.msra.mxu0 0.0
    %1155 = vmatprep.subr.mxu0 0.0
    %1156 = vmatpush1.xpose.msra.mxu0 0.0
    %1157 = vmatprep.subr.mxu0 0.0
    %1158 = vmatpush1.xpose.msra.mxu0 0.0
    %1159 = vmatprep.subr.mxu0 0.0
    %1160 = vmatpush1.xpose.msra.mxu0 0.0
    %1161 = vmatprep.subr.mxu0 0.0
    %1162 = vmatpush1.xpose.msra.mxu0 0.0
    %1163 = vmatprep.subr.mxu0 0.0
    %1164 = vmatpush1.xpose.msra.mxu0 0.0
    %1165 = vmatprep.subr.mxu0 0.0
    %1166 = vmatpush1.xpose.msra.mxu0 0.0
    %1167 = vmatprep.subr.mxu0 0.0
    %1168 = vmatpush1.xpose.msra.mxu0 0.0
    %1169 = vmatprep.subr.mxu0 0.0
    %1170 = vmatpush1.xpose.msra.mxu0 0.0
    %1171 = vmatprep.subr.mxu0 0.0
    %1172 = vmatpush1.xpose.msra.mxu0 0.0
    %1173 = vmatprep.subr.mxu0 0.0
    %1174 = vmatpush1.xpose.msra.mxu0 0.0
    %1175 = vmatprep.subr.mxu0 0.0
    %1176 = vmatpush1.xpose.msra.mxu0 0.0
    %1177 = vmatprep.subr.mxu0 0.0
    %1178 = vmatpush1.xpose.msra.mxu0 0.0
    %1179 = vmatprep.subr.mxu0 0.0
    %1180 = vmatpush1.xpose.msra.mxu0 0.0
    %1181 = vmatprep.mubr.f32.mxu0 0.0
    %1182 = vmatmul.mubr.f32.gmra.mrb[0].mxu0 %v1113
    %v1183 = vpop.f32.mrb[0].mxu0
    %v1184 = vadd.f32 0.0, %v1183
    %v1185 = vpop.f32.mrb[0].mxu0
    %1186 = vdwg.mxu0
    %v1187 = vmul.f32 %v1184, 0.25
    %v1188 = vsel %vm464, %v1187, -1e+30
    %v1189 = vsel %vm683, %v1188, -inf
    %1190 = vmax.xlane.f32.xlu0 %v1189
    %v1191 = vpop.xlane.xlu0 %1190
    %v1192 = vsub.f32 %v1188, %v1191
    %v1193 = vmul.f32 %v1192, 1.442695
    %v1194 = vpow.pop %v1193
    %v1195 = vsel %vm683, %v1194, 0.0
    %1196 = vadd.xlane.f32.xlu0 %v1195
    %v1197 = vpop.xlane.xlu0 %1196
    %v1198 = vrcp.pop %v1197
    %v1199 = vmul.f32 %v1194, %v1198
    %1200 = vrot.lane.b32.xlu0 %v600, 48
    %v1201 = vpop.permute.xlu0 %1200
    %v1204 = vsel %vm683, %v1199, 0
    %1206 = vmatprep.subr.mxu0 0.0
    %1207 = vmatpush1.msra.mxu0 %v1201
    %1208 = vmatprep.subr.mxu0 0.0
    %1209 = vmatpush1.msra.mxu0 0.0
    %1210 = vmatprep.subr.mxu0 0.0
    %1211 = vmatpush1.msra.mxu0 0.0
    %1212 = vmatprep.subr.mxu0 0.0
    %1213 = vmatpush1.msra.mxu0 0.0
    %1214 = vmatprep.subr.mxu0 0.0
    %1215 = vmatpush1.msra.mxu0 0.0
    %1216 = vmatprep.subr.mxu0 0.0
    %1217 = vmatpush1.msra.mxu0 0.0
    %1218 = vmatprep.subr.mxu0 0.0
    %1219 = vmatpush1.msra.mxu0 0.0
    %1220 = vmatprep.subr.mxu0 0.0
    %1221 = vmatpush1.msra.mxu0 0.0
    %1222 = vmatprep.subr.mxu0 0.0
    %1223 = vmatpush1.msra.mxu0 0.0
    %1224 = vmatprep.subr.mxu0 0.0
    %1225 = vmatpush1.msra.mxu0 0.0
    %1226 = vmatprep.subr.mxu0 0.0
    %1227 = vmatpush1.msra.mxu0 0.0
    %1228 = vmatprep.subr.mxu0 0.0
    %1229 = vmatpush1.msra.mxu0 0.0
    %1230 = vmatprep.subr.mxu0 0.0
    %1231 = vmatpush1.msra.mxu0 0.0
    %1232 = vmatprep.subr.mxu0 0.0
    %1233 = vmatpush1.msra.mxu0 0.0
    %1234 = vmatprep.subr.mxu0 0.0
    %1235 = vmatpush1.msra.mxu0 0.0
    %1236 = vmatprep.subr.mxu0 0.0
    %1237 = vmatpush1.msra.mxu0 0.0
    %1238 = vmatprep.subr.mxu0 0.0
    %1239 = vmatpush1.msra.mxu0 0.0
    %1240 = vmatprep.subr.mxu0 0.0
    %1241 = vmatpush1.msra.mxu0 0.0
    %1242 = vmatprep.subr.mxu0 0.0
    %1243 = vmatpush1.msra.mxu0 0.0
    %1244 = vmatprep.subr.mxu0 0.0
    %1245 = vmatpush1.msra.mxu0 0.0
    %1246 = vmatprep.subr.mxu0 0.0
    %1247 = vmatpush1.msra.mxu0 0.0
    %1248 = vmatprep.subr.mxu0 0.0
    %1249 = vmatpush1.msra.mxu0 0.0
    %1250 = vmatprep.subr.mxu0 0.0
    %1251 = vmatpush1.msra.mxu0 0.0
    %1252 = vmatprep.subr.mxu0 0.0
    %1253 = vmatpush1.msra.mxu0 0.0
    %1254 = vmatprep.subr.mxu0 0.0
    %1255 = vmatpush1.msra.mxu0 0.0
    %1256 = vmatprep.subr.mxu0 0.0
    %1257 = vmatpush1.msra.mxu0 0.0
    %1258 = vmatprep.subr.mxu0 0.0
    %1259 = vmatpush1.msra.mxu0 0.0
    %1260 = vmatprep.subr.mxu0 0.0
    %1261 = vmatpush1.msra.mxu0 0.0
    %1262 = vmatprep.subr.mxu0 0.0
    %1263 = vmatpush1.msra.mxu0 0.0
    %1264 = vmatprep.subr.mxu0 0.0
    %1265 = vmatpush1.msra.mxu0 0.0
    %1266 = vmatprep.subr.mxu0 0.0
    %1267 = vmatpush1.msra.mxu0 0.0
    %1268 = vmatprep.subr.mxu0 0.0
    %1269 = vmatpush1.msra.mxu0 0.0
    %1270 = vmatprep.mubr.f32.mxu0 0.0
    %1271 = vmatmul.mubr.f32.gmra.mrb[0].mxu0 %v1204
    %v1272 = vpop.f32.mrb[0].mxu0
    %v1273 = vadd.f32 0.0, %v1272
    %v1274 = vpop.f32.mrb[0].mxu0
    %1275 = vdwg.mxu0
    %1277 = vrot.lane.b32.xlu0 %v1273, 16
    %v1278 = vpop.permute.xlu0 %1277
    %v1280 = vsel %vm606, %v1106, %v1278
    %v1281 = vld [vmem:[%s9] sm:$0xff]
    %v1282 = vld [vmem:[%s9 + $0x8] sm:$0xff]
    %v1283 = vld [vmem:[%s9 + $0x10] sm:$0xff]
    %v1284 = vld [vmem:[%s9 + $0x18] sm:$0xff]
    %v1285 = vld [vmem:[%s10] sm:$0x1]
    %v1287 = vlaneseq
    %v1288 = vshrl.u32 %v1287, 7
    %v1289 = vsub.s32 0, %v1288
    %v1290 = vrot.slane %v1285, %v1289
    %v1293 = vsel %vm467, %v942, 0
    %v1296 = vsel %vm467, %v1280, 0
    %1298 = vmatprep.subr.mxu0 0.0
    %1299 = vmatpush1.msra.mxu0 %v1281
    %1300 = vmatprep.subr.mxu0 0.0
    %1301 = vmatpush1.msra.mxu0 %v1282
    %1302 = vmatprep.subr.mxu0 0.0
    %1303 = vmatpush1.msra.mxu0 %v1283
    %1304 = vmatprep.subr.mxu0 0.0
    %1305 = vmatpush1.msra.mxu0 %v1284
    %1306 = vmatprep.subr.mxu0 0.0
    %1307 = vmatpush1.msra.mxu0 0.0
    %1308 = vmatprep.subr.mxu0 0.0
    %1309 = vmatpush1.msra.mxu0 0.0
    %1310 = vmatprep.subr.mxu0 0.0
    %1311 = vmatpush1.msra.mxu0 0.0
    %1312 = vmatprep.subr.mxu0 0.0
    %1313 = vmatpush1.msra.mxu0 0.0
    %1314 = vmatprep.subr.mxu0 0.0
    %1315 = vmatpush1.msra.mxu0 0.0
    %1316 = vmatprep.subr.mxu0 0.0
    %1317 = vmatpush1.msra.mxu0 0.0
    %1318 = vmatprep.subr.mxu0 0.0
    %1319 = vmatpush1.msra.mxu0 0.0
    %1320 = vmatprep.subr.mxu0 0.0
    %1321 = vmatpush1.msra.mxu0 0.0
    %1322 = vmatprep.subr.mxu0 0.0
    %1323 = vmatpush1.msra.mxu0 0.0
    %1324 = vmatprep.subr.mxu0 0.0
    %1325 = vmatpush1.msra.mxu0 0.0
    %1326 = vmatprep.subr.mxu0 0.0
    %1327 = vmatpush1.msra.mxu0 0.0
    %1328 = vmatprep.subr.mxu0 0.0
    %1329 = vmatpush1.msra.mxu0 0.0
    %1330 = vmatprep.subr.mxu0 0.0
    %1331 = vmatpush1.msra.mxu0 0.0
    %1332 = vmatprep.subr.mxu0 0.0
    %1333 = vmatpush1.msra.mxu0 0.0
    %1334 = vmatprep.subr.mxu0 0.0
    %1335 = vmatpush1.msra.mxu0 0.0
    %1336 = vmatprep.subr.mxu0 0.0
    %1337 = vmatpush1.msra.mxu0 0.0
    %1338 = vmatprep.subr.mxu0 0.0
    %1339 = vmatpush1.msra.mxu0 0.0
    %1340 = vmatprep.subr.mxu0 0.0
    %1341 = vmatpush1.msra.mxu0 0.0
    %1342 = vmatprep.subr.mxu0 0.0
    %1343 = vmatpush1.msra.mxu0 0.0
    %1344 = vmatprep.subr.mxu0 0.0
    %1345 = vmatpush1.msra.mxu0 0.0
    %1346 = vmatprep.subr.mxu0 0.0
    %1347 = vmatpush1.msra.mxu0 0.0
    %1348 = vmatprep.subr.mxu0 0.0
    %1349 = vmatpush1.msra.mxu0 0.0
    %1350 = vmatprep.subr.mxu0 0.0
    %1351 = vmatpush1.msra.mxu0 0.0
    %1352 = vmatprep.subr.mxu0 0.0
    %1353 = vmatpush1.msra.mxu0 0.0
    %1354 = vmatprep.subr.mxu0 0.0
    %1355 = vmatpush1.msra.mxu0 0.0
    %1356 = vmatprep.subr.mxu0 0.0
    %1357 = vmatpush1.msra.mxu0 0.0
    %1358 = vmatprep.subr.mxu0 0.0
    %1359 = vmatpush1.msra.mxu0 0.0
    %1360 = vmatprep.subr.mxu0 0.0
    %1361 = vmatpush1.msra.mxu0 0.0
    %1362 = vmatprep.mubr.f32.mxu0 0.0
    %1363 = vmatmul.mubr.f32.gmra.mrb[0].mxu0 %v1293
    %v1364 = vpop.f32.mrb[0].mxu0
    %v1365 = vadd.f32 %v1290, %v1364
    %v1366 = vpop.f32.mrb[0].mxu0
    %1367 = vmatprep.mubr.f32.mxu0 0.0
    %1368 = vmatmul.mubr.f32.gmra.mrb[0].mxu0 %v1296
    %v1369 = vpop.f32.mrb[0].mxu0
    %v1370 = vadd.f32 %v1290, %v1369
    %v1371 = vpop.f32.mrb[0].mxu0
    %1372 = vdwg.mxu0
    %v1373 = vadd.f32 %v460, %v1365
    %v1374 = vadd.f32 %v461, %v1370
    %v1375 = vld [vmem:[%s11] sm:$0x1]
    %v1376 = vld [vmem:[%s12] sm:$0x1]
    %v1377 = vsel %vm467, %v1373, 0.0
    %1378 = vadd.xlane.f32.xlu0 %v1377
    %v1379 = vpop.xlane.xlu0 %1378
    %v1380 = vsel %vm467, %v1374, 0.0
    %1381 = vadd.xlane.f32.xlu0 %v1380
    %v1382 = vpop.xlane.xlu0 %1381
    %v1383 = vmul.f32 %v1379, %v474
    %v1384 = vmul.f32 %v1382, %v474
    %v1385 = vsub.f32 %v1373, %v1383
    %v1386 = vsub.f32 %v1374, %v1384
    %v1387 = vmul.f32 %v1385, %v1385
    %v1388 = vmul.f32 %v1386, %v1386
    %v1389 = vsel %vm467, %v1387, 0.0
    %1390 = vadd.xlane.f32.xlu0 %v1389
    %v1391 = vpop.xlane.xlu0 %1390
    %v1392 = vsel %vm467, %v1388, 0.0
    %1393 = vadd.xlane.f32.xlu0 %v1392
    %v1394 = vpop.xlane.xlu0 %1393
    %v1395 = vmul.f32 %v1391, %v474
    %v1396 = vmul.f32 %v1394, %v474
    %v1397 = vadd.f32 %v1395, 1e-12
    %v1398 = vadd.f32 %v1396, 1e-12
    %v1399 = vrsqrt.pop %v1397
    %v1400 = vrsqrt.pop %v1398
    %v1401 = vmul.f32 %v1385, %v1399
    %v1402 = vmul.f32 %v1386, %v1400
    %v1404 = vlaneseq
    %v1405 = vshrl.u32 %v1404, 7
    %v1406 = vsub.s32 0, %v1405
    %v1407 = vrot.slane %v1375, %v1406
    %v1409 = vmul.f32 %v1401, %v1407
    %v1410 = vmul.f32 %v1402, %v1407
    %v1412 = vlaneseq
    %v1413 = vshrl.u32 %v1412, 7
    %v1414 = vsub.s32 0, %v1413
    %v1415 = vrot.slane %v1376, %v1414
    %v1417 = vadd.f32 %v1409, %v1415
    %v1418 = vadd.f32 %v1410, %v1415
    %v1419 = vld [vmem:[%s13] sm:$0xff]
    %v1420 = vld [vmem:[%s13 + $0x8] sm:$0xff]
    %v1421 = vld [vmem:[%s13 + $0x10] sm:$0xff]
    %v1422 = vld [vmem:[%s13 + $0x18] sm:$0xff]
    %v1423 = vld [vmem:[%s14] sm:$0x1]
    %v1425 = vlaneseq
    %v1426 = vshrl.u32 %v1425, 7
    %v1427 = vsub.s32 0, %v1426
    %v1428 = vrot.slane %v1423, %v1427
    %v1431 = vsel %vm467, %v1417, 0
    %v1434 = vsel %vm467, %v1418, 0
    %1436 = vmatprep.subr.mxu0 0.0
    %1437 = vmatpush1.msra.mxu0 %v1419
    %1438 = vmatprep.subr.mxu0 0.0
    %1439 = vmatpush1.msra.mxu0 %v1420
    %1440 = vmatprep.subr.mxu0 0.0
    %1441 = vmatpush1.msra.mxu0 %v1421
    %1442 = vmatprep.subr.mxu0 0.0
    %1443 = vmatpush1.msra.mxu0 %v1422
    %1444 = vmatprep.subr.mxu0 0.0
    %1445 = vmatpush1.msra.mxu0 0.0
    %1446 = vmatprep.subr.mxu0 0.0
    %1447 = vmatpush1.msra.mxu0 0.0
    %1448 = vmatprep.subr.mxu0 0.0
    %1449 = vmatpush1.msra.mxu0 0.0
    %1450 = vmatprep.subr.mxu0 0.0
    %1451 = vmatpush1.msra.mxu0 0.0
    %1452 = vmatprep.subr.mxu0 0.0
    %1453 = vmatpush1.msra.mxu0 0.0
    %1454 = vmatprep.subr.mxu0 0.0
    %1455 = vmatpush1.msra.mxu0 0.0
    %1456 = vmatprep.subr.mxu0 0.0
    %1457 = vmatpush1.msra.mxu0 0.0
    %1458 = vmatprep.subr.mxu0 0.0
    %1459 = vmatpush1.msra.mxu0 0.0
    %1460 = vmatprep.subr.mxu0 0.0
    %1461 = vmatpush1.msra.mxu0 0.0
    %1462 = vmatprep.subr.mxu0 0.0
    %1463 = vmatpush1.msra.mxu0 0.0
    %1464 = vmatprep.subr.mxu0 0.0
    %1465 = vmatpush1.msra.mxu0 0.0
    %1466 = vmatprep.subr.mxu0 0.0
    %1467 = vmatpush1.msra.mxu0 0.0
    %1468 = vmatprep.subr.mxu0 0.0
    %1469 = vmatpush1.msra.mxu0 0.0
    %1470 = vmatprep.subr.mxu0 0.0
    %1471 = vmatpush1.msra.mxu0 0.0
    %1472 = vmatprep.subr.mxu0 0.0
    %1473 = vmatpush1.msra.mxu0 0.0
    %1474 = vmatprep.subr.mxu0 0.0
    %1475 = vmatpush1.msra.mxu0 0.0
    %1476 = vmatprep.subr.mxu0 0.0
    %1477 = vmatpush1.msra.mxu0 0.0
    %1478 = vmatprep.subr.mxu0 0.0
    %1479 = vmatpush1.msra.mxu0 0.0
    %1480 = vmatprep.subr.mxu0 0.0
    %1481 = vmatpush1.msra.mxu0 0.0
    %1482 = vmatprep.subr.mxu0 0.0
    %1483 = vmatpush1.msra.mxu0 0.0
    %1484 = vmatprep.subr.mxu0 0.0
    %1485 = vmatpush1.msra.mxu0 0.0
    %1486 = vmatprep.subr.mxu0 0.0
    %1487 = vmatpush1.msra.mxu0 0.0
    %1488 = vmatprep.subr.mxu0 0.0
    %1489 = vmatpush1.msra.mxu0 0.0
    %1490 = vmatprep.subr.mxu0 0.0
    %1491 = vmatpush1.msra.mxu0 0.0
    %1492 = vmatprep.subr.mxu0 0.0
    %1493 = vmatpush1.msra.mxu0 0.0
    %1494 = vmatprep.subr.mxu0 0.0
    %1495 = vmatpush1.msra.mxu0 0.0
    %1496 = vmatprep.subr.mxu0 0.0
    %1497 = vmatpush1.msra.mxu0 0.0
    %1498 = vmatprep.subr.mxu0 0.0
    %1499 = vmatpush1.msra.mxu0 0.0
    %1500 = vmatprep.mubr.f32.mxu0 0.0
    %1501 = vmatmul.mubr.f32.gmra.mrb[0].mxu0 %v1431
    %v1502 = vpop.f32.mrb[0].mxu0
    %v1503 = vadd.f32 %v1428, %v1502
    %v1504 = vpop.f32.mrb[0].mxu0
    %1505 = vmatprep.mubr.f32.mxu0 0.0
    %1506 = vmatmul.mubr.f32.gmra.mrb[0].mxu0 %v1434
    %v1507 = vpop.f32.mrb[0].mxu0
    %v1508 = vadd.f32 %v1428, %v1507
    %v1509 = vpop.f32.mrb[0].mxu0
    %1510 = vdwg.mxu0
    %v1511 = vmul.f32 %v1503, 0.5
    %v1512 = vmul.f32 %v1508, 0.5
    %v1513 = vmul.f32 %v1503, 0.044715
    %v1514 = vmul.f32 %v1508, 0.044715
    %v1515 = vmul.f32 %v1513, %v1503
    %v1516 = vmul.f32 %v1514, %v1508
    %v1517 = vmul.f32 %v1515, %v1503
    %v1518 = vmul.f32 %v1516, %v1508
    %v1519 = vadd.f32 %v1503, %v1517
    %v1520 = vadd.f32 %v1508, %v1518
    %v1521 = vmul.f32 %v1519, 0.7978846
    %v1522 = vmul.f32 %v1520, 0.7978846
    %v1523 = vtanh.pop %v1521
    %v1524 = vtanh.pop %v1522
    %v1525 = vadd.f32 %v1523, 1.0
    %v1526 = vadd.f32 %v1524, 1.0
    %v1527 = vmul.f32 %v1511, %v1525
    %v1528 = vmul.f32 %v1512, %v1526
    %v1529 = vld [vmem:[%s15] sm:$0xff]
    %v1530 = vld [vmem:[%s15 + $0x8] sm:$0xff]
    %v1531 = vld [vmem:[%s15 + $0x10] sm:$0xff]
    %v1532 = vld [vmem:[%s15 + $0x18] sm:$0xff]
    %v1533 = vld [vmem:[%s15 + $0x20] sm:$0xff]
    %v1534 = vld [vmem:[%s15 + $0x28] sm:$0xff]
    %v1535 = vld [vmem:[%s15 + $0x30] sm:$0xff]
    %v1536 = vld [vmem:[%s15 + $0x38] sm:$0xff]
    %v1537 = vld [vmem:[%s16] sm:$0x1]
    %v1539 = vlaneseq
    %v1540 = vshrl.u32 %v1539, 7
    %v1541 = vsub.s32 0, %v1540
    %v1542 = vrot.slane %v1537, %v1541
    %vm1544 = vcmask 523264
    %v1546 = vsel %vm1544, %v1527, 0
    %v1549 = vsel %vm1544, %v1528, 0
    %1551 = vmatprep.subr.mxu0 0.0
    %1552 = vmatpush1.msra.mxu0 %v1529
    %1553 = vmatprep.subr.mxu0 0.0
    %1554 = vmatpush1.msra.mxu0 %v1530
    %1555 = vmatprep.subr.mxu0 0.0
    %1556 = vmatpush1.msra.mxu0 %v1531
    %1557 = vmatprep.subr.mxu0 0.0
    %1558 = vmatpush1.msra.mxu0 %v1532
    %1559 = vmatprep.subr.mxu0 0.0
    %1560 = vmatpush1.msra.mxu0 %v1533
    %1561 = vmatprep.subr.mxu0 0.0
    %1562 = vmatpush1.msra.mxu0 %v1534
    %1563 = vmatprep.subr.mxu0 0.0
    %1564 = vmatpush1.msra.mxu0 %v1535
    %1565 = vmatprep.subr.mxu0 0.0
    %1566 = vmatpush1.msra.mxu0 %v1536
    %1567 = vmatprep.subr.mxu0 0.0
    %1568 = vmatpush1.msra.mxu0 0.0
    %1569 = vmatprep.subr.mxu0 0.0
    %1570 = vmatpush1.msra.mxu0 0.0
    %1571 = vmatprep.subr.mxu0 0.0
    %1572 = vmatpush1.msra.mxu0 0.0
    %1573 = vmatprep.subr.mxu0 0.0
    %1574 = vmatpush1.msra.mxu0 0.0
    %1575 = vmatprep.subr.mxu0 0.0
    %1576 = vmatpush1.msra.mxu0 0.0
    %1577 = vmatprep.subr.mxu0 0.0
    %1578 = vmatpush1.msra.mxu0 0.0
    %1579 = vmatprep.subr.mxu0 0.0
    %1580 = vmatpush1.msra.mxu0 0.0
    %1581 = vmatprep.subr.mxu0 0.0
    %1582 = vmatpush1.msra.mxu0 0.0
    %1583 = vmatprep.subr.mxu0 0.0
    %1584 = vmatpush1.msra.mxu0 0.0
    %1585 = vmatprep.subr.mxu0 0.0
    %1586 = vmatpush1.msra.mxu0 0.0
    %1587 = vmatprep.subr.mxu0 0.0
    %1588 = vmatpush1.msra.mxu0 0.0
    %1589 = vmatprep.subr.mxu0 0.0
    %1590 = vmatpush1.msra.mxu0 0.0
    %1591 = vmatprep.subr.mxu0 0.0
    %1592 = vmatpush1.msra.mxu0 0.0
    %1593 = vmatprep.subr.mxu0 0.0
    %1594 = vmatpush1.msra.mxu0 0.0
    %1595 = vmatprep.subr.mxu0 0.0
    %1596 = vmatpush1.msra.mxu0 0.0
    %1597 = vmatprep.subr.mxu0 0.0
    %1598 = vmatpush1.msra.mxu0 0.0
    %1599 = vmatprep.subr.mxu0 0.0
    %1600 = vmatpush1.msra.mxu0 0.0
    %1601 = vmatprep.subr.mxu0 0.0
    %1602 = vmatpush1.msra.mxu0 0.0
    %1603 = vmatprep.subr.mxu0 0.0
    %1604 = vmatpush1.msra.mxu0 0.0
    %1605 = vmatprep.subr.mxu0 0.0
    %1606 = vmatpush1.msra.mxu0 0.0
    %1607 = vmatprep.subr.mxu0 0.0
    %1608 = vmatpush1.msra.mxu0 0.0
    %1609 = vmatprep.subr.mxu0 0.0
    %1610 = vmatpush1.msra.mxu0 0.0
    %1611 = vmatprep.subr.mxu0 0.0
    %1612 = vmatpush1.msra.mxu0 0.0
    %1613 = vmatprep.subr.mxu0 0.0
    %1614 = vmatpush1.msra.mxu0 0.0
    %1615 = vmatprep.mubr.f32.mxu0 0.0
    %1616 = vmatmul.mubr.f32.gmra.mrb[0].mxu0 %v1546
    %v1617 = vpop.f32.mrb[0].mxu0
    %v1618 = vadd.f32 %v1542, %v1617
    %v1619 = vpop.f32.mrb[0].mxu0
    %1620 = vmatprep.mubr.f32.mxu0 0.0
    %1621 = vmatmul.mubr.f32.gmra.mrb[0].mxu0 %v1549
    %v1622 = vpop.f32.mrb[0].mxu0
    %v1623 = vadd.f32 %v1542, %v1622
    %v1624 = vpop.f32.mrb[0].mxu0
    %1625 = vdwg.mxu0
    %v1626 = vadd.f32 %v1373, %v1618
    %v1627 = vadd.f32 %v1374, %v1623
    %s1628 = scalar_lea.vmem %s5, 1
    %v1629 = vld [vmem:[%s1628] sm:$0x1]
    %s1630 = scalar_lea.vmem %s6, 1
    %v1631 = vld [vmem:[%s1630] sm:$0x1]
    %v1632 = vsel %vm467, %v1626, 0.0
    %1633 = vadd.xlane.f32.xlu0 %v1632
    %v1634 = vpop.xlane.xlu0 %1633
    %v1635 = vsel %vm467, %v1627, 0.0
    %1636 = vadd.xlane.f32.xlu0 %v1635
    %v1637 = vpop.xlane.xlu0 %1636
    %v1638 = vmul.f32 %v1634, %v474
    %v1639 = vmul.f32 %v1637, %v474
    %v1640 = vsub.f32 %v1626, %v1638
    %v1641 = vsub.f32 %v1627, %v1639
    %v1642 = vmul.f32 %v1640, %v1640
    %v1643 = vmul.f32 %v1641, %v1641
    %v1644 = vsel %vm467, %v1642, 0.0
    %1645 = vadd.xlane.f32.xlu0 %v1644
    %v1646 = vpop.xlane.xlu0 %1645
    %v1647 = vsel %vm467, %v1643, 0.0
    %1648 = vadd.xlane.f32.xlu0 %v1647
    %v1649 = vpop.xlane.xlu0 %1648
    %v1650 = vmul.f32 %v1646, %v474
    %v1651 = vmul.f32 %v1649, %v474
    %v1652 = vadd.f32 %v1650, 1e-12
    %v1653 = vadd.f32 %v1651, 1e-12
    %v1654 = vrsqrt.pop %v1652
    %v1655 = vrsqrt.pop %v1653
    %v1656 = vmul.f32 %v1640, %v1654
    %v1657 = vmul.f32 %v1641, %v1655
    %v1659 = vlaneseq
    %v1660 = vshrl.u32 %v1659, 7
    %v1661 = vsub.s32 0, %v1660
    %v1662 = vrot.slane %v1629, %v1661
    %v1664 = vmul.f32 %v1656, %v1662
    %v1665 = vmul.f32 %v1657, %v1662
    %v1667 = vlaneseq
    %v1668 = vshrl.u32 %v1667, 7
    %v1669 = vsub.s32 0, %v1668
    %v1670 = vrot.slane %v1631, %v1669
    %v1672 = vadd.f32 %v1664, %v1670
    %v1673 = vadd.f32 %v1665, %v1670
    %s1674 = scalar_lea.vmem %s7, 32
    %v1675 = vld [vmem:[%s1674] sm:$0xff]
    %v1676 = vld [vmem:[%s1674 + $0x8] sm:$0xff]
    %v1677 = vld [vmem:[%s1674 + $0x10] sm:$0xff]
    %v1678 = vld [vmem:[%s1674 + $0x18] sm:$0xff]
    %s1679 = scalar_lea.vmem %s8, 1
    %v1680 = vld [vmem:[%s1679] sm:$0x1]
    %v1682 = vlaneseq
    %v1683 = vshrl.u32 %v1682, 7
    %v1684 = vsub.s32 0, %v1683
    %v1685 = vrot.slane %v1680, %v1684
    %v1688 = vsel %vm467, %v1672, 0
    %v1691 = vsel %vm467, %v1673, 0
    %1693 = vmatprep.subr.mxu0 0.0
    %1694 = vmatpush1.msra.mxu0 %v1675
    %1695 = vmatprep.subr.mxu0 0.0
    %1696 = vmatpush1.msra.mxu0 %v1676
    %1697 = vmatprep.subr.mxu0 0.0
    %1698 = vmatpush1.msra.mxu0 %v1677
    %1699 = vmatprep.subr.mxu0 0.0
    %1700 = vmatpush1.msra.mxu0 %v1678
    %1701 = vmatprep.subr.mxu0 0.0
    %1702 = vmatpush1.msra.mxu0 0.0
    %1703 = vmatprep.subr.mxu0 0.0
    %1704 = vmatpush1.msra.mxu0 0.0
    %1705 = vmatprep.subr.mxu0 0.0
    %1706 = vmatpush1.msra.mxu0 0.0
    %1707 = vmatprep.subr.mxu0 0.0
    %1708 = vmatpush1.msra.mxu0 0.0
    %1709 = vmatprep.subr.mxu0 0.0
    %1710 = vmatpush1.msra.mxu0 0.0
    %1711 = vmatprep.subr.mxu0 0.0
    %1712 = vmatpush1.msra.mxu0 0.0
    %1713 = vmatprep.subr.mxu0 0.0
    %1714 = vmatpush1.msra.mxu0 0.0
    %1715 = vmatprep.subr.mxu0 0.0
    %1716 = vmatpush1.msra.mxu0 0.0
    %1717 = vmatprep.subr.mxu0 0.0
    %1718 = vmatpush1.msra.mxu0 0.0
    %1719 = vmatprep.subr.mxu0 0.0
    %1720 = vmatpush1.msra.mxu0 0.0
    %1721 = vmatprep.subr.mxu0 0.0
    %1722 = vmatpush1.msra.mxu0 0.0
    %1723 = vmatprep.subr.mxu0 0.0
    %1724 = vmatpush1.msra.mxu0 0.0
    %1725 = vmatprep.subr.mxu0 0.0
    %1726 = vmatpush1.msra.mxu0 0.0
    %1727 = vmatprep.subr.mxu0 0.0
    %1728 = vmatpush1.msra.mxu0 0.0
    %1729 = vmatprep.subr.mxu0 0.0
    %1730 = vmatpush1.msra.mxu0 0.0
    %1731 = vmatprep.subr.mxu0 0.0
    %1732 = vmatpush1.msra.mxu0 0.0
    %1733 = vmatprep.subr.mxu0 0.0
    %1734 = vmatpush1.msra.mxu0 0.0
    %1735 = vmatprep.subr.mxu0 0.0
    %1736 = vmatpush1.msra.mxu0 0.0
    %1737 = vmatprep.subr.mxu0 0.0
    %1738 = vmatpush1.msra.mxu0 0.0
    %1739 = vmatprep.subr.mxu0 0.0
    %1740 = vmatpush1.msra.mxu0 0.0
    %1741 = vmatprep.subr.mxu0 0.0
    %1742 = vmatpush1.msra.mxu0 0.0
    %1743 = vmatprep.subr.mxu0 0.0
    %1744 = vmatpush1.msra.mxu0 0.0
    %1745 = vmatprep.subr.mxu0 0.0
    %1746 = vmatpush1.msra.mxu0 0.0
    %1747 = vmatprep.subr.mxu0 0.0
    %1748 = vmatpush1.msra.mxu0 0.0
    %1749 = vmatprep.subr.mxu0 0.0
    %1750 = vmatpush1.msra.mxu0 0.0
    %1751 = vmatprep.subr.mxu0 0.0
    %1752 = vmatpush1.msra.mxu0 0.0
    %1753 = vmatprep.subr.mxu0 0.0
    %1754 = vmatpush1.msra.mxu0 0.0
    %1755 = vmatprep.subr.mxu0 0.0
    %1756 = vmatpush1.msra.mxu0 0.0
    %1757 = vmatprep.mubr.f32.mxu0 0.0
    %1758 = vmatmul.mubr.f32.gmra.mrb[0].mxu0 %v1688
    %v1759 = vpop.f32.mrb[0].mxu0
    %v1760 = vadd.f32 %v1685, %v1759
    %v1761 = vpop.f32.mrb[0].mxu0
    %1762 = vmatprep.mubr.f32.mxu0 0.0
    %1763 = vmatmul.mubr.f32.gmra.mrb[0].mxu0 %v1691
    %v1764 = vpop.f32.mrb[0].mxu0
    %v1765 = vadd.f32 %v1685, %v1764
    %v1766 = vpop.f32.mrb[0].mxu0
    %1767 = vdwg.mxu0
    %1769 = vrot.lane.b32.xlu0 %v1760, 96
    %v1770 = vpop.permute.xlu0 %1769
    %v1771 = vsel %vm606, %v1760, 0
    %v1773 = vsel %vm606, %v1770, 0
    %1775 = vmatprep.subr.mxu0 0.0
    %1776 = vmatpush1.xpose.msra.mxu0 %v1773
    %1777 = vmatprep.subr.mxu0 0.0
    %1778 = vmatpush1.xpose.msra.mxu0 0.0
    %1779 = vmatprep.subr.mxu0 0.0
    %1780 = vmatpush1.xpose.msra.mxu0 0.0
    %1781 = vmatprep.subr.mxu0 0.0
    %1782 = vmatpush1.xpose.msra.mxu0 0.0
    %1783 = vmatprep.subr.mxu0 0.0
    %1784 = vmatpush1.xpose.msra.mxu0 0.0
    %1785 = vmatprep.subr.mxu0 0.0
    %1786 = vmatpush1.xpose.msra.mxu0 0.0
    %1787 = vmatprep.subr.mxu0 0.0
    %1788 = vmatpush1.xpose.msra.mxu0 0.0
    %1789 = vmatprep.subr.mxu0 0.0
    %1790 = vmatpush1.xpose.msra.mxu0 0.0
    %1791 = vmatprep.subr.mxu0 0.0
    %1792 = vmatpush1.xpose.msra.mxu0 0.0
    %1793 = vmatprep.subr.mxu0 0.0
    %1794 = vmatpush1.xpose.msra.mxu0 0.0
    %1795 = vmatprep.subr.mxu0 0.0
    %1796 = vmatpush1.xpose.msra.mxu0 0.0
    %1797 = vmatprep.subr.mxu0 0.0
    %1798 = vmatpush1.xpose.msra.mxu0 0.0
    %1799 = vmatprep.subr.mxu0 0.0
    %1800 = vmatpush1.xpose.msra.mxu0 0.0
    %1801 = vmatprep.subr.mxu0 0.0
    %1802 = vmatpush1.xpose.msra.mxu0 0.0
    %1803 = vmatprep.subr.mxu0 0.0
    %1804 = vmatpush1.xpose.msra.mxu0 0.0
    %1805 = vmatprep.subr.mxu0 0.0
    %1806 = vmatpush1.xpose.msra.mxu0 0.0
    %1807 = vmatprep.subr.mxu0 0.0
    %1808 = vmatpush1.xpose.msra.mxu0 0.0
    %1809 = vmatprep.subr.mxu0 0.0
    %1810 = vmatpush1.xpose.msra.mxu0 0.0
    %1811 = vmatprep.subr.mxu0 0.0
    %1812 = vmatpush1.xpose.msra.mxu0 0.0
    %1813 = vmatprep.subr.mxu0 0.0
    %1814 = vmatpush1.xpose.msra.mxu0 0.0
    %1815 = vmatprep.subr.mxu0 0.0
    %1816 = vmatpush1.xpose.msra.mxu0 0.0
    %1817 = vmatprep.subr.mxu0 0.0
    %1818 = vmatpush1.xpose.msra.mxu0 0.0
    %1819 = vmatprep.subr.mxu0 0.0
    %1820 = vmatpush1.xpose.msra.mxu0 0.0
    %1821 = vmatprep.subr.mxu0 0.0
    %1822 = vmatpush1.xpose.msra.mxu0 0.0
    %1823 = vmatprep.subr.mxu0 0.0
    %1824 = vmatpush1.xpose.msra.mxu0 0.0
    %1825 = vmatprep.subr.mxu0 0.0
    %1826 = vmatpush1.xpose.msra.mxu0 0.0
    %1827 = vmatprep.subr.mxu0 0.0
    %1828 = vmatpush1.xpose.msra.mxu0 0.0
    %1829 = vmatprep.subr.mxu0 0.0
    %1830 = vmatpush1.xpose.msra.mxu0 0.0
    %1831 = vmatprep.subr.mxu0 0.0
    %1832 = vmatpush1.xpose.msra.mxu0 0.0
    %1833 = vmatprep.subr.mxu0 0.0
    %1834 = vmatpush1.xpose.msra.mxu0 0.0
    %1835 = vmatprep.subr.mxu0 0.0
    %1836 = vmatpush1.xpose.msra.mxu0 0.0
    %1837 = vmatprep.subr.mxu0 0.0
    %1838 = vmatpush1.xpose.msra.mxu0 0.0
    %1839 = vmatprep.mubr.f32.mxu0 0.0
    %1840 = vmatmul.mubr.f32.gmra.mrb[0].mxu0 %v1771
    %v1841 = vpop.f32.mrb[0].mxu0
    %v1842 = vadd.f32 0.0, %v1841
    %v1843 = vpop.f32.mrb[0].mxu0
    %1844 = vdwg.mxu0
    %v1845 = vmul.f32 %v1842, 0.25
    %v1846 = vsel %vm464, %v1845, -1e+30
    %v1847 = vsel %vm683, %v1846, -inf
    %1848 = vmax.xlane.f32.xlu0 %v1847
    %v1849 = vpop.xlane.xlu0 %1848
    %v1850 = vsub.f32 %v1846, %v1849
    %v1851 = vmul.f32 %v1850, 1.442695
    %v1852 = vpow.pop %v1851
    %v1853 = vsel %vm683, %v1852, 0.0
    %1854 = vadd.xlane.f32.xlu0 %v1853
    %v1855 = vpop.xlane.xlu0 %1854
    %v1856 = vrcp.pop %v1855
    %v1857 = vmul.f32 %v1852, %v1856
    %1858 = vrot.lane.b32.xlu0 %v1760, 64
    %v1859 = vpop.permute.xlu0 %1858
    %v1862 = vsel %vm683, %v1857, 0
    %1864 = vmatprep.subr.mxu0 0.0
    %1865 = vmatpush1.msra.mxu0 %v1859
    %1866 = vmatprep.subr.mxu0 0.0
    %1867 = vmatpush1.msra.mxu0 0.0
    %1868 = vmatprep.subr.mxu0 0.0
    %1869 = vmatpush1.msra.mxu0 0.0
    %1870 = vmatprep.subr.mxu0 0.0
    %1871 = vmatpush1.msra.mxu0 0.0
    %1872 = vmatprep.subr.mxu0 0.0
    %1873 = vmatpush1.msra.mxu0 0.0
    %1874 = vmatprep.subr.mxu0 0.0
    %1875 = vmatpush1.msra.mxu0 0.0
    %1876 = vmatprep.subr.mxu0 0.0
    %1877 = vmatpush1.msra.mxu0 0.0
    %1878 = vmatprep.subr.mxu0 0.0
    %1879 = vmatpush1.msra.mxu0 0.0
    %1880 = vmatprep.subr.mxu0 0.0
    %1881 = vmatpush1.msra.mxu0 0.0
    %1882 = vmatprep.subr.mxu0 0.0
    %1883 = vmatpush1.msra.mxu0 0.0
    %1884 = vmatprep.subr.mxu0 0.0
    %1885 = vmatpush1.msra.mxu0 0.0
    %1886 = vmatprep.subr.mxu0 0.0
    %1887 = vmatpush1.msra.mxu0 0.0
    %1888 = vmatprep.subr.mxu0 0.0
    %1889 = vmatpush1.msra.mxu0 0.0
    %1890 = vmatprep.subr.mxu0 0.0
    %1891 = vmatpush1.msra.mxu0 0.0
    %1892 = vmatprep.subr.mxu0 0.0
    %1893 = vmatpush1.msra.mxu0 0.0
    %1894 = vmatprep.subr.mxu0 0.0
    %1895 = vmatpush1.msra.mxu0 0.0
    %1896 = vmatprep.subr.mxu0 0.0
    %1897 = vmatpush1.msra.mxu0 0.0
    %1898 = vmatprep.subr.mxu0 0.0
    %1899 = vmatpush1.msra.mxu0 0.0
    %1900 = vmatprep.subr.mxu0 0.0
    %1901 = vmatpush1.msra.mxu0 0.0
    %1902 = vmatprep.subr.mxu0 0.0
    %1903 = vmatpush1.msra.mxu0 0.0
    %1904 = vmatprep.subr.mxu0 0.0
    %1905 = vmatpush1.msra.mxu0 0.0
    %1906 = vmatprep.subr.mxu0 0.0
    %1907 = vmatpush1.msra.mxu0 0.0
    %1908 = vmatprep.subr.mxu0 0.0
    %1909 = vmatpush1.msra.mxu0 0.0
    %1910 = vmatprep.subr.mxu0 0.0
    %1911 = vmatpush1.msra.mxu0 0.0
    %1912 = vmatprep.subr.mxu0 0.0
    %1913 = vmatpush1.msra.mxu0 0.0
    %1914 = vmatprep.subr.mxu0 0.0
    %1915 = vmatpush1.msra.mxu0 0.0
    %1916 = vmatprep.subr.mxu0 0.0
    %1917 = vmatpush1.msra.mxu0 0.0
    %1918 = vmatprep.subr.mxu0 0.0
    %1919 = vmatpush1.msra.mxu0 0.0
    %1920 = vmatprep.subr.mxu0 0.0
    %1921 = vmatpush1.msra.mxu0 0.0
    %1922 = vmatprep.subr.mxu0 0.0
    %1923 = vmatpush1.msra.mxu0 0.0
    %1924 = vmatprep.subr.mxu0 0.0
    %1925 = vmatpush1.msra.mxu0 0.0
    %1926 = vmatprep.subr.mxu0 0.0
    %1927 = vmatpush1.msra.mxu0 0.0
    %1928 = vmatprep.mubr.f32.mxu0 0.0
    %1929 = vmatmul.mubr.f32.gmra.mrb[0].mxu0 %v1862
    %v1930 = vpop.f32.mrb[0].mxu0
    %v1931 = vadd.f32 0.0, %v1930
    %v1932 = vpop.f32.mrb[0].mxu0
    %1933 = vdwg.mxu0
    %1934 = vrot.lane.b32.xlu0 %v1760, 112
    %v1935 = vpop.permute.xlu0 %1934
    %1936 = vrot.lane.b32.xlu0 %v1760, 80
    %v1937 = vpop.permute.xlu0 %1936
    %v1938 = vsel %vm606, %v1935, 0
    %v1940 = vsel %vm606, %v1937, 0
    %1942 = vmatprep.subr.mxu0 0.0
    %1943 = vmatpush1.xpose.msra.mxu0 %v1940
    %1944 = vmatprep.subr.mxu0 0.0
    %1945 = vmatpush1.xpose.msra.mxu0 0.0
    %1946 = vmatprep.subr.mxu0 0.0
    %1947 = vmatpush1.xpose.msra.mxu0 0.0
    %1948 = vmatprep.subr.mxu0 0.0
    %1949 = vmatpush1.xpose.msra.mxu0 0.0
    %1950 = vmatprep.subr.mxu0 0.0
    %1951 = vmatpush1.xpose.msra.mxu0 0.0
    %1952 = vmatprep.subr.mxu0 0.0
    %1953 = vmatpush1.xpose.msra.mxu0 0.0
    %1954 = vmatprep.subr.mxu0 0.0
    %1955 = vmatpush1.xpose.msra.mxu0 0.0
    %1956 = vmatprep.subr.mxu0 0.0
    %1957 = vmatpush1.xpose.msra.mxu0 0.0
    %1958 = vmatprep.subr.mxu0 0.0
    %1959 = vmatpush1.xpose.msra.mxu0 0.0
    %1960 = vmatprep.subr.mxu0 0.0
    %1961 = vmatpush1.xpose.msra.mxu0 0.0
    %1962 = vmatprep.subr.mxu0 0.0
    %1963 = vmatpush1.xpose.msra.mxu0 0.0
    %1964 = vmatprep.subr.mxu0 0.0
    %1965 = vmatpush1.xpose.msra.mxu0 0.0
    %1966 = vmatprep.subr.mxu0 0.0
    %1967 = vmatpush1.xpose.msra.mxu0 0.0
    %1968 = vmatprep.subr.mxu0 0.0
    %1969 = vmatpush1.xpose.msra.mxu0 0.0
    %1970 = vmatprep.subr.mxu0 0.0
    %1971 = vmatpush1.xpose.msra.mxu0 0.0
    %1972 = vmatprep.subr.mxu0 0.0
    %1973 = vmatpush1.xpose.msra.mxu0 0.0
    %1974 = vmatprep.subr.mxu0 0.0
    %1975 = vmatpush1.xpose.msra.mxu0 0.0
    %1976 = vmatprep.subr.mxu0 0.0
    %1977 = vmatpush1.xpose.msra.mxu0 0.0
    %1978 = vmatprep.subr.mxu0 0.0
    %1979 = vmatpush1.xpose.msra.mxu0 0.0
    %1980 = vmatprep.subr.mxu0 0.0
    %1981 = vmatpush1.xpose.msra.mxu0 0.0
    %1982 = vmatprep.subr.mxu0 0.0
    %1983 = vmatpush1.xpose.msra.mxu0 0.0
    %1984 = vmatprep.subr.mxu0 0.0
    %1985 = vmatpush1.xpose.msra.mxu0 0.0
    %1986 = vmatprep.subr.mxu0 0.0
    %1987 = vmatpush1.xpose.msra.mxu0 0.0
    %1988 = vmatprep.subr.mxu0 0.0
    %1989 = vmatpush1.xpose.msra.mxu0 0.0
    %1990 = vmatprep.subr.mxu0 0.0
    %1991 = vmatpush1.xpose.msra.mxu0 0.0
    %1992 = vmatprep.subr.mxu0 0.0
    %1993 = vmatpush1.xpose.msra.mxu0 0.0
    %1994 = vmatprep.subr.mxu0 0.0
    %1995 = vmatpush1.xpose.msra.mxu0 0.0
    %1996 = vmatprep.subr.mxu0 0.0
    %1997 = vmatpush1.xpose.msra.mxu0 0.0
    %1998 = vmatprep.subr.mxu0 0.0
    %1999 = vmatpush1.xpose.msra.mxu0 0.0
    %2000 = vmatprep.subr.mxu0 0.0
    %2001 = vmatpush1.xpose.msra.mxu0 0.0
    %2002 = vmatprep.subr.mxu0 0.0
    %2003 = vmatpush1.xpose.msra.mxu0 0.0
    %2004 = vmatprep.subr.mxu0 0.0
    %2005 = vmatpush1.xpose.msra.mxu0 0.0
    %2006 = vmatprep.mubr.f32.mxu0 0.0
    %2007 = vmatmul.mubr.f32.gmra.mrb[0].mxu0 %v1938
    %v2008 = vpop.f32.mrb[0].mxu0
    %v2009 = vadd.f32 0.0, %v2008
    %v2010 = vpop.f32.mrb[0].mxu0
    %2011 = vdwg.mxu0
    %v2012 = vmul.f32 %v2009, 0.25
    %v2013 = vsel %vm464, %v2012, -1e+30
    %v2014 = vsel %vm683, %v2013, -inf
    %2015 = vmax.xlane.f32.xlu0 %v2014
    %v2016 = vpop.xlane.xlu0 %2015
    %v2017 = vsub.f32 %v2013, %v2016
    %v2018 = vmul.f32 %v2017, 1.442695
    %v2019 = vpow.pop %v2018
    %v2020 = vsel %vm683, %v2019, 0.0
    %2021 = vadd.xlane.f32.xlu0 %v2020
    %v2022 = vpop.xlane.xlu0 %2021
    %v2023 = vrcp.pop %v2022
    %v2024 = vmul.f32 %v2019, %v2023
    %2025 = vrot.lane.b32.xlu0 %v1760, 48
    %v2026 = vpop.permute.xlu0 %2025
    %v2029 = vsel %vm683, %v2024, 0
    %2031 = vmatprep.subr.mxu0 0.0
    %2032 = vmatpush1.msra.mxu0 %v2026
    %2033 = vmatprep.subr.mxu0 0.0
    %2034 = vmatpush1.msra.mxu0 0.0
    %2035 = vmatprep.subr.mxu0 0.0
    %2036 = vmatpush1.msra.mxu0 0.0
    %2037 = vmatprep.subr.mxu0 0.0
    %2038 = vmatpush1.msra.mxu0 0.0
    %2039 = vmatprep.subr.mxu0 0.0
    %2040 = vmatpush1.msra.mxu0 0.0
    %2041 = vmatprep.subr.mxu0 0.0
    %2042 = vmatpush1.msra.mxu0 0.0
    %2043 = vmatprep.subr.mxu0 0.0
    %2044 = vmatpush1.msra.mxu0 0.0
    %2045 = vmatprep.subr.mxu0 0.0
    %2046 = vmatpush1.msra.mxu0 0.0
    %2047 = vmatprep.subr.mxu0 0.0
    %2048 = vmatpush1.msra.mxu0 0.0
    %2049 = vmatprep.subr.mxu0 0.0
    %2050 = vmatpush1.msra.mxu0 0.0
    %2051 = vmatprep.subr.mxu0 0.0
    %2052 = vmatpush1.msra.mxu0 0.0
    %2053 = vmatprep.subr.mxu0 0.0
    %2054 = vmatpush1.msra.mxu0 0.0
    %2055 = vmatprep.subr.mxu0 0.0
    %2056 = vmatpush1.msra.mxu0 0.0
    %2057 = vmatprep.subr.mxu0 0.0
    %2058 = vmatpush1.msra.mxu0 0.0
    %2059 = vmatprep.subr.mxu0 0.0
    %2060 = vmatpush1.msra.mxu0 0.0
    %2061 = vmatprep.subr.mxu0 0.0
    %2062 = vmatpush1.msra.mxu0 0.0
    %2063 = vmatprep.subr.mxu0 0.0
    %2064 = vmatpush1.msra.mxu0 0.0
    %2065 = vmatprep.subr.mxu0 0.0
    %2066 = vmatpush1.msra.mxu0 0.0
    %2067 = vmatprep.subr.mxu0 0.0
    %2068 = vmatpush1.msra.mxu0 0.0
    %2069 = vmatprep.subr.mxu0 0.0
    %2070 = vmatpush1.msra.mxu0 0.0
    %2071 = vmatprep.subr.mxu0 0.0
    %2072 = vmatpush1.msra.mxu0 0.0
    %2073 = vmatprep.subr.mxu0 0.0
    %2074 = vmatpush1.msra.mxu0 0.0
    %2075 = vmatprep.subr.mxu0 0.0
    %2076 = vmatpush1.msra.mxu0 0.0
    %2077 = vmatprep.subr.mxu0 0.0
    %2078 = vmatpush1.msra.mxu0 0.0
    %2079 = vmatprep.subr.mxu0 0.0
    %2080 = vmatpush1.msra.mxu0 0.0
    %2081 = vmatprep.subr.mxu0 0.0
    %2082 = vmatpush1.msra.mxu0 0.0
    %2083 = vmatprep.subr.mxu0 0.0
    %2084 = vmatpush1.msra.mxu0 0.0
    %2085 = vmatprep.subr.mxu0 0.0
    %2086 = vmatpush1.msra.mxu0 0.0
    %2087 = vmatprep.subr.mxu0 0.0
    %2088 = vmatpush1.msra.mxu0 0.0
    %2089 = vmatprep.subr.mxu0 0.0
    %2090 = vmatpush1.msra.mxu0 0.0
    %2091 = vmatprep.subr.mxu0 0.0
    %2092 = vmatpush1.msra.mxu0 0.0
    %2093 = vmatprep.subr.mxu0 0.0
    %2094 = vmatpush1.msra.mxu0 0.0
    %2095 = vmatprep.mubr.f32.mxu0 0.0
    %2096 = vmatmul.mubr.f32.gmra.mrb[0].mxu0 %v2029
    %v2097 = vpop.f32.mrb[0].mxu0
    %v2098 = vadd.f32 0.0, %v2097
    %v2099 = vpop.f32.mrb[0].mxu0
    %2100 = vdwg.mxu0
    %2102 = vrot.lane.b32.xlu0 %v2098, 16
    %v2103 = vpop.permute.xlu0 %2102
    %v2105 = vsel %vm606, %v1931, %v2103
    %2107 = vrot.lane.b32.xlu0 %v1765, 96
    %v2108 = vpop.permute.xlu0 %2107
    %v2109 = vsel %vm606, %v1765, 0
    %v2111 = vsel %vm606, %v2108, 0
    %2113 = vmatprep.subr.mxu0 0.0
    %2114 = vmatpush1.xpose.msra.mxu0 %v2111
    %2115 = vmatprep.subr.mxu0 0.0
    %2116 = vmatpush1.xpose.msra.mxu0 0.0
    %2117 = vmatprep.subr.mxu0 0.0
    %2118 = vmatpush1.xpose.msra.mxu0 0.0
    %2119 = vmatprep.subr.mxu0 0.0
    %2120 = vmatpush1.xpose.msra.mxu0 0.0
    %2121 = vmatprep.subr.mxu0 0.0
    %2122 = vmatpush1.xpose.msra.mxu0 0.0
    %2123 = vmatprep.subr.mxu0 0.0
    %2124 = vmatpush1.xpose.msra.mxu0 0.0
    %2125 = vmatprep.subr.mxu0 0.0
    %2126 = vmatpush1.xpose.msra.mxu0 0.0
    %2127 = vmatprep.subr.mxu0 0.0
    %2128 = vmatpush1.xpose.msra.mxu0 0.0
    %2129 = vmatprep.subr.mxu0 0.0
    %2130 = vmatpush1.xpose.msra.mxu0 0.0
    %2131 = vmatprep.subr.mxu0 0.0
    %2132 = vmatpush1.xpose.msra.mxu0 0.0
    %2133 = vmatprep.subr.mxu0 0.0
    %2134 = vmatpush1.xpose.msra.mxu0 0.0
    %2135 = vmatprep.subr.mxu0 0.0
    %2136 = vmatpush1.xpose.msra.mxu0 0.0
    %2137 = vmatprep.subr.mxu0 0.0
    %2138 = vmatpush1.xpose.msra.mxu0 0.0
    %2139 = vmatprep.subr.mxu0 0.0
    %2140 = vmatpush1.xpose.msra.mxu0 0.0
    %2141 = vmatprep.subr.mxu0 0.0
    %2142 = vmatpush1.xpose.msra.mxu0 0.0
    %2143 = vmatprep.subr.mxu0 0.0
    %2144 = vmatpush1.xpose.msra.mxu0 0.0
    %2145 = vmatprep.subr.mxu0 0.0
    %2146 = vmatpush1.xpose.msra.mxu0 0.0
    %2147 = vmatprep.subr.mxu0 0.0
    %2148 = vmatpush1.xpose.msra.mxu0 0.0
    %2149 = vmatprep.subr.mxu0 0.0
    %2150 = vmatpush1.xpose.msra.mxu0 0.0
    %2151 = vmatprep.subr.mxu0 0.0
    %2152 = vmatpush1.xpose.msra.mxu0 0.0
    %2153 = vmatprep.subr.mxu0 0.0
    %2154 = vmatpush1.xpose.msra.mxu0 0.0
    %2155 = vmatprep.subr.mxu0 0.0
    %2156 = vmatpush1.xpose.msra.mxu0 0.0
    %2157 = vmatprep.subr.mxu0 0.0
    %2158 = vmatpush1.xpose.msra.mxu0 0.0
    %2159 = vmatprep.subr.mxu0 0.0
    %2160 = vmatpush1.xpose.msra.mxu0 0.0
    %2161 = vmatprep.subr.mxu0 0.0
    %2162 = vmatpush1.xpose.msra.mxu0 0.0
    %2163 = vmatprep.subr.mxu0 0.0
    %2164 = vmatpush1.xpose.msra.mxu0 0.0
    %2165 = vmatprep.subr.mxu0 0.0
    %2166 = vmatpush1.xpose.msra.mxu0 0.0
    %2167 = vmatprep.subr.mxu0 0.0
    %2168 = vmatpush1.xpose.msra.mxu0 0.0
    %2169 = vmatprep.subr.mxu0 0.0
    %2170 = vmatpush1.xpose.msra.mxu0 0.0
    %2171 = vmatprep.subr.mxu0 0.0
    %2172 = vmatpush1.xpose.msra.mxu0 0.0
    %2173 = vmatprep.subr.mxu0 0.0
    %2174 = vmatpush1.xpose.msra.mxu0 0.0
    %2175 = vmatprep.subr.mxu0 0.0
    %2176 = vmatpush1.xpose.msra.mxu0 0.0
    %2177 = vmatprep.mubr.f32.mxu0 0.0
    %2178 = vmatmul.mubr.f32.gmra.mrb[0].mxu0 %v2109
    %v2179 = vpop.f32.mrb[0].mxu0
    %v2180 = vadd.f32 0.0, %v2179
    %v2181 = vpop.f32.mrb[0].mxu0
    %2182 = vdwg.mxu0
    %v2183 = vmul.f32 %v2180, 0.25
    %v2184 = vsel %vm464, %v2183, -1e+30
    %v2185 = vsel %vm683, %v2184, -inf
    %2186 = vmax.xlane.f32.xlu0 %v2185
    %v2187 = vpop.xlane.xlu0 %2186
    %v2188 = vsub.f32 %v2184, %v2187
    %v2189 = vmul.f32 %v2188, 1.442695
    %v2190 = vpow.pop %v2189
    %v2191 = vsel %vm683, %v2190, 0.0
    %2192 = vadd.xlane.f32.xlu0 %v2191
    %v2193 = vpop.xlane.xlu0 %2192
    %v2194 = vrcp.pop %v2193
    %v2195 = vmul.f32 %v2190, %v2194
    %2196 = vrot.lane.b32.xlu0 %v1765, 64
    %v2197 = vpop.permute.xlu0 %2196
    %v2200 = vsel %vm683, %v2195, 0
    %2202 = vmatprep.subr.mxu0 0.0
    %2203 = vmatpush1.msra.mxu0 %v2197
    %2204 = vmatprep.subr.mxu0 0.0
    %2205 = vmatpush1.msra.mxu0 0.0
    %2206 = vmatprep.subr.mxu0 0.0
    %2207 = vmatpush1.msra.mxu0 0.0
    %2208 = vmatprep.subr.mxu0 0.0
    %2209 = vmatpush1.msra.mxu0 0.0
    %2210 = vmatprep.subr.mxu0 0.0
    %2211 = vmatpush1.msra.mxu0 0.0
    %2212 = vmatprep.subr.mxu0 0.0
    %2213 = vmatpush1.msra.mxu0 0.0
    %2214 = vmatprep.subr.mxu0 0.0
    %2215 = vmatpush1.msra.mxu0 0.0
    %2216 = vmatprep.subr.mxu0 0.0
    %2217 = vmatpush1.msra.mxu0 0.0
    %2218 = vmatprep.subr.mxu0 0.0
    %2219 = vmatpush1.msra.mxu0 0.0
    %2220 = vmatprep.subr.mxu0 0.0
    %2221 = vmatpush1.msra.mxu0 0.0
    %2222 = vmatprep.subr.mxu0 0.0
    %2223 = vmatpush1.msra.mxu0 0.0
    %2224 = vmatprep.subr.mxu0 0.0
    %2225 = vmatpush1.msra.mxu0 0.0
    %2226 = vmatprep.subr.mxu0 0.0
    %2227 = vmatpush1.msra.mxu0 0.0
    %2228 = vmatprep.subr.mxu0 0.0
    %2229 = vmatpush1.msra.mxu0 0.0
    %2230 = vmatprep.subr.mxu0 0.0
    %2231 = vmatpush1.msra.mxu0 0.0
    %2232 = vmatprep.subr.mxu0 0.0
    %2233 = vmatpush1.msra.mxu0 0.0
    %2234 = vmatprep.subr.mxu0 0.0
    %2235 = vmatpush1.msra.mxu0 0.0
    %2236 = vmatprep.subr.mxu0 0.0
    %2237 = vmatpush1.msra.mxu0 0.0
    %2238 = vmatprep.subr.mxu0 0.0
    %2239 = vmatpush1.msra.mxu0 0.0
    %2240 = vmatprep.subr.mxu0 0.0
    %2241 = vmatpush1.msra.mxu0 0.0
    %2242 = vmatprep.subr.mxu0 0.0
    %2243 = vmatpush1.msra.mxu0 0.0
    %2244 = vmatprep.subr.mxu0 0.0
    %2245 = vmatpush1.msra.mxu0 0.0
    %2246 = vmatprep.subr.mxu0 0.0
    %2247 = vmatpush1.msra.mxu0 0.0
    %2248 = vmatprep.subr.mxu0 0.0
    %2249 = vmatpush1.msra.mxu0 0.0
    %2250 = vmatprep.subr.mxu0 0.0
    %2251 = vmatpush1.msra.mxu0 0.0
    %2252 = vmatprep.subr.mxu0 0.0
    %2253 = vmatpush1.msra.mxu0 0.0
    %2254 = vmatprep.subr.mxu0 0.0
    %2255 = vmatpush1.msra.mxu0 0.0
    %2256 = vmatprep.subr.mxu0 0.0
    %2257 = vmatpush1.msra.mxu0 0.0
    %2258 = vmatprep.subr.mxu0 0.0
    %2259 = vmatpush1.msra.mxu0 0.0
    %2260 = vmatprep.subr.mxu0 0.0
    %2261 = vmatpush1.msra.mxu0 0.0
    %2262 = vmatprep.subr.mxu0 0.0
    %2263 = vmatpush1.msra.mxu0 0.0
    %2264 = vmatprep.subr.mxu0 0.0
    %2265 = vmatpush1.msra.mxu0 0.0
    %2266 = vmatprep.mubr.f32.mxu0 0.0
    %2267 = vmatmul.mubr.f32.gmra.mrb[0].mxu0 %v2200
    %v2268 = vpop.f32.mrb[0].mxu0
    %v2269 = vadd.f32 0.0, %v2268
    %v2270 = vpop.f32.mrb[0].mxu0
    %2271 = vdwg.mxu0
    %2272 = vrot.lane.b32.xlu0 %v1765, 112
    %v2273 = vpop.permute.xlu0 %2272
    %2274 = vrot.lane.b32.xlu0 %v1765, 80
    %v2275 = vpop.permute.xlu0 %2274
    %v2276 = vsel %vm606, %v2273, 0
    %v2278 = vsel %vm606, %v2275, 0
    %2280 = vmatprep.subr.mxu0 0.0
    %2281 = vmatpush1.xpose.msra.mxu0 %v2278
    %2282 = vmatprep.subr.mxu0 0.0
    %2283 = vmatpush1.xpose.msra.mxu0 0.0
    %2284 = vmatprep.subr.mxu0 0.0
    %2285 = vmatpush1.xpose.msra.mxu0 0.0
    %2286 = vmatprep.subr.mxu0 0.0
    %2287 = vmatpush1.xpose.msra.mxu0 0.0
    %2288 = vmatprep.subr.mxu0 0.0
    %2289 = vmatpush1.xpose.msra.mxu0 0.0
    %2290 = vmatprep.subr.mxu0 0.0
    %2291 = vmatpush1.xpose.msra.mxu0 0.0
    %2292 = vmatprep.subr.mxu0 0.0
    %2293 = vmatpush1.xpose.msra.mxu0 0.0
    %2294 = vmatprep.subr.mxu0 0.0
    %2295 = vmatpush1.xpose.msra.mxu0 0.0
    %2296 = vmatprep.subr.mxu0 0.0
    %2297 = vmatpush1.xpose.msra.mxu0 0.0
    %2298 = vmatprep.subr.mxu0 0.0
    %2299 = vmatpush1.xpose.msra.mxu0 0.0
    %2300 = vmatprep.subr.mxu0 0.0
    %2301 = vmatpush1.xpose.msra.mxu0 0.0
    %2302 = vmatprep.subr.mxu0 0.0
    %2303 = vmatpush1.xpose.msra.mxu0 0.0
    %2304 = vmatprep.subr.mxu0 0.0
    %2305 = vmatpush1.xpose.msra.mxu0 0.0
    %2306 = vmatprep.subr.mxu0 0.0
    %2307 = vmatpush1.xpose.msra.mxu0 0.0
    %2308 = vmatprep.subr.mxu0 0.0
    %2309 = vmatpush1.xpose.msra.mxu0 0.0
    %2310 = vmatprep.subr.mxu0 0.0
    %2311 = vmatpush1.xpose.msra.mxu0 0.0
    %2312 = vmatprep.subr.mxu0 0.0
    %2313 = vmatpush1.xpose.msra.mxu0 0.0
    %2314 = vmatprep.subr.mxu0 0.0
    %2315 = vmatpush1.xpose.msra.mxu0 0.0
    %2316 = vmatprep.subr.mxu0 0.0
    %2317 = vmatpush1.xpose.msra.mxu0 0.0
    %2318 = vmatprep.subr.mxu0 0.0
    %2319 = vmatpush1.xpose.msra.mxu0 0.0
    %2320 = vmatprep.subr.mxu0 0.0
    %2321 = vmatpush1.xpose.msra.mxu0 0.0
    %2322 = vmatprep.subr.mxu0 0.0
    %2323 = vmatpush1.xpose.msra.mxu0 0.0
    %2324 = vmatprep.subr.mxu0 0.0
    %2325 = vmatpush1.xpose.msra.mxu0 0.0
    %2326 = vmatprep.subr.mxu0 0.0
    %2327 = vmatpush1.xpose.msra.mxu0 0.0
    %2328 = vmatprep.subr.mxu0 0.0
    %2329 = vmatpush1.xpose.msra.mxu0 0.0
    %2330 = vmatprep.subr.mxu0 0.0
    %2331 = vmatpush1.xpose.msra.mxu0 0.0
    %2332 = vmatprep.subr.mxu0 0.0
    %2333 = vmatpush1.xpose.msra.mxu0 0.0
    %2334 = vmatprep.subr.mxu0 0.0
    %2335 = vmatpush1.xpose.msra.mxu0 0.0
    %2336 = vmatprep.subr.mxu0 0.0
    %2337 = vmatpush1.xpose.msra.mxu0 0.0
    %2338 = vmatprep.subr.mxu0 0.0
    %2339 = vmatpush1.xpose.msra.mxu0 0.0
    %2340 = vmatprep.subr.mxu0 0.0
    %2341 = vmatpush1.xpose.msra.mxu0 0.0
    %2342 = vmatprep.subr.mxu0 0.0
    %2343 = vmatpush1.xpose.msra.mxu0 0.0
    %2344 = vmatprep.mubr.f32.mxu0 0.0
    %2345 = vmatmul.mubr.f32.gmra.mrb[0].mxu0 %v2276
    %v2346 = vpop.f32.mrb[0].mxu0
    %v2347 = vadd.f32 0.0, %v2346
    %v2348 = vpop.f32.mrb[0].mxu0
    %2349 = vdwg.mxu0
    %v2350 = vmul.f32 %v2347, 0.25
    %v2351 = vsel %vm464, %v2350, -1e+30
    %v2352 = vsel %vm683, %v2351, -inf
    %2353 = vmax.xlane.f32.xlu0 %v2352
    %v2354 = vpop.xlane.xlu0 %2353
    %v2355 = vsub.f32 %v2351, %v2354
    %v2356 = vmul.f32 %v2355, 1.442695
    %v2357 = vpow.pop %v2356
    %v2358 = vsel %vm683, %v2357, 0.0
    %2359 = vadd.xlane.f32.xlu0 %v2358
    %v2360 = vpop.xlane.xlu0 %2359
    %v2361 = vrcp.pop %v2360
    %v2362 = vmul.f32 %v2357, %v2361
    %2363 = vrot.lane.b32.xlu0 %v1765, 48
    %v2364 = vpop.permute.xlu0 %2363
    %v2367 = vsel %vm683, %v2362, 0
    %2369 = vmatprep.subr.mxu0 0.0
    %2370 = vmatpush1.msra.mxu0 %v2364
    %2371 = vmatprep.subr.mxu0 0.0
    %2372 = vmatpush1.msra.mxu0 0.0
    %2373 = vmatprep.subr.mxu0 0.0
    %2374 = vmatpush1.msra.mxu0 0.0
    %2375 = vmatprep.subr.mxu0 0.0
    %2376 = vmatpush1.msra.mxu0 0.0
    %2377 = vmatprep.subr.mxu0 0.0
    %2378 = vmatpush1.msra.mxu0 0.0
    %2379 = vmatprep.subr.mxu0 0.0
    %2380 = vmatpush1.msra.mxu0 0.0
    %2381 = vmatprep.subr.mxu0 0.0
    %2382 = vmatpush1.msra.mxu0 0.0
    %2383 = vmatprep.subr.mxu0 0.0
    %2384 = vmatpush1.msra.mxu0 0.0
    %2385 = vmatprep.subr.mxu0 0.0
    %2386 = vmatpush1.msra.mxu0 0.0
    %2387 = vmatprep.subr.mxu0 0.0
    %2388 = vmatpush1.msra.mxu0 0.0
    %2389 = vmatprep.subr.mxu0 0.0
    %2390 = vmatpush1.msra.mxu0 0.0
    %2391 = vmatprep.subr.mxu0 0.0
    %2392 = vmatpush1.msra.mxu0 0.0
    %2393 = vmatprep.subr.mxu0 0.0
    %2394 = vmatpush1.msra.mxu0 0.0
    %2395 = vmatprep.subr.mxu0 0.0
    %2396 = vmatpush1.msra.mxu0 0.0
    %2397 = vmatprep.subr.mxu0 0.0
    %2398 = vmatpush1.msra.mxu0 0.0
    %2399 = vmatprep.subr.mxu0 0.0
    %2400 = vmatpush1.msra.mxu0 0.0
    %2401 = vmatprep.subr.mxu0 0.0
    %2402 = vmatpush1.msra.mxu0 0.0
    %2403 = vmatprep.subr.mxu0 0.0
    %2404 = vmatpush1.msra.mxu0 0.0
    %2405 = vmatprep.subr.mxu0 0.0
    %2406 = vmatpush1.msra.mxu0 0.0
    %2407 = vmatprep.subr.mxu0 0.0
    %2408 = vmatpush1.msra.mxu0 0.0
    %2409 = vmatprep.subr.mxu0 0.0
    %2410 = vmatpush1.msra.mxu0 0.0
    %2411 = vmatprep.subr.mxu0 0.0
    %2412 = vmatpush1.msra.mxu0 0.0
    %2413 = vmatprep.subr.mxu0 0.0
    %2414 = vmatpush1.msra.mxu0 0.0
    %2415 = vmatprep.subr.mxu0 0.0
    %2416 = vmatpush1.msra.mxu0 0.0
    %2417 = vmatprep.subr.mxu0 0.0
    %2418 = vmatpush1.msra.mxu0 0.0
    %2419 = vmatprep.subr.mxu0 0.0
    %2420 = vmatpush1.msra.mxu0 0.0
    %2421 = vmatprep.subr.mxu0 0.0
    %2422 = vmatpush1.msra.mxu0 0.0
    %2423 = vmatprep.subr.mxu0 0.0
    %2424 = vmatpush1.msra.mxu0 0.0
    %2425 = vmatprep.subr.mxu0 0.0
    %2426 = vmatpush1.msra.mxu0 0.0
    %2427 = vmatprep.subr.mxu0 0.0
    %2428 = vmatpush1.msra.mxu0 0.0
    %2429 = vmatprep.subr.mxu0 0.0
    %2430 = vmatpush1.msra.mxu0 0.0
    %2431 = vmatprep.subr.mxu0 0.0
    %2432 = vmatpush1.msra.mxu0 0.0
    %2433 = vmatprep.mubr.f32.mxu0 0.0
    %2434 = vmatmul.mubr.f32.gmra.mrb[0].mxu0 %v2367
    %v2435 = vpop.f32.mrb[0].mxu0
    %v2436 = vadd.f32 0.0, %v2435
    %v2437 = vpop.f32.mrb[0].mxu0
    %2438 = vdwg.mxu0
    %2440 = vrot.lane.b32.xlu0 %v2436, 16
    %v2441 = vpop.permute.xlu0 %2440
    %v2443 = vsel %vm606, %v2269, %v2441
    %s2444 = scalar_lea.vmem %s9, 32
    %v2445 = vld [vmem:[%s2444] sm:$0xff]
    %v2446 = vld [vmem:[%s2444 + $0x8] sm:$0xff]
    %v2447 = vld [vmem:[%s2444 + $0x10] sm:$0xff]
    %v2448 = vld [vmem:[%s2444 + $0x18] sm:$0xff]
    %s2449 = scalar_lea.vmem %s10, 1
    %v2450 = vld [vmem:[%s2449] sm:$0x1]
    %v2452 = vlaneseq
    %v2453 = vshrl.u32 %v2452, 7
    %v2454 = vsub.s32 0, %v2453
    %v2455 = vrot.slane %v2450, %v2454
    %v2458 = vsel %vm467, %v2105, 0
    %v2461 = vsel %vm467, %v2443, 0
    %2463 = vmatprep.subr.mxu0 0.0
    %2464 = vmatpush1.msra.mxu0 %v2445
    %2465 = vmatprep.subr.mxu0 0.0
    %2466 = vmatpush1.msra.mxu0 %v2446
    %2467 = vmatprep.subr.mxu0 0.0
    %2468 = vmatpush1.msra.mxu0 %v2447
    %2469 = vmatprep.subr.mxu0 0.0
    %2470 = vmatpush1.msra.mxu0 %v2448
    %2471 = vmatprep.subr.mxu0 0.0
    %2472 = vmatpush1.msra.mxu0 0.0
    %2473 = vmatprep.subr.mxu0 0.0
    %2474 = vmatpush1.msra.mxu0 0.0
    %2475 = vmatprep.subr.mxu0 0.0
    %2476 = vmatpush1.msra.mxu0 0.0
    %2477 = vmatprep.subr.mxu0 0.0
    %2478 = vmatpush1.msra.mxu0 0.0
    %2479 = vmatprep.subr.mxu0 0.0
    %2480 = vmatpush1.msra.mxu0 0.0
    %2481 = vmatprep.subr.mxu0 0.0
    %2482 = vmatpush1.msra.mxu0 0.0
    %2483 = vmatprep.subr.mxu0 0.0
    %2484 = vmatpush1.msra.mxu0 0.0
    %2485 = vmatprep.subr.mxu0 0.0
    %2486 = vmatpush1.msra.mxu0 0.0
    %2487 = vmatprep.subr.mxu0 0.0
    %2488 = vmatpush1.msra.mxu0 0.0
    %2489 = vmatprep.subr.mxu0 0.0
    %2490 = vmatpush1.msra.mxu0 0.0
    %2491 = vmatprep.subr.mxu0 0.0
    %2492 = vmatpush1.msra.mxu0 0.0
    %2493 = vmatprep.subr.mxu0 0.0
    %2494 = vmatpush1.msra.mxu0 0.0
    %2495 = vmatprep.subr.mxu0 0.0
    %2496 = vmatpush1.msra.mxu0 0.0
    %2497 = vmatprep.subr.mxu0 0.0
    %2498 = vmatpush1.msra.mxu0 0.0
    %2499 = vmatprep.subr.mxu0 0.0
    %2500 = vmatpush1.msra.mxu0 0.0
    %2501 = vmatprep.subr.mxu0 0.0
    %2502 = vmatpush1.msra.mxu0 0.0
    %2503 = vmatprep.subr.mxu0 0.0
    %2504 = vmatpush1.msra.mxu0 0.0
    %2505 = vmatprep.subr.mxu0 0.0
    %2506 = vmatpush1.msra.mxu0 0.0
    %2507 = vmatprep.subr.mxu0 0.0
    %2508 = vmatpush1.msra.mxu0 0.0
    %2509 = vmatprep.subr.mxu0 0.0
    %2510 = vmatpush1.msra.mxu0 0.0
    %2511 = vmatprep.subr.mxu0 0.0
    %2512 = vmatpush1.msra.mxu0 0.0
    %2513 = vmatprep.subr.mxu0 0.0
    %2514 = vmatpush1.msra.mxu0 0.0
    %2515 = vmatprep.subr.mxu0 0.0
    %2516 = vmatpush1.msra.mxu0 0.0
    %2517 = vmatprep.subr.mxu0 0.0
    %2518 = vmatpush1.msra.mxu0 0.0
    %2519 = vmatprep.subr.mxu0 0.0
    %2520 = vmatpush1.msra.mxu0 0.0
    %2521 = vmatprep.subr.mxu0 0.0
    %2522 = vmatpush1.msra.mxu0 0.0
    %2523 = vmatprep.subr.mxu0 0.0
    %2524 = vmatpush1.msra.mxu0 0.0
    %2525 = vmatprep.subr.mxu0 0.0
    %2526 = vmatpush1.msra.mxu0 0.0
    %2527 = vmatprep.mubr.f32.mxu0 0.0
    %2528 = vmatmul.mubr.f32.gmra.mrb[0].mxu0 %v2458
    %v2529 = vpop.f32.mrb[0].mxu0
    %v2530 = vadd.f32 %v2455, %v2529
    %v2531 = vpop.f32.mrb[0].mxu0
    %2532 = vmatprep.mubr.f32.mxu0 0.0
    %2533 = vmatmul.mubr.f32.gmra.mrb[0].mxu0 %v2461
    %v2534 = vpop.f32.mrb[0].mxu0
    %v2535 = vadd.f32 %v2455, %v2534
    %v2536 = vpop.f32.mrb[0].mxu0
    %2537 = vdwg.mxu0
    %v2538 = vadd.f32 %v1626, %v2530
    %v2539 = vadd.f32 %v1627, %v2535
    %s2540 = scalar_lea.vmem %s11, 1
    %v2541 = vld [vmem:[%s2540] sm:$0x1]
    %s2542 = scalar_lea.vmem %s12, 1
    %v2543 = vld [vmem:[%s2542] sm:$0x1]
    %v2544 = vsel %vm467, %v2538, 0.0
    %2545 = vadd.xlane.f32.xlu0 %v2544
    %v2546 = vpop.xlane.xlu0 %2545
    %v2547 = vsel %vm467, %v2539, 0.0
    %2548 = vadd.xlane.f32.xlu0 %v2547
    %v2549 = vpop.xlane.xlu0 %2548
    %v2550 = vmul.f32 %v2546, %v474
    %v2551 = vmul.f32 %v2549, %v474
    %v2552 = vsub.f32 %v2538, %v2550
    %v2553 = vsub.f32 %v2539, %v2551
    %v2554 = vmul.f32 %v2552, %v2552
    %v2555 = vmul.f32 %v2553, %v2553
    %v2556 = vsel %vm467, %v2554, 0.0
    %2557 = vadd.xlane.f32.xlu0 %v2556
    %v2558 = vpop.xlane.xlu0 %2557
    %v2559 = vsel %vm467, %v2555, 0.0
    %2560 = vadd.xlane.f32.xlu0 %v2559
    %v2561 = vpop.xlane.xlu0 %2560
    %v2562 = vmul.f32 %v2558, %v474
    %v2563 = vmul.f32 %v2561, %v474
    %v2564 = vadd.f32 %v2562, 1e-12
    %v2565 = vadd.f32 %v2563, 1e-12
    %v2566 = vrsqrt.pop %v2564
    %v2567 = vrsqrt.pop %v2565
    %v2568 = vmul.f32 %v2552, %v2566
    %v2569 = vmul.f32 %v2553, %v2567
    %v2571 = vlaneseq
    %v2572 = vshrl.u32 %v2571, 7
    %v2573 = vsub.s32 0, %v2572
    %v2574 = vrot.slane %v2541, %v2573
    %v2576 = vmul.f32 %v2568, %v2574
    %v2577 = vmul.f32 %v2569, %v2574
    %v2579 = vlaneseq
    %v2580 = vshrl.u32 %v2579, 7
    %v2581 = vsub.s32 0, %v2580
    %v2582 = vrot.slane %v2543, %v2581
    %v2584 = vadd.f32 %v2576, %v2582
    %v2585 = vadd.f32 %v2577, %v2582
    %s2586 = scalar_lea.vmem %s13, 32
    %v2587 = vld [vmem:[%s2586] sm:$0xff]
    %v2588 = vld [vmem:[%s2586 + $0x8] sm:$0xff]
    %v2589 = vld [vmem:[%s2586 + $0x10] sm:$0xff]
    %v2590 = vld [vmem:[%s2586 + $0x18] sm:$0xff]
    %s2591 = scalar_lea.vmem %s14, 1
    %v2592 = vld [vmem:[%s2591] sm:$0x1]
    %v2594 = vlaneseq
    %v2595 = vshrl.u32 %v2594, 7
    %v2596 = vsub.s32 0, %v2595
    %v2597 = vrot.slane %v2592, %v2596
    %v2600 = vsel %vm467, %v2584, 0
    %v2603 = vsel %vm467, %v2585, 0
    %2605 = vmatprep.subr.mxu0 0.0
    %2606 = vmatpush1.msra.mxu0 %v2587
    %2607 = vmatprep.subr.mxu0 0.0
    %2608 = vmatpush1.msra.mxu0 %v2588
    %2609 = vmatprep.subr.mxu0 0.0
    %2610 = vmatpush1.msra.mxu0 %v2589
    %2611 = vmatprep.subr.mxu0 0.0
    %2612 = vmatpush1.msra.mxu0 %v2590
    %2613 = vmatprep.subr.mxu0 0.0
    %2614 = vmatpush1.msra.mxu0 0.0
    %2615 = vmatprep.subr.mxu0 0.0
    %2616 = vmatpush1.msra.mxu0 0.0
    %2617 = vmatprep.subr.mxu0 0.0
    %2618 = vmatpush1.msra.mxu0 0.0
    %2619 = vmatprep.subr.mxu0 0.0
    %2620 = vmatpush1.msra.mxu0 0.0
    %2621 = vmatprep.subr.mxu0 0.0
    %2622 = vmatpush1.msra.mxu0 0.0
    %2623 = vmatprep.subr.mxu0 0.0
    %2624 = vmatpush1.msra.mxu0 0.0
    %2625 = vmatprep.subr.mxu0 0.0
    %2626 = vmatpush1.msra.mxu0 0.0
    %2627 = vmatprep.subr.mxu0 0.0
    %2628 = vmatpush1.msra.mxu0 0.0
    %2629 = vmatprep.subr.mxu0 0.0
    %2630 = vmatpush1.msra.mxu0 0.0
    %2631 = vmatprep.subr.mxu0 0.0
    %2632 = vmatpush1.msra.mxu0 0.0
    %2633 = vmatprep.subr.mxu0 0.0
    %2634 = vmatpush1.msra.mxu0 0.0
    %2635 = vmatprep.subr.mxu0 0.0
    %2636 = vmatpush1.msra.mxu0 0.0
    %2637 = vmatprep.subr.mxu0 0.0
    %2638 = vmatpush1.msra.mxu0 0.0
    %2639 = vmatprep.subr.mxu0 0.0
    %2640 = vmatpush1.msra.mxu0 0.0
    %2641 = vmatprep.subr.mxu0 0.0
    %2642 = vmatpush1.msra.mxu0 0.0
    %2643 = vmatprep.subr.mxu0 0.0
    %2644 = vmatpush1.msra.mxu0 0.0
    %2645 = vmatprep.subr.mxu0 0.0
    %2646 = vmatpush1.msra.mxu0 0.0
    %2647 = vmatprep.subr.mxu0 0.0
    %2648 = vmatpush1.msra.mxu0 0.0
    %2649 = vmatprep.subr.mxu0 0.0
    %2650 = vmatpush1.msra.mxu0 0.0
    %2651 = vmatprep.subr.mxu0 0.0
    %2652 = vmatpush1.msra.mxu0 0.0
    %2653 = vmatprep.subr.mxu0 0.0
    %2654 = vmatpush1.msra.mxu0 0.0
    %2655 = vmatprep.subr.mxu0 0.0
    %2656 = vmatpush1.msra.mxu0 0.0
    %2657 = vmatprep.subr.mxu0 0.0
    %2658 = vmatpush1.msra.mxu0 0.0
    %2659 = vmatprep.subr.mxu0 0.0
    %2660 = vmatpush1.msra.mxu0 0.0
    %2661 = vmatprep.subr.mxu0 0.0
    %2662 = vmatpush1.msra.mxu0 0.0
    %2663 = vmatprep.subr.mxu0 0.0
    %2664 = vmatpush1.msra.mxu0 0.0
    %2665 = vmatprep.subr.mxu0 0.0
    %2666 = vmatpush1.msra.mxu0 0.0
    %2667 = vmatprep.subr.mxu0 0.0
    %2668 = vmatpush1.msra.mxu0 0.0
    %2669 = vmatprep.mubr.f32.mxu0 0.0
    %2670 = vmatmul.mubr.f32.gmra.mrb[0].mxu0 %v2600
    %v2671 = vpop.f32.mrb[0].mxu0
    %v2672 = vadd.f32 %v2597, %v2671
    %v2673 = vpop.f32.mrb[0].mxu0
    %2674 = vmatprep.mubr.f32.mxu0 0.0
    %2675 = vmatmul.mubr.f32.gmra.mrb[0].mxu0 %v2603
    %v2676 = vpop.f32.mrb[0].mxu0
    %v2677 = vadd.f32 %v2597, %v2676
    %v2678 = vpop.f32.mrb[0].mxu0
    %2679 = vdwg.mxu0
    %v2680 = vmul.f32 %v2672, 0.5
    %v2681 = vmul.f32 %v2677, 0.5
    %v2682 = vmul.f32 %v2672, 0.044715
    %v2683 = vmul.f32 %v2677, 0.044715
    %v2684 = vmul.f32 %v2682, %v2672
    %v2685 = vmul.f32 %v2683, %v2677
    %v2686 = vmul.f32 %v2684, %v2672
    %v2687 = vmul.f32 %v2685, %v2677
    %v2688 = vadd.f32 %v2672, %v2686
    %v2689 = vadd.f32 %v2677, %v2687
    %v2690 = vmul.f32 %v2688, 0.7978846
    %v2691 = vmul.f32 %v2689, 0.7978846
    %v2692 = vtanh.pop %v2690
    %v2693 = vtanh.pop %v2691
    %v2694 = vadd.f32 %v2692, 1.0
    %v2695 = vadd.f32 %v2693, 1.0
    %v2696 = vmul.f32 %v2680, %v2694
    %v2697 = vmul.f32 %v2681, %v2695
    %s2698 = scalar_lea.vmem %s15, 64
    %v2699 = vld [vmem:[%s2698] sm:$0xff]
    %v2700 = vld [vmem:[%s2698 + $0x8] sm:$0xff]
    %v2701 = vld [vmem:[%s2698 + $0x10] sm:$0xff]
    %v2702 = vld [vmem:[%s2698 + $0x18] sm:$0xff]
    %v2703 = vld [vmem:[%s2698 + $0x20] sm:$0xff]
    %v2704 = vld [vmem:[%s2698 + $0x28] sm:$0xff]
    %v2705 = vld [vmem:[%s2698 + $0x30] sm:$0xff]
    %v2706 = vld [vmem:[%s2698 + $0x38] sm:$0xff]
    %s2707 = scalar_lea.vmem %s16, 1
    %v2708 = vld [vmem:[%s2707] sm:$0x1]
    %v2710 = vlaneseq
    %v2711 = vshrl.u32 %v2710, 7
    %v2712 = vsub.s32 0, %v2711
    %v2713 = vrot.slane %v2708, %v2712
    %v2716 = vsel %vm1544, %v2696, 0
    %v2719 = vsel %vm1544, %v2697, 0
    %2721 = vmatprep.subr.mxu0 0.0
    %2722 = vmatpush1.msra.mxu0 %v2699
    %2723 = vmatprep.subr.mxu0 0.0
    %2724 = vmatpush1.msra.mxu0 %v2700
    %2725 = vmatprep.subr.mxu0 0.0
    %2726 = vmatpush1.msra.mxu0 %v2701
    %2727 = vmatprep.subr.mxu0 0.0
    %2728 = vmatpush1.msra.mxu0 %v2702
    %2729 = vmatprep.subr.mxu0 0.0
    %2730 = vmatpush1.msra.mxu0 %v2703
    %2731 = vmatprep.subr.mxu0 0.0
    %2732 = vmatpush1.msra.mxu0 %v2704
    %2733 = vmatprep.subr.mxu0 0.0
    %2734 = vmatpush1.msra.mxu0 %v2705
    %2735 = vmatprep.subr.mxu0 0.0
    %2736 = vmatpush1.msra.mxu0 %v2706
    %2737 = vmatprep.subr.mxu0 0.0
    %2738 = vmatpush1.msra.mxu0 0.0
    %2739 = vmatprep.subr.mxu0 0.0
    %2740 = vmatpush1.msra.mxu0 0.0
    %2741 = vmatprep.subr.mxu0 0.0
    %2742 = vmatpush1.msra.mxu0 0.0
    %2743 = vmatprep.subr.mxu0 0.0
    %2744 = vmatpush1.msra.mxu0 0.0
    %2745 = vmatprep.subr.mxu0 0.0
    %2746 = vmatpush1.msra.mxu0 0.0
    %2747 = vmatprep.subr.mxu0 0.0
    %2748 = vmatpush1.msra.mxu0 0.0
    %2749 = vmatprep.subr.mxu0 0.0
    %2750 = vmatpush1.msra.mxu0 0.0
    %2751 = vmatprep.subr.mxu0 0.0
    %2752 = vmatpush1.msra.mxu0 0.0
    %2753 = vmatprep.subr.mxu0 0.0
    %2754 = vmatpush1.msra.mxu0 0.0
    %2755 = vmatprep.subr.mxu0 0.0
    %2756 = vmatpush1.msra.mxu0 0.0
    %2757 = vmatprep.subr.mxu0 0.0
    %2758 = vmatpush1.msra.mxu0 0.0
    %2759 = vmatprep.subr.mxu0 0.0
    %2760 = vmatpush1.msra.mxu0 0.0
    %2761 = vmatprep.subr.mxu0 0.0
    %2762 = vmatpush1.msra.mxu0 0.0
    %2763 = vmatprep.subr.mxu0 0.0
    %2764 = vmatpush1.msra.mxu0 0.0
    %2765 = vmatprep.subr.mxu0 0.0
    %2766 = vmatpush1.msra.mxu0 0.0
    %2767 = vmatprep.subr.mxu0 0.0
    %2768 = vmatpush1.msra.mxu0 0.0
    %2769 = vmatprep.subr.mxu0 0.0
    %2770 = vmatpush1.msra.mxu0 0.0
    %2771 = vmatprep.subr.mxu0 0.0
    %2772 = vmatpush1.msra.mxu0 0.0
    %2773 = vmatprep.subr.mxu0 0.0
    %2774 = vmatpush1.msra.mxu0 0.0
    %2775 = vmatprep.subr.mxu0 0.0
    %2776 = vmatpush1.msra.mxu0 0.0
    %2777 = vmatprep.subr.mxu0 0.0
    %2778 = vmatpush1.msra.mxu0 0.0
    %2779 = vmatprep.subr.mxu0 0.0
    %2780 = vmatpush1.msra.mxu0 0.0
    %2781 = vmatprep.subr.mxu0 0.0
    %2782 = vmatpush1.msra.mxu0 0.0
    %2783 = vmatprep.subr.mxu0 0.0
    %2784 = vmatpush1.msra.mxu0 0.0
    %2785 = vmatprep.mubr.f32.mxu0 0.0
    %2786 = vmatmul.mubr.f32.gmra.mrb[0].mxu0 %v2716
    %v2787 = vpop.f32.mrb[0].mxu0
    %v2788 = vadd.f32 %v2713, %v2787
    %v2789 = vpop.f32.mrb[0].mxu0
    %2790 = vmatprep.mubr.f32.mxu0 0.0
    %2791 = vmatmul.mubr.f32.gmra.mrb[0].mxu0 %v2719
    %v2792 = vpop.f32.mrb[0].mxu0
    %v2793 = vadd.f32 %v2713, %v2792
    %v2794 = vpop.f32.mrb[0].mxu0
    %2795 = vdwg.mxu0
    %v2796 = vadd.f32 %v2538, %v2788
    %v2797 = vadd.f32 %v2539, %v2793
    %v2798 = vld [vmem:[%s17] sm:$0x1]
    %v2799 = vld [vmem:[%s18] sm:$0x1]
    %v2800 = vsel %vm467, %v2796, 0.0
    %2801 = vadd.xlane.f32.xlu0 %v2800
    %v2802 = vpop.xlane.xlu0 %2801
    %v2803 = vsel %vm467, %v2797, 0.0
    %2804 = vadd.xlane.f32.xlu0 %v2803
    %v2805 = vpop.xlane.xlu0 %2804
    %v2806 = vmul.f32 %v2802, %v474
    %v2807 = vmul.f32 %v2805, %v474
    %v2808 = vsub.f32 %v2796, %v2806
    %v2809 = vsub.f32 %v2797, %v2807
    %v2810 = vmul.f32 %v2808, %v2808
    %v2811 = vmul.f32 %v2809, %v2809
    %v2812 = vsel %vm467, %v2810, 0.0
    %2813 = vadd.xlane.f32.xlu0 %v2812
    %v2814 = vpop.xlane.xlu0 %2813
    %v2815 = vsel %vm467, %v2811, 0.0
    %2816 = vadd.xlane.f32.xlu0 %v2815
    %v2817 = vpop.xlane.xlu0 %2816
    %v2818 = vmul.f32 %v2814, %v474
    %v2819 = vmul.f32 %v2817, %v474
    %v2820 = vadd.f32 %v2818, 1e-12
    %v2821 = vadd.f32 %v2819, 1e-12
    %v2822 = vrsqrt.pop %v2820
    %v2823 = vrsqrt.pop %v2821
    %v2824 = vmul.f32 %v2808, %v2822
    %v2825 = vmul.f32 %v2809, %v2823
    %v2827 = vlaneseq
    %v2828 = vshrl.u32 %v2827, 7
    %v2829 = vsub.s32 0, %v2828
    %v2830 = vrot.slane %v2798, %v2829
    %v2832 = vmul.f32 %v2824, %v2830
    %v2833 = vmul.f32 %v2825, %v2830
    %v2835 = vlaneseq
    %v2836 = vshrl.u32 %v2835, 7
    %v2837 = vsub.s32 0, %v2836
    %v2838 = vrot.slane %v2799, %v2837
    %v2840 = vadd.f32 %v2832, %v2838
    %v2841 = vadd.f32 %v2833, %v2838
    %v2843 = vrot.slane %v2841, 7
    %vm2845 = vcmask 1040384
    %v2846 = vsel %vm2845, %v2840, %v2843
    %v2847 = vld [vmem:[%s19] sm:$0xff]
    %v2848 = vld [vmem:[%s19 + $0x8] sm:$0xff]
    %v2849 = vld [vmem:[%s19 + $0x10] sm:$0xff]
    %v2850 = vld [vmem:[%s19 + $0x18] sm:$0xff]
    %v2851 = vld [vmem:[%s20] sm:$0x1]
    %v2853 = vlaneseq
    %v2854 = vshrl.u32 %v2853, 7
    %v2855 = vsub.s32 0, %v2854
    %v2856 = vrot.slane %v2851, %v2855
    %v2859 = vsel %vm467, %v2846, 0
    %2861 = vmatprep.subr.mxu0 0.0
    %2862 = vmatpush1.msra.mxu0 %v2847
    %2863 = vmatprep.subr.mxu0 0.0
    %2864 = vmatpush1.msra.mxu0 %v2848
    %2865 = vmatprep.subr.mxu0 0.0
    %2866 = vmatpush1.msra.mxu0 %v2849
    %2867 = vmatprep.subr.mxu0 0.0
    %2868 = vmatpush1.msra.mxu0 %v2850
    %2869 = vmatprep.subr.mxu0 0.0
    %2870 = vmatpush1.msra.mxu0 0.0
    %2871 = vmatprep.subr.mxu0 0.0
    %2872 = vmatpush1.msra.mxu0 0.0
    %2873 = vmatprep.subr.mxu0 0.0
    %2874 = vmatpush1.msra.mxu0 0.0
    %2875 = vmatprep.subr.mxu0 0.0
    %2876 = vmatpush1.msra.mxu0 0.0
    %2877 = vmatprep.subr.mxu0 0.0
    %2878 = vmatpush1.msra.mxu0 0.0
    %2879 = vmatprep.subr.mxu0 0.0
    %2880 = vmatpush1.msra.mxu0 0.0
    %2881 = vmatprep.subr.mxu0 0.0
    %2882 = vmatpush1.msra.mxu0 0.0
    %2883 = vmatprep.subr.mxu0 0.0
    %2884 = vmatpush1.msra.mxu0 0.0
    %2885 = vmatprep.subr.mxu0 0.0
    %2886 = vmatpush1.msra.mxu0 0.0
    %2887 = vmatprep.subr.mxu0 0.0
    %2888 = vmatpush1.msra.mxu0 0.0
    %2889 = vmatprep.subr.mxu0 0.0
    %2890 = vmatpush1.msra.mxu0 0.0
    %2891 = vmatprep.subr.mxu0 0.0
    %2892 = vmatpush1.msra.mxu0 0.0
    %2893 = vmatprep.subr.mxu0 0.0
    %2894 = vmatpush1.msra.mxu0 0.0
    %2895 = vmatprep.subr.mxu0 0.0
    %2896 = vmatpush1.msra.mxu0 0.0
    %2897 = vmatprep.subr.mxu0 0.0
    %2898 = vmatpush1.msra.mxu0 0.0
    %2899 = vmatprep.subr.mxu0 0.0
    %2900 = vmatpush1.msra.mxu0 0.0
    %2901 = vmatprep.subr.mxu0 0.0
    %2902 = vmatpush1.msra.mxu0 0.0
    %2903 = vmatprep.subr.mxu0 0.0
    %2904 = vmatpush1.msra.mxu0 0.0
    %2905 = vmatprep.subr.mxu0 0.0
    %2906 = vmatpush1.msra.mxu0 0.0
    %2907 = vmatprep.subr.mxu0 0.0
    %2908 = vmatpush1.msra.mxu0 0.0
    %2909 = vmatprep.subr.mxu0 0.0
    %2910 = vmatpush1.msra.mxu0 0.0
    %2911 = vmatprep.subr.mxu0 0.0
    %2912 = vmatpush1.msra.mxu0 0.0
    %2913 = vmatprep.subr.mxu0 0.0
    %2914 = vmatpush1.msra.mxu0 0.0
    %2915 = vmatprep.subr.mxu0 0.0
    %2916 = vmatpush1.msra.mxu0 0.0
    %2917 = vmatprep.subr.mxu0 0.0
    %2918 = vmatpush1.msra.mxu0 0.0
    %2919 = vmatprep.subr.mxu0 0.0
    %2920 = vmatpush1.msra.mxu0 0.0
    %2921 = vmatprep.subr.mxu0 0.0
    %2922 = vmatpush1.msra.mxu0 0.0
    %2923 = vmatprep.subr.mxu0 0.0
    %2924 = vmatpush1.msra.mxu0 0.0
    %2925 = vmatprep.mubr.f32.mxu0 0.0
    %2926 = vmatmul.mubr.f32.gmra.mrb[0].mxu0 %v2859
    %v2927 = vpop.f32.mrb[0].mxu0
    %v2928 = vadd.f32 %v2856, %v2927
    %v2929 = vpop.f32.mrb[0].mxu0
    %2930 = vdwg.mxu0
    %vm2931 = vcmask 74752
    %v2932 = vsel %vm2931, %v2928, -inf
    %2933 = vmax.xlane.f32.xlu0 %v2932
    %v2934 = vpop.xlane.xlu0 %2933
    %v2935 = vsub.f32 %v2928, %v2934
    %v2936 = vmul.f32 %v2935, 1.442695
    %v2937 = vpow.pop %v2936
    %v2938 = vsel %vm2931, %v2937, 0.0
    %2939 = vadd.xlane.f32.xlu0 %v2938
    %v2940 = vpop.xlane.xlu0 %2939
    %v2941 = vlog2.pop %v2940
    %v2942 = vmul.f32 %v2941, 0.6931472
    %s2943 = sld [smem:[#allocation2]]
    %v2944 = vstv %s2943
    %vm2945 = vcmp.eq.s32.totalorder %v463, %v2944
    %v2946 = vsel %vm2945, 1, 0
    %v2947 = vcvt.s32.f32 %v2946
    %v2948 = vmul.f32 %v2947, %v2935
    %vm2949 = vcmask 73728
    %v2950 = vsel %vm2949, %v2948, 0.0
    %2951 = vadd.xlane.f32.xlu0 %v2950
    %v2952 = vpop.xlane.xlu0 %2951
    %v2953 = vadd.f32 %v2942, 0.0
    %v2954 = vsub.f32 %v2953, %v2952
    %s2955 = sld [smem:[#allocation2 + $0x1]]
    %v2956 = vstv %s2955
    %vm2957 = vcmp.eq.s32.totalorder %v463, %v2956
    %v2958 = vsel %vm2957, 1, 0
    %v2959 = vcvt.s32.f32 %v2958
    %v2960 = vmul.f32 %v2959, %v2935
    %vm2961 = vcmask 74753
    %v2962 = vsel %vm2961, %v2960, 0.0
    %2963 = vadd.xlane.f32.xlu0 %v2962
    %v2964 = vpop.xlane.xlu0 %2963
    %v2966 = vrot.slane %v2942, 1
    %v2968 = vadd.f32 %v2954, %v2966
    %v2970 = vrot.slane %v2964, 1
    %v2972 = vsub.f32 %v2968, %v2970
    %v2973 = vmul.f32 %v2972, 0.5
    %vm2974 = vcmask 0
    %2975 = vst.msk [vmem:[#allocation5] sm:$0x1] %vm2974, %v2973
    // Predicated region
    $region94: #{vit_forward.1} parent=1 // pred_check
      _
    $region95: #{vit_forward.1} parent=1 // pred_check_branch
      %2977 = sbr.rel (0) target = $region97
    $region96: #{vit_forward.1} parent=1 // pred_region
      %s2979 = ssub.s32 16, 16
      %2980 = vsyncadd [#allocation3], %s2979
      %s2982 = sshll.u32 [#allocation5], 4
      %s2983 = int_to_ptr.vmem [resolvable:$true] %s2982
      %2985 = dma.vmem_to_hbm [thread:$0]  %s2983, 16, %s22, [#allocation3]
    $region97: #{vit_forward.1} parent=1 // pred_fallthru
      _
    // Predicated region
    $region98: #{vit_forward.1} parent=1 // pred_check
      _
    $region99: #{vit_forward.1} parent=1 // pred_check_branch
      %2987 = sbr.rel (0) target = $region101
    $region100: #{vit_forward.1} parent=1 // pred_region
      %2988 = dma.done [#allocation3], 16
    $region101: #{vit_forward.1} parent=1 // pred_fallthru
      _
    %2989 = vsyncpa [#allocation3], 1
    %2990 = vsyncpa [#allocation4], 1

</llo_original>
